<compile_context>
chip_gen: v6e
topology: v6e:2x2x1
jax: 0.10.0
libtpu: 0.0.40
codegen_flags: <defaults>
</compile_context>

<pallas_src>
import jax
import jax.numpy as jnp
import numpy as np
from jax.experimental import pallas as pl
from jax.experimental.pallas import tpu as pltpu

NODE_FEATURE_DIM = 7
FILTER_LENGTH = 3


def _graph_conv_kernel(bias_ref, u_ref, poly_ref, xw_ref, out_ref):
    U = u_ref[...]          # (G, N, N) f32
    p = poly_ref[...]       # (G, N)    f32
    xw = xw_ref[...]        # (G, N)    f32

    # graph_state @ w^T = 1^T U diag(p) U^T (X w^T) = Σ_n (U^T 1)_n · p_n · (U^T X w^T)_n
    col_sum = jnp.sum(U, axis=1)                         # (G, N)  == U^T 1
    utxw = jnp.sum(U * xw[:, :, None], axis=1)           # (G, N)  == U^T (X w^T)
    prod = col_sum * p * utxw                            # (G, N)

    # Reduce over N via a ones-row contraction so the result lands lane-major as (1, G).
    ones_row = jnp.ones((1, prod.shape[1]), jnp.float32)
    out_row = jax.lax.dot_general(ones_row, prod, (((1,), (1,)), ((), ())),
                                  preferred_element_type=jnp.float32)   # (1, G)
    out_ref[...] = out_row + bias_ref[0]


def _to_dense(x, edge_index, batch):
    """Plain-JAX glue: to_dense_batch + to_dense_adj (zero-padded)."""
    batch_np = np.asarray(batch)
    num_graphs = int(batch_np.max()) + 1
    counts = np.bincount(batch_np, minlength=num_graphs)
    max_nodes = int(counts.max())
    offsets = np.concatenate([[0], np.cumsum(counts)[:-1]]).astype(np.int32)
    pos = jnp.asarray(np.arange(batch_np.shape[0]) - offsets[batch_np], jnp.int32)

    F = x.shape[1]
    X = jnp.zeros((num_graphs, max_nodes, F), jnp.float32).at[batch, pos].set(x)
    src, dst = edge_index[0], edge_index[1]
    A = jnp.zeros((num_graphs, max_nodes, max_nodes), jnp.float32).at[
        batch[src], pos[src], pos[dst]].set(1.0)
    return X, A


def _choose_g_tile(n):
    """Largest lane-friendly graph tile whose double-buffered inputs fit a safe VMEM budget."""
    pad8 = -(-n // 8) * 8
    pad128 = -(-n // 128) * 128
    # f32 bytes per graph in one input buffer set (U tile + poly row + Xw row, layout-padded)
    bytes_per_graph = (pad8 * pad128 + 2 * pad128) * 4
    budget = (24 * 1024 * 1024) // 2           # double-buffered; keep well under v7x's 64 MiB VMEM
    g = 128                                    # 128 lanes -> unmasked, lane-dense output stores
    while g > 8 and g * bytes_per_graph > budget:
        g //= 2
    return g


def simple_graph_conv_forward(x, edge_index, batch, h, w, bias):
    X, A = _to_dense(x, edge_index, batch)
    # TODO(synk): torch.linalg.eigh has no Pallas equivalent; eigendecomposition stays in XLA.
    L, U = jnp.linalg.eigh(A)
    num_graphs, N, F = X.shape

    # Hoisted to XLA (perf feedback): polynomial filter and Linear-weight fold.
    poly = sum(h[k] * L ** k for k in range(FILTER_LENGTH)).astype(jnp.float32)   # (B, N)
    Xw = jnp.einsum('bnf,f->bn', X, w.reshape(-1)).astype(jnp.float32)            # (B, N)
    U = U.astype(jnp.float32)

    # Pad graph count to a multiple of G_TILE (zero-padded graphs contribute bias only
    # and are trimmed off below).
    G_TILE = _choose_g_tile(N)
    b_pad = ((num_graphs + G_TILE - 1) // G_TILE) * G_TILE
    pad = b_pad - num_graphs
    if pad:
        U = jnp.pad(U, ((0, pad), (0, 0), (0, 0)))
        poly = jnp.pad(poly, ((0, pad), (0, 0)))
        Xw = jnp.pad(Xw, ((0, pad), (0, 0)))
    num_tiles = b_pad // G_TILE

    out = pl.pallas_call(
        _graph_conv_kernel,
        out_shape=jax.ShapeDtypeStruct((num_tiles, G_TILE), jnp.float32),
        grid_spec=pltpu.PrefetchScalarGridSpec(
            num_scalar_prefetch=0,
            grid=(num_tiles,),
            in_specs=[
                pl.BlockSpec(memory_space=pltpu.MemorySpace.SMEM),       # bias (scalar)
                pl.BlockSpec((G_TILE, N, N), lambda t: (t, 0, 0)),       # U
                pl.BlockSpec((G_TILE, N), lambda t: (t, 0)),             # poly = p(lambda)
                pl.BlockSpec((G_TILE, N), lambda t: (t, 0)),             # Xw = X @ w^T
            ],
            out_specs=pl.BlockSpec((1, G_TILE), lambda t: (t, 0)),       # lane-dense row
        ),
        compiler_params=pltpu.CompilerParams(
            dimension_semantics=("parallel",),
            vmem_limit_bytes=32 * 1024 * 1024),
    )(bias, U, poly, Xw)
    return out.reshape(-1)[:num_graphs]


def reference_forward(x, edge_index, batch, h, w, bias):
    """Pure-JAX reference mirroring the PyTorch forward."""
    X, A = _to_dense(x, edge_index, batch)
    L, U = jnp.linalg.eigh(A)
    poly = sum(h[k] * L ** k for k in range(FILTER_LENGTH))            # (B, N)
    node_state = jnp.einsum('bij,bj,bkj,bkf->bif', U, poly, U, X)
    graph_state = node_state.sum(1)
    return (graph_state @ w.T + bias).reshape(-1)


if __name__ == "__main__":
    key = jax.random.PRNGKey(0)
    k1, k2, k3, k4 = jax.random.split(key, 4)

    # graph 0: 5-node cycle; graph 1: 6-node path (edges added in both directions
    # so the adjacency is symmetric, as eigh requires).
    e0 = [(0, 1), (1, 2), (2, 3), (3, 4), (4, 0)]
    e1 = [(5, 6), (6, 7), (7, 8), (8, 9), (9, 10)]
    edges = e0 + e1
    edges = edges + [(j, i) for (i, j) in edges]
    edge_index = jnp.asarray(np.array(edges, dtype=np.int32).T)        # (2, 20)
    batch = jnp.asarray([0] * 5 + [1] * 6, jnp.int32)                  # (11,)
    num_nodes = batch.shape[0]

    x = jax.random.normal(k1, (num_nodes, NODE_FEATURE_DIM), jnp.float32)

    # Parameters (deterministic; mirrors the torch __init__ shapes/semantics)
    h = 1e-5 * jax.random.normal(k2, (FILTER_LENGTH,), jnp.float32)
    h = h.at[0].set(1.0)
    bound = 1.0 / np.sqrt(NODE_FEATURE_DIM)
    w = jax.random.uniform(k3, (1, NODE_FEATURE_DIM), jnp.float32, -bound, bound)
    bias = jax.random.uniform(k4, (1,), jnp.float32, -bound, bound)

    out = simple_graph_conv_forward(x, edge_index, batch, h, w, bias)
    out = jax.block_until_ready(out)

    ref = reference_forward(x, edge_index, batch, h, w, bias)
    assert out.shape == (2,)
    assert np.allclose(np.asarray(out), np.asarray(ref), rtol=1e-4, atol=1e-4), (out, ref)
    print("KERNEL_OK")
</pallas_src>

<mosaic_0001>
module attributes {stable_mosaic.version = 11 : i64} {
  func.func @_graph_conv_kernel(%arg0: i32, %arg1: memref<1xf32, #tpu.memory_space<smem>>, %arg2: memref<128x6x6xf32, #tpu.memory_space<vmem>>, %arg3: memref<128x6xf32, #tpu.memory_space<vmem>>, %arg4: memref<128x6xf32, #tpu.memory_space<vmem>>, %arg5: memref<1x128xf32, #tpu.memory_space<vmem>>) attributes {dimension_semantics = [#tpu.dimension_semantics<parallel>], iteration_bounds = array<i64: 1>, scalar_prefetch = 0 : i64, scratch_operands = 0 : i64, tpu.core_type = #tpu.core_type<tc>, window_params = [{transform_indices = @transform_0, window_bounds = array<i64: 1>}, {transform_indices = @transform_1, window_bounds = array<i64: 128, 6, 6>}, {transform_indices = @transform_2, window_bounds = array<i64: 128, 6>}, {transform_indices = @transform_3, window_bounds = array<i64: 128, 6>}, {transform_indices = @transform_4, window_bounds = array<i64: 1, 128>}]} {
    %c0 = arith.constant 0 : index
    %c0_0 = arith.constant 0 : index
    %c0_1 = arith.constant 0 : index
    %0 = vector.load %arg2[%c0, %c0_0, %c0_1] : memref<128x6x6xf32, #tpu.memory_space<vmem>>, vector<128x6x6xf32>
    %c0_2 = arith.constant 0 : index
    %c0_3 = arith.constant 0 : index
    %1 = vector.load %arg3[%c0_2, %c0_3] : memref<128x6xf32, #tpu.memory_space<vmem>>, vector<128x6xf32>
    %c0_4 = arith.constant 0 : index
    %c0_5 = arith.constant 0 : index
    %2 = vector.load %arg4[%c0_4, %c0_5] : memref<128x6xf32, #tpu.memory_space<vmem>>, vector<128x6xf32>
    %cst = arith.constant dense<0.000000e+00> : vector<128x6xf32>
    %3 = vector.multi_reduction <add>, %0, %cst [1] : vector<128x6x6xf32> to vector<128x6xf32>
    %4 = vector.shape_cast %2 : vector<128x6xf32> to vector<128x6x1xf32>
    %5 = vector.broadcast %4 : vector<128x6x1xf32> to vector<128x6x6xf32>
    %6 = arith.mulf %0, %5 : vector<128x6x6xf32>
    %cst_6 = arith.constant dense<0.000000e+00> : vector<128x6xf32>
    %7 = vector.multi_reduction <add>, %6, %cst_6 [1] : vector<128x6x6xf32> to vector<128x6xf32>
    %8 = arith.mulf %3, %1 : vector<128x6xf32>
    %9 = arith.mulf %8, %7 : vector<128x6xf32>
    %cst_7 = arith.constant 1.000000e+00 : f32
    %10 = vector.broadcast %cst_7 : f32 to vector<1x6xf32>
    %cst_8 = arith.constant dense<0.000000e+00> : vector<1x128xf32>
    %11 = tpu.matmul %10, %9, %cst_8 {dimension_numbers = #tpu.dot_dimension_numbers<[1], [1], [0], [0], [0, 0, 1, 0], [], []>} : vector<1x6xf32>, vector<128x6xf32>, vector<1x128xf32> -> vector<1x128xf32>
    %c0_9 = arith.constant 0 : index
    %12 = memref.load %arg1[%c0_9] : memref<1xf32, #tpu.memory_space<smem>>
    %13 = vector.broadcast %12 : f32 to vector<1x128xf32>
    %14 = arith.addf %11, %13 : vector<1x128xf32>
    %c0_10 = arith.constant 0 : index
    %c0_11 = arith.constant 0 : index
    %15 = vector.load %arg5[%c0_10, %c0_11] : memref<1x128xf32, #tpu.memory_space<vmem>>, vector<1x128xf32>
    tpu.vector_store %arg5[%c0_10, %c0_11], %14 {strides = array<i32>} : memref<1x128xf32, #tpu.memory_space<vmem>>, vector<1x128xf32>,
    return
  }
  func.func @transform_0(%arg0: i32) -> i32 {
    %c0_i32 = arith.constant 0 : i32
    %c0_i32_0 = arith.constant 0 : i32
    return %c0_i32 : i32
  }
  func.func @transform_1(%arg0: i32) -> (i32, i32, i32) {
    %c0_i32 = arith.constant 0 : i32
    %c0_i32_0 = arith.constant 0 : i32
    %c0_i32_1 = arith.constant 0 : i32
    return %arg0, %c0_i32, %c0_i32_0 : i32, i32, i32
  }
  func.func @transform_2(%arg0: i32) -> (i32, i32) {
    %c0_i32 = arith.constant 0 : i32
    %c0_i32_0 = arith.constant 0 : i32
    return %arg0, %c0_i32 : i32, i32
  }
  func.func @transform_3(%arg0: i32) -> (i32, i32) {
    %c0_i32 = arith.constant 0 : i32
    %c0_i32_0 = arith.constant 0 : i32
    return %arg0, %c0_i32 : i32, i32
  }
  func.func @transform_4(%arg0: i32) -> (i32, i32) {
    %c0_i32 = arith.constant 0 : i32
    %c0_i32_0 = arith.constant 0 : i32
    return %arg0, %c0_i32 : i32, i32
  }
}

</mosaic_0001>

<llo_original>
// kernel: tpu_custom_call.1
$region0: #{tpu_custom_call.1}
  #allocation0 [shape = 'u32[]', space=smem, size = 0x4, offset = 0x4, fixed_abs, tag = 'smem constant byte address 0x4 - core index']
  #allocation1 [shape = 'u32[144,128]{1,0:T(1,128)}', space=vmem, size = 0x12000, scoped, tag = 'internal scratch']
  #allocation2 [shape = 'f32[1]{0:T(128)S(6)}', space=smem, size = 0x200, scoped, tag = 'scoped memory for tpu_custom_call.1']
  %s0 = inlined_call_operand.<no memory space> [shape: f32[1], index: 0, kind: input, shape index: {}]
  %s1 = inlined_call_operand.vmem [shape: f32[128,6,6], index: 1, kind: input, shape index: {}]
  %s2 = inlined_call_operand.vmem [shape: f32[128,6], index: 2, kind: input, shape index: {}]
  %s3 = inlined_call_operand.vmem [shape: f32[128,6], index: 3, kind: input, shape index: {}]
  %s4 = inlined_call_operand.hbm [shape: f32[1,128], index: 4, kind: output, shape index: {}]
  %s5 = sld [smem:[#allocation0]]
  $region26: #{tpu_custom_call.1} parent=0
    _
  %s7 = ssub.s32 1, %s5
  %s8 = scalar_select 0, %s7, %s5
  %9 = sst [smem:[#allocation2]] %s0
  $region1: #{tpu_custom_call.1} parent=0
    #allocation3 [shape = 'u8[512]{0}', space=vmem, size = 0x400, scoped, tag = 'output window, operand 0, single buffered']
    #allocation4 [shape = 's32[1]{0}', space=sflag, size = 0x4, scoped, tag = 'scoped memory for tpu_custom_call.1']
    %10 = vsyncpa [#allocation4], 0
    // Predicated region
    $region2: #{tpu_custom_call.1} parent=1 // pred_check
      _
    $region3: #{tpu_custom_call.1} parent=1 // pred_check_branch
      %12 = sbr.rel (0) target = $region5
    $region4: #{tpu_custom_call.1} parent=1 // pred_region
      _
    $region5: #{tpu_custom_call.1} parent=1 // pred_fallthru
      _
    // Predicated region
    $region6: #{tpu_custom_call.1} parent=1 // pred_check
      _
    $region7: #{tpu_custom_call.1} parent=1 // pred_check_branch
      %14 = sbr.rel (0) target = $region9
    $region8: #{tpu_custom_call.1} parent=1 // pred_region
      _
    $region9: #{tpu_custom_call.1} parent=1 // pred_fallthru
      _
    // Predicated region
    $region10: #{tpu_custom_call.1} parent=1 // pred_check
      _
    $region11: #{tpu_custom_call.1} parent=1 // pred_check_branch
      %16 = sbr.rel (0) target = $region13
    $region12: #{tpu_custom_call.1} parent=1 // pred_region
      _
    $region13: #{tpu_custom_call.1} parent=1 // pred_fallthru
      _
    // Predicated region
    $region14: #{tpu_custom_call.1} parent=1 // pred_check
      _
    $region15: #{tpu_custom_call.1} parent=1 // pred_check_branch
      %18 = sbr.rel (0) target = $region17
    $region16: #{tpu_custom_call.1} parent=1 // pred_region
      _
    $region17: #{tpu_custom_call.1} parent=1 // pred_fallthru
      _
    %v19 = vld [vmem:[%s1] sm:$0x3f]
    %v20 = vld [vmem:[%s1 + $0x8] sm:$0x3f]
    %v21 = vld [vmem:[%s1 + $0x10] sm:$0x3f]
    %v22 = vld [vmem:[%s1 + $0x18] sm:$0x3f]
    %v23 = vld [vmem:[%s1 + $0x20] sm:$0x3f]
    %v24 = vld [vmem:[%s1 + $0x28] sm:$0x3f]
    %v25 = vld [vmem:[%s1 + $0x30] sm:$0x3f]
    %v26 = vld [vmem:[%s1 + $0x38] sm:$0x3f]
    %v27 = vld [vmem:[%s1 + $0x40] sm:$0x3f]
    %v28 = vld [vmem:[%s1 + $0x48] sm:$0x3f]
    %v29 = vld [vmem:[%s1 + $0x50] sm:$0x3f]
    %v30 = vld [vmem:[%s1 + $0x58] sm:$0x3f]
    %v31 = vld [vmem:[%s1 + $0x60] sm:$0x3f]
    %v32 = vld [vmem:[%s1 + $0x68] sm:$0x3f]
    %v33 = vld [vmem:[%s1 + $0x70] sm:$0x3f]
    %v34 = vld [vmem:[%s1 + $0x78] sm:$0x3f]
    %v35 = vld [vmem:[%s1 + $0x80] sm:$0x3f]
    %v36 = vld [vmem:[%s1 + $0x88] sm:$0x3f]
    %v37 = vld [vmem:[%s1 + $0x90] sm:$0x3f]
    %v38 = vld [vmem:[%s1 + $0x98] sm:$0x3f]
    %v39 = vld [vmem:[%s1 + $0xa0] sm:$0x3f]
    %v40 = vld [vmem:[%s1 + $0xa8] sm:$0x3f]
    %v41 = vld [vmem:[%s1 + $0xb0] sm:$0x3f]
    %v42 = vld [vmem:[%s1 + $0xb8] sm:$0x3f]
    %v43 = vld [vmem:[%s1 + $0xc0] sm:$0x3f]
    %v44 = vld [vmem:[%s1 + $0xc8] sm:$0x3f]
    %v45 = vld [vmem:[%s1 + $0xd0] sm:$0x3f]
    %v46 = vld [vmem:[%s1 + $0xd8] sm:$0x3f]
    %v47 = vld [vmem:[%s1 + $0xe0] sm:$0x3f]
    %v48 = vld [vmem:[%s1 + $0xe8] sm:$0x3f]
    %v49 = vld [vmem:[%s1 + $0xf0] sm:$0x3f]
    %v50 = vld [vmem:[%s1 + $0xf8] sm:$0x3f]
    %v51 = vld [vmem:[%s1 + $0x100] sm:$0x3f]
    %v52 = vld [vmem:[%s1 + $0x108] sm:$0x3f]
    %v53 = vld [vmem:[%s1 + $0x110] sm:$0x3f]
    %v54 = vld [vmem:[%s1 + $0x118] sm:$0x3f]
    %v55 = vld [vmem:[%s1 + $0x120] sm:$0x3f]
    %v56 = vld [vmem:[%s1 + $0x128] sm:$0x3f]
    %v57 = vld [vmem:[%s1 + $0x130] sm:$0x3f]
    %v58 = vld [vmem:[%s1 + $0x138] sm:$0x3f]
    %v59 = vld [vmem:[%s1 + $0x140] sm:$0x3f]
    %v60 = vld [vmem:[%s1 + $0x148] sm:$0x3f]
    %v61 = vld [vmem:[%s1 + $0x150] sm:$0x3f]
    %v62 = vld [vmem:[%s1 + $0x158] sm:$0x3f]
    %v63 = vld [vmem:[%s1 + $0x160] sm:$0x3f]
    %v64 = vld [vmem:[%s1 + $0x168] sm:$0x3f]
    %v65 = vld [vmem:[%s1 + $0x170] sm:$0x3f]
    %v66 = vld [vmem:[%s1 + $0x178] sm:$0x3f]
    %v67 = vld [vmem:[%s1 + $0x180] sm:$0x3f]
    %v68 = vld [vmem:[%s1 + $0x188] sm:$0x3f]
    %v69 = vld [vmem:[%s1 + $0x190] sm:$0x3f]
    %v70 = vld [vmem:[%s1 + $0x198] sm:$0x3f]
    %v71 = vld [vmem:[%s1 + $0x1a0] sm:$0x3f]
    %v72 = vld [vmem:[%s1 + $0x1a8] sm:$0x3f]
    %v73 = vld [vmem:[%s1 + $0x1b0] sm:$0x3f]
    %v74 = vld [vmem:[%s1 + $0x1b8] sm:$0x3f]
    %v75 = vld [vmem:[%s1 + $0x1c0] sm:$0x3f]
    %v76 = vld [vmem:[%s1 + $0x1c8] sm:$0x3f]
    %v77 = vld [vmem:[%s1 + $0x1d0] sm:$0x3f]
    %v78 = vld [vmem:[%s1 + $0x1d8] sm:$0x3f]
    %v79 = vld [vmem:[%s1 + $0x1e0] sm:$0x3f]
    %v80 = vld [vmem:[%s1 + $0x1e8] sm:$0x3f]
    %v81 = vld [vmem:[%s1 + $0x1f0] sm:$0x3f]
    %v82 = vld [vmem:[%s1 + $0x1f8] sm:$0x3f]
    %v83 = vld [vmem:[%s1 + $0x200] sm:$0x3f]
    %v84 = vld [vmem:[%s1 + $0x208] sm:$0x3f]
    %v85 = vld [vmem:[%s1 + $0x210] sm:$0x3f]
    %v86 = vld [vmem:[%s1 + $0x218] sm:$0x3f]
    %v87 = vld [vmem:[%s1 + $0x220] sm:$0x3f]
    %v88 = vld [vmem:[%s1 + $0x228] sm:$0x3f]
    %v89 = vld [vmem:[%s1 + $0x230] sm:$0x3f]
    %v90 = vld [vmem:[%s1 + $0x238] sm:$0x3f]
    %v91 = vld [vmem:[%s1 + $0x240] sm:$0x3f]
    %v92 = vld [vmem:[%s1 + $0x248] sm:$0x3f]
    %v93 = vld [vmem:[%s1 + $0x250] sm:$0x3f]
    %v94 = vld [vmem:[%s1 + $0x258] sm:$0x3f]
    %v95 = vld [vmem:[%s1 + $0x260] sm:$0x3f]
    %v96 = vld [vmem:[%s1 + $0x268] sm:$0x3f]
    %v97 = vld [vmem:[%s1 + $0x270] sm:$0x3f]
    %v98 = vld [vmem:[%s1 + $0x278] sm:$0x3f]
    %v99 = vld [vmem:[%s1 + $0x280] sm:$0x3f]
    %v100 = vld [vmem:[%s1 + $0x288] sm:$0x3f]
    %v101 = vld [vmem:[%s1 + $0x290] sm:$0x3f]
    %v102 = vld [vmem:[%s1 + $0x298] sm:$0x3f]
    %v103 = vld [vmem:[%s1 + $0x2a0] sm:$0x3f]
    %v104 = vld [vmem:[%s1 + $0x2a8] sm:$0x3f]
    %v105 = vld [vmem:[%s1 + $0x2b0] sm:$0x3f]
    %v106 = vld [vmem:[%s1 + $0x2b8] sm:$0x3f]
    %v107 = vld [vmem:[%s1 + $0x2c0] sm:$0x3f]
    %v108 = vld [vmem:[%s1 + $0x2c8] sm:$0x3f]
    %v109 = vld [vmem:[%s1 + $0x2d0] sm:$0x3f]
    %v110 = vld [vmem:[%s1 + $0x2d8] sm:$0x3f]
    %v111 = vld [vmem:[%s1 + $0x2e0] sm:$0x3f]
    %v112 = vld [vmem:[%s1 + $0x2e8] sm:$0x3f]
    %v113 = vld [vmem:[%s1 + $0x2f0] sm:$0x3f]
    %v114 = vld [vmem:[%s1 + $0x2f8] sm:$0x3f]
    %v115 = vld [vmem:[%s1 + $0x300] sm:$0x3f]
    %v116 = vld [vmem:[%s1 + $0x308] sm:$0x3f]
    %v117 = vld [vmem:[%s1 + $0x310] sm:$0x3f]
    %v118 = vld [vmem:[%s1 + $0x318] sm:$0x3f]
    %v119 = vld [vmem:[%s1 + $0x320] sm:$0x3f]
    %v120 = vld [vmem:[%s1 + $0x328] sm:$0x3f]
    %v121 = vld [vmem:[%s1 + $0x330] sm:$0x3f]
    %v122 = vld [vmem:[%s1 + $0x338] sm:$0x3f]
    %v123 = vld [vmem:[%s1 + $0x340] sm:$0x3f]
    %v124 = vld [vmem:[%s1 + $0x348] sm:$0x3f]
    %v125 = vld [vmem:[%s1 + $0x350] sm:$0x3f]
    %v126 = vld [vmem:[%s1 + $0x358] sm:$0x3f]
    %v127 = vld [vmem:[%s1 + $0x360] sm:$0x3f]
    %v128 = vld [vmem:[%s1 + $0x368] sm:$0x3f]
    %v129 = vld [vmem:[%s1 + $0x370] sm:$0x3f]
    %v130 = vld [vmem:[%s1 + $0x378] sm:$0x3f]
    %v131 = vld [vmem:[%s1 + $0x380] sm:$0x3f]
    %v132 = vld [vmem:[%s1 + $0x388] sm:$0x3f]
    %v133 = vld [vmem:[%s1 + $0x390] sm:$0x3f]
    %v134 = vld [vmem:[%s1 + $0x398] sm:$0x3f]
    %v135 = vld [vmem:[%s1 + $0x3a0] sm:$0x3f]
    %v136 = vld [vmem:[%s1 + $0x3a8] sm:$0x3f]
    %v137 = vld [vmem:[%s1 + $0x3b0] sm:$0x3f]
    %v138 = vld [vmem:[%s1 + $0x3b8] sm:$0x3f]
    %v139 = vld [vmem:[%s1 + $0x3c0] sm:$0x3f]
    %v140 = vld [vmem:[%s1 + $0x3c8] sm:$0x3f]
    %v141 = vld [vmem:[%s1 + $0x3d0] sm:$0x3f]
    %v142 = vld [vmem:[%s1 + $0x3d8] sm:$0x3f]
    %v143 = vld [vmem:[%s1 + $0x3e0] sm:$0x3f]
    %v144 = vld [vmem:[%s1 + $0x3e8] sm:$0x3f]
    %v145 = vld [vmem:[%s1 + $0x3f0] sm:$0x3f]
    %v146 = vld [vmem:[%s1 + $0x3f8] sm:$0x3f]
    %v147 = vld [vmem:[%s2] sm:$0xff]
    %v148 = vld [vmem:[%s2 + $0x8] sm:$0xff]
    %v149 = vld [vmem:[%s2 + $0x10] sm:$0xff]
    %v150 = vld [vmem:[%s2 + $0x18] sm:$0xff]
    %v151 = vld [vmem:[%s2 + $0x20] sm:$0xff]
    %v152 = vld [vmem:[%s2 + $0x28] sm:$0xff]
    %v153 = vld [vmem:[%s2 + $0x30] sm:$0xff]
    %v154 = vld [vmem:[%s2 + $0x38] sm:$0xff]
    %v155 = vld [vmem:[%s2 + $0x40] sm:$0xff]
    %v156 = vld [vmem:[%s2 + $0x48] sm:$0xff]
    %v157 = vld [vmem:[%s2 + $0x50] sm:$0xff]
    %v158 = vld [vmem:[%s2 + $0x58] sm:$0xff]
    %v159 = vld [vmem:[%s2 + $0x60] sm:$0xff]
    %v160 = vld [vmem:[%s2 + $0x68] sm:$0xff]
    %v161 = vld [vmem:[%s2 + $0x70] sm:$0xff]
    %v162 = vld [vmem:[%s2 + $0x78] sm:$0xff]
    %v163 = vld [vmem:[%s3] sm:$0xff]
    %v164 = vld [vmem:[%s3 + $0x8] sm:$0xff]
    %v165 = vld [vmem:[%s3 + $0x10] sm:$0xff]
    %v166 = vld [vmem:[%s3 + $0x18] sm:$0xff]
    %v167 = vld [vmem:[%s3 + $0x20] sm:$0xff]
    %v168 = vld [vmem:[%s3 + $0x28] sm:$0xff]
    %v169 = vld [vmem:[%s3 + $0x30] sm:$0xff]
    %v170 = vld [vmem:[%s3 + $0x38] sm:$0xff]
    %v171 = vld [vmem:[%s3 + $0x40] sm:$0xff]
    %v172 = vld [vmem:[%s3 + $0x48] sm:$0xff]
    %v173 = vld [vmem:[%s3 + $0x50] sm:$0xff]
    %v174 = vld [vmem:[%s3 + $0x58] sm:$0xff]
    %v175 = vld [vmem:[%s3 + $0x60] sm:$0xff]
    %v176 = vld [vmem:[%s3 + $0x68] sm:$0xff]
    %v177 = vld [vmem:[%s3 + $0x70] sm:$0xff]
    %v178 = vld [vmem:[%s3 + $0x78] sm:$0xff]
    %vm179 = vcmask 46080
    %v180 = vsel %vm179, %v19, 0.0
    %v181 = vrot.slane %v180, 4
    %v182 = vadd.f32 %v180, %v181
    %v183 = vrot.slane %v182, 2
    %v184 = vadd.f32 %v182, %v183
    %v185 = vrot.slane %v184, 1
    %v186 = vadd.f32 %v184, %v185
    %v187 = vsel %vm179, %v20, 0.0
    %v188 = vrot.slane %v187, 4
    %v189 = vadd.f32 %v187, %v188
    %v190 = vrot.slane %v189, 2
    %v191 = vadd.f32 %v189, %v190
    %v192 = vrot.slane %v191, 1
    %v193 = vadd.f32 %v191, %v192
    %v194 = vsel %vm179, %v21, 0.0
    %v195 = vrot.slane %v194, 4
    %v196 = vadd.f32 %v194, %v195
    %v197 = vrot.slane %v196, 2
    %v198 = vadd.f32 %v196, %v197
    %v199 = vrot.slane %v198, 1
    %v200 = vadd.f32 %v198, %v199
    %v201 = vsel %vm179, %v22, 0.0
    %v202 = vrot.slane %v201, 4
    %v203 = vadd.f32 %v201, %v202
    %v204 = vrot.slane %v203, 2
    %v205 = vadd.f32 %v203, %v204
    %v206 = vrot.slane %v205, 1
    %v207 = vadd.f32 %v205, %v206
    %v208 = vsel %vm179, %v23, 0.0
    %v209 = vrot.slane %v208, 4
    %v210 = vadd.f32 %v208, %v209
    %v211 = vrot.slane %v210, 2
    %v212 = vadd.f32 %v210, %v211
    %v213 = vrot.slane %v212, 1
    %v214 = vadd.f32 %v212, %v213
    %v215 = vsel %vm179, %v24, 0.0
    %v216 = vrot.slane %v215, 4
    %v217 = vadd.f32 %v215, %v216
    %v218 = vrot.slane %v217, 2
    %v219 = vadd.f32 %v217, %v218
    %v220 = vrot.slane %v219, 1
    %v221 = vadd.f32 %v219, %v220
    %v222 = vsel %vm179, %v25, 0.0
    %v223 = vrot.slane %v222, 4
    %v224 = vadd.f32 %v222, %v223
    %v225 = vrot.slane %v224, 2
    %v226 = vadd.f32 %v224, %v225
    %v227 = vrot.slane %v226, 1
    %v228 = vadd.f32 %v226, %v227
    %v229 = vsel %vm179, %v26, 0.0
    %v230 = vrot.slane %v229, 4
    %v231 = vadd.f32 %v229, %v230
    %v232 = vrot.slane %v231, 2
    %v233 = vadd.f32 %v231, %v232
    %v234 = vrot.slane %v233, 1
    %v235 = vadd.f32 %v233, %v234
    %v236 = vsel %vm179, %v27, 0.0
    %v237 = vrot.slane %v236, 4
    %v238 = vadd.f32 %v236, %v237
    %v239 = vrot.slane %v238, 2
    %v240 = vadd.f32 %v238, %v239
    %v241 = vrot.slane %v240, 1
    %v242 = vadd.f32 %v240, %v241
    %v243 = vsel %vm179, %v28, 0.0
    %v244 = vrot.slane %v243, 4
    %v245 = vadd.f32 %v243, %v244
    %v246 = vrot.slane %v245, 2
    %v247 = vadd.f32 %v245, %v246
    %v248 = vrot.slane %v247, 1
    %v249 = vadd.f32 %v247, %v248
    %v250 = vsel %vm179, %v29, 0.0
    %v251 = vrot.slane %v250, 4
    %v252 = vadd.f32 %v250, %v251
    %v253 = vrot.slane %v252, 2
    %v254 = vadd.f32 %v252, %v253
    %v255 = vrot.slane %v254, 1
    %v256 = vadd.f32 %v254, %v255
    %v257 = vsel %vm179, %v30, 0.0
    %v258 = vrot.slane %v257, 4
    %v259 = vadd.f32 %v257, %v258
    %v260 = vrot.slane %v259, 2
    %v261 = vadd.f32 %v259, %v260
    %v262 = vrot.slane %v261, 1
    %v263 = vadd.f32 %v261, %v262
    %v264 = vsel %vm179, %v31, 0.0
    %v265 = vrot.slane %v264, 4
    %v266 = vadd.f32 %v264, %v265
    %v267 = vrot.slane %v266, 2
    %v268 = vadd.f32 %v266, %v267
    %v269 = vrot.slane %v268, 1
    %v270 = vadd.f32 %v268, %v269
    %v271 = vsel %vm179, %v32, 0.0
    %v272 = vrot.slane %v271, 4
    %v273 = vadd.f32 %v271, %v272
    %v274 = vrot.slane %v273, 2
    %v275 = vadd.f32 %v273, %v274
    %v276 = vrot.slane %v275, 1
    %v277 = vadd.f32 %v275, %v276
    %v278 = vsel %vm179, %v33, 0.0
    %v279 = vrot.slane %v278, 4
    %v280 = vadd.f32 %v278, %v279
    %v281 = vrot.slane %v280, 2
    %v282 = vadd.f32 %v280, %v281
    %v283 = vrot.slane %v282, 1
    %v284 = vadd.f32 %v282, %v283
    %v285 = vsel %vm179, %v34, 0.0
    %v286 = vrot.slane %v285, 4
    %v287 = vadd.f32 %v285, %v286
    %v288 = vrot.slane %v287, 2
    %v289 = vadd.f32 %v287, %v288
    %v290 = vrot.slane %v289, 1
    %v291 = vadd.f32 %v289, %v290
    %v292 = vsel %vm179, %v35, 0.0
    %v293 = vrot.slane %v292, 4
    %v294 = vadd.f32 %v292, %v293
    %v295 = vrot.slane %v294, 2
    %v296 = vadd.f32 %v294, %v295
    %v297 = vrot.slane %v296, 1
    %v298 = vadd.f32 %v296, %v297
    %v299 = vsel %vm179, %v36, 0.0
    %v300 = vrot.slane %v299, 4
    %v301 = vadd.f32 %v299, %v300
    %v302 = vrot.slane %v301, 2
    %v303 = vadd.f32 %v301, %v302
    %v304 = vrot.slane %v303, 1
    %v305 = vadd.f32 %v303, %v304
    %v306 = vsel %vm179, %v37, 0.0
    %v307 = vrot.slane %v306, 4
    %v308 = vadd.f32 %v306, %v307
    %v309 = vrot.slane %v308, 2
    %v310 = vadd.f32 %v308, %v309
    %v311 = vrot.slane %v310, 1
    %v312 = vadd.f32 %v310, %v311
    %v313 = vsel %vm179, %v38, 0.0
    %v314 = vrot.slane %v313, 4
    %v315 = vadd.f32 %v313, %v314
    %v316 = vrot.slane %v315, 2
    %v317 = vadd.f32 %v315, %v316
    %v318 = vrot.slane %v317, 1
    %v319 = vadd.f32 %v317, %v318
    %v320 = vsel %vm179, %v39, 0.0
    %v321 = vrot.slane %v320, 4
    %v322 = vadd.f32 %v320, %v321
    %v323 = vrot.slane %v322, 2
    %v324 = vadd.f32 %v322, %v323
    %v325 = vrot.slane %v324, 1
    %v326 = vadd.f32 %v324, %v325
    %v327 = vsel %vm179, %v40, 0.0
    %v328 = vrot.slane %v327, 4
    %v329 = vadd.f32 %v327, %v328
    %v330 = vrot.slane %v329, 2
    %v331 = vadd.f32 %v329, %v330
    %v332 = vrot.slane %v331, 1
    %v333 = vadd.f32 %v331, %v332
    %v334 = vsel %vm179, %v41, 0.0
    %v335 = vrot.slane %v334, 4
    %v336 = vadd.f32 %v334, %v335
    %v337 = vrot.slane %v336, 2
    %v338 = vadd.f32 %v336, %v337
    %v339 = vrot.slane %v338, 1
    %v340 = vadd.f32 %v338, %v339
    %v341 = vsel %vm179, %v42, 0.0
    %v342 = vrot.slane %v341, 4
    %v343 = vadd.f32 %v341, %v342
    %v344 = vrot.slane %v343, 2
    %v345 = vadd.f32 %v343, %v344
    %v346 = vrot.slane %v345, 1
    %v347 = vadd.f32 %v345, %v346
    %v348 = vsel %vm179, %v43, 0.0
    %v349 = vrot.slane %v348, 4
    %v350 = vadd.f32 %v348, %v349
    %v351 = vrot.slane %v350, 2
    %v352 = vadd.f32 %v350, %v351
    %v353 = vrot.slane %v352, 1
    %v354 = vadd.f32 %v352, %v353
    %v355 = vsel %vm179, %v44, 0.0
    %v356 = vrot.slane %v355, 4
    %v357 = vadd.f32 %v355, %v356
    %v358 = vrot.slane %v357, 2
    %v359 = vadd.f32 %v357, %v358
    %v360 = vrot.slane %v359, 1
    %v361 = vadd.f32 %v359, %v360
    %v362 = vsel %vm179, %v45, 0.0
    %v363 = vrot.slane %v362, 4
    %v364 = vadd.f32 %v362, %v363
    %v365 = vrot.slane %v364, 2
    %v366 = vadd.f32 %v364, %v365
    %v367 = vrot.slane %v366, 1
    %v368 = vadd.f32 %v366, %v367
    %v369 = vsel %vm179, %v46, 0.0
    %v370 = vrot.slane %v369, 4
    %v371 = vadd.f32 %v369, %v370
    %v372 = vrot.slane %v371, 2
    %v373 = vadd.f32 %v371, %v372
    %v374 = vrot.slane %v373, 1
    %v375 = vadd.f32 %v373, %v374
    %v376 = vsel %vm179, %v47, 0.0
    %v377 = vrot.slane %v376, 4
    %v378 = vadd.f32 %v376, %v377
    %v379 = vrot.slane %v378, 2
    %v380 = vadd.f32 %v378, %v379
    %v381 = vrot.slane %v380, 1
    %v382 = vadd.f32 %v380, %v381
    %v383 = vsel %vm179, %v48, 0.0
    %v384 = vrot.slane %v383, 4
    %v385 = vadd.f32 %v383, %v384
    %v386 = vrot.slane %v385, 2
    %v387 = vadd.f32 %v385, %v386
    %v388 = vrot.slane %v387, 1
    %v389 = vadd.f32 %v387, %v388
    %v390 = vsel %vm179, %v49, 0.0
    %v391 = vrot.slane %v390, 4
    %v392 = vadd.f32 %v390, %v391
    %v393 = vrot.slane %v392, 2
    %v394 = vadd.f32 %v392, %v393
    %v395 = vrot.slane %v394, 1
    %v396 = vadd.f32 %v394, %v395
    %v397 = vsel %vm179, %v50, 0.0
    %v398 = vrot.slane %v397, 4
    %v399 = vadd.f32 %v397, %v398
    %v400 = vrot.slane %v399, 2
    %v401 = vadd.f32 %v399, %v400
    %v402 = vrot.slane %v401, 1
    %v403 = vadd.f32 %v401, %v402
    %v404 = vsel %vm179, %v51, 0.0
    %v405 = vrot.slane %v404, 4
    %v406 = vadd.f32 %v404, %v405
    %v407 = vrot.slane %v406, 2
    %v408 = vadd.f32 %v406, %v407
    %v409 = vrot.slane %v408, 1
    %v410 = vadd.f32 %v408, %v409
    %v411 = vsel %vm179, %v52, 0.0
    %v412 = vrot.slane %v411, 4
    %v413 = vadd.f32 %v411, %v412
    %v414 = vrot.slane %v413, 2
    %v415 = vadd.f32 %v413, %v414
    %v416 = vrot.slane %v415, 1
    %v417 = vadd.f32 %v415, %v416
    %v418 = vsel %vm179, %v53, 0.0
    %v419 = vrot.slane %v418, 4
    %v420 = vadd.f32 %v418, %v419
    %v421 = vrot.slane %v420, 2
    %v422 = vadd.f32 %v420, %v421
    %v423 = vrot.slane %v422, 1
    %v424 = vadd.f32 %v422, %v423
    %v425 = vsel %vm179, %v54, 0.0
    %v426 = vrot.slane %v425, 4
    %v427 = vadd.f32 %v425, %v426
    %v428 = vrot.slane %v427, 2
    %v429 = vadd.f32 %v427, %v428
    %v430 = vrot.slane %v429, 1
    %v431 = vadd.f32 %v429, %v430
    %v432 = vsel %vm179, %v55, 0.0
    %v433 = vrot.slane %v432, 4
    %v434 = vadd.f32 %v432, %v433
    %v435 = vrot.slane %v434, 2
    %v436 = vadd.f32 %v434, %v435
    %v437 = vrot.slane %v436, 1
    %v438 = vadd.f32 %v436, %v437
    %v439 = vsel %vm179, %v56, 0.0
    %v440 = vrot.slane %v439, 4
    %v441 = vadd.f32 %v439, %v440
    %v442 = vrot.slane %v441, 2
    %v443 = vadd.f32 %v441, %v442
    %v444 = vrot.slane %v443, 1
    %v445 = vadd.f32 %v443, %v444
    %v446 = vsel %vm179, %v57, 0.0
    %v447 = vrot.slane %v446, 4
    %v448 = vadd.f32 %v446, %v447
    %v449 = vrot.slane %v448, 2
    %v450 = vadd.f32 %v448, %v449
    %v451 = vrot.slane %v450, 1
    %v452 = vadd.f32 %v450, %v451
    %v453 = vsel %vm179, %v58, 0.0
    %v454 = vrot.slane %v453, 4
    %v455 = vadd.f32 %v453, %v454
    %v456 = vrot.slane %v455, 2
    %v457 = vadd.f32 %v455, %v456
    %v458 = vrot.slane %v457, 1
    %v459 = vadd.f32 %v457, %v458
    %v460 = vsel %vm179, %v59, 0.0
    %v461 = vrot.slane %v460, 4
    %v462 = vadd.f32 %v460, %v461
    %v463 = vrot.slane %v462, 2
    %v464 = vadd.f32 %v462, %v463
    %v465 = vrot.slane %v464, 1
    %v466 = vadd.f32 %v464, %v465
    %v467 = vsel %vm179, %v60, 0.0
    %v468 = vrot.slane %v467, 4
    %v469 = vadd.f32 %v467, %v468
    %v470 = vrot.slane %v469, 2
    %v471 = vadd.f32 %v469, %v470
    %v472 = vrot.slane %v471, 1
    %v473 = vadd.f32 %v471, %v472
    %v474 = vsel %vm179, %v61, 0.0
    %v475 = vrot.slane %v474, 4
    %v476 = vadd.f32 %v474, %v475
    %v477 = vrot.slane %v476, 2
    %v478 = vadd.f32 %v476, %v477
    %v479 = vrot.slane %v478, 1
    %v480 = vadd.f32 %v478, %v479
    %v481 = vsel %vm179, %v62, 0.0
    %v482 = vrot.slane %v481, 4
    %v483 = vadd.f32 %v481, %v482
    %v484 = vrot.slane %v483, 2
    %v485 = vadd.f32 %v483, %v484
    %v486 = vrot.slane %v485, 1
    %v487 = vadd.f32 %v485, %v486
    %v488 = vsel %vm179, %v63, 0.0
    %v489 = vrot.slane %v488, 4
    %v490 = vadd.f32 %v488, %v489
    %v491 = vrot.slane %v490, 2
    %v492 = vadd.f32 %v490, %v491
    %v493 = vrot.slane %v492, 1
    %v494 = vadd.f32 %v492, %v493
    %v495 = vsel %vm179, %v64, 0.0
    %v496 = vrot.slane %v495, 4
    %v497 = vadd.f32 %v495, %v496
    %v498 = vrot.slane %v497, 2
    %v499 = vadd.f32 %v497, %v498
    %v500 = vrot.slane %v499, 1
    %v501 = vadd.f32 %v499, %v500
    %v502 = vsel %vm179, %v65, 0.0
    %v503 = vrot.slane %v502, 4
    %v504 = vadd.f32 %v502, %v503
    %v505 = vrot.slane %v504, 2
    %v506 = vadd.f32 %v504, %v505
    %v507 = vrot.slane %v506, 1
    %v508 = vadd.f32 %v506, %v507
    %v509 = vsel %vm179, %v66, 0.0
    %v510 = vrot.slane %v509, 4
    %v511 = vadd.f32 %v509, %v510
    %v512 = vrot.slane %v511, 2
    %v513 = vadd.f32 %v511, %v512
    %v514 = vrot.slane %v513, 1
    %v515 = vadd.f32 %v513, %v514
    %v516 = vsel %vm179, %v67, 0.0
    %v517 = vrot.slane %v516, 4
    %v518 = vadd.f32 %v516, %v517
    %v519 = vrot.slane %v518, 2
    %v520 = vadd.f32 %v518, %v519
    %v521 = vrot.slane %v520, 1
    %v522 = vadd.f32 %v520, %v521
    %v523 = vsel %vm179, %v68, 0.0
    %v524 = vrot.slane %v523, 4
    %v525 = vadd.f32 %v523, %v524
    %v526 = vrot.slane %v525, 2
    %v527 = vadd.f32 %v525, %v526
    %v528 = vrot.slane %v527, 1
    %v529 = vadd.f32 %v527, %v528
    %v530 = vsel %vm179, %v69, 0.0
    %v531 = vrot.slane %v530, 4
    %v532 = vadd.f32 %v530, %v531
    %v533 = vrot.slane %v532, 2
    %v534 = vadd.f32 %v532, %v533
    %v535 = vrot.slane %v534, 1
    %v536 = vadd.f32 %v534, %v535
    %v537 = vsel %vm179, %v70, 0.0
    %v538 = vrot.slane %v537, 4
    %v539 = vadd.f32 %v537, %v538
    %v540 = vrot.slane %v539, 2
    %v541 = vadd.f32 %v539, %v540
    %v542 = vrot.slane %v541, 1
    %v543 = vadd.f32 %v541, %v542
    %v544 = vsel %vm179, %v71, 0.0
    %v545 = vrot.slane %v544, 4
    %v546 = vadd.f32 %v544, %v545
    %v547 = vrot.slane %v546, 2
    %v548 = vadd.f32 %v546, %v547
    %v549 = vrot.slane %v548, 1
    %v550 = vadd.f32 %v548, %v549
    %v551 = vsel %vm179, %v72, 0.0
    %v552 = vrot.slane %v551, 4
    %v553 = vadd.f32 %v551, %v552
    %v554 = vrot.slane %v553, 2
    %v555 = vadd.f32 %v553, %v554
    %v556 = vrot.slane %v555, 1
    %v557 = vadd.f32 %v555, %v556
    %v558 = vsel %vm179, %v73, 0.0
    %v559 = vrot.slane %v558, 4
    %v560 = vadd.f32 %v558, %v559
    %v561 = vrot.slane %v560, 2
    %v562 = vadd.f32 %v560, %v561
    %v563 = vrot.slane %v562, 1
    %v564 = vadd.f32 %v562, %v563
    %v565 = vsel %vm179, %v74, 0.0
    %v566 = vrot.slane %v565, 4
    %v567 = vadd.f32 %v565, %v566
    %v568 = vrot.slane %v567, 2
    %v569 = vadd.f32 %v567, %v568
    %v570 = vrot.slane %v569, 1
    %v571 = vadd.f32 %v569, %v570
    %v572 = vsel %vm179, %v75, 0.0
    %v573 = vrot.slane %v572, 4
    %v574 = vadd.f32 %v572, %v573
    %v575 = vrot.slane %v574, 2
    %v576 = vadd.f32 %v574, %v575
    %v577 = vrot.slane %v576, 1
    %v578 = vadd.f32 %v576, %v577
    %v579 = vsel %vm179, %v76, 0.0
    %v580 = vrot.slane %v579, 4
    %v581 = vadd.f32 %v579, %v580
    %v582 = vrot.slane %v581, 2
    %v583 = vadd.f32 %v581, %v582
    %v584 = vrot.slane %v583, 1
    %v585 = vadd.f32 %v583, %v584
    %v586 = vsel %vm179, %v77, 0.0
    %v587 = vrot.slane %v586, 4
    %v588 = vadd.f32 %v586, %v587
    %v589 = vrot.slane %v588, 2
    %v590 = vadd.f32 %v588, %v589
    %v591 = vrot.slane %v590, 1
    %v592 = vadd.f32 %v590, %v591
    %v593 = vsel %vm179, %v78, 0.0
    %v594 = vrot.slane %v593, 4
    %v595 = vadd.f32 %v593, %v594
    %v596 = vrot.slane %v595, 2
    %v597 = vadd.f32 %v595, %v596
    %v598 = vrot.slane %v597, 1
    %v599 = vadd.f32 %v597, %v598
    %v600 = vsel %vm179, %v79, 0.0
    %v601 = vrot.slane %v600, 4
    %v602 = vadd.f32 %v600, %v601
    %v603 = vrot.slane %v602, 2
    %v604 = vadd.f32 %v602, %v603
    %v605 = vrot.slane %v604, 1
    %v606 = vadd.f32 %v604, %v605
    %v607 = vsel %vm179, %v80, 0.0
    %v608 = vrot.slane %v607, 4
    %v609 = vadd.f32 %v607, %v608
    %v610 = vrot.slane %v609, 2
    %v611 = vadd.f32 %v609, %v610
    %v612 = vrot.slane %v611, 1
    %v613 = vadd.f32 %v611, %v612
    %v614 = vsel %vm179, %v81, 0.0
    %v615 = vrot.slane %v614, 4
    %v616 = vadd.f32 %v614, %v615
    %v617 = vrot.slane %v616, 2
    %v618 = vadd.f32 %v616, %v617
    %v619 = vrot.slane %v618, 1
    %v620 = vadd.f32 %v618, %v619
    %v621 = vsel %vm179, %v82, 0.0
    %v622 = vrot.slane %v621, 4
    %v623 = vadd.f32 %v621, %v622
    %v624 = vrot.slane %v623, 2
    %v625 = vadd.f32 %v623, %v624
    %v626 = vrot.slane %v625, 1
    %v627 = vadd.f32 %v625, %v626
    %v628 = vsel %vm179, %v83, 0.0
    %v629 = vrot.slane %v628, 4
    %v630 = vadd.f32 %v628, %v629
    %v631 = vrot.slane %v630, 2
    %v632 = vadd.f32 %v630, %v631
    %v633 = vrot.slane %v632, 1
    %v634 = vadd.f32 %v632, %v633
    %v635 = vsel %vm179, %v84, 0.0
    %v636 = vrot.slane %v635, 4
    %v637 = vadd.f32 %v635, %v636
    %v638 = vrot.slane %v637, 2
    %v639 = vadd.f32 %v637, %v638
    %v640 = vrot.slane %v639, 1
    %v641 = vadd.f32 %v639, %v640
    %v642 = vsel %vm179, %v85, 0.0
    %v643 = vrot.slane %v642, 4
    %v644 = vadd.f32 %v642, %v643
    %v645 = vrot.slane %v644, 2
    %v646 = vadd.f32 %v644, %v645
    %v647 = vrot.slane %v646, 1
    %v648 = vadd.f32 %v646, %v647
    %v649 = vsel %vm179, %v86, 0.0
    %v650 = vrot.slane %v649, 4
    %v651 = vadd.f32 %v649, %v650
    %v652 = vrot.slane %v651, 2
    %v653 = vadd.f32 %v651, %v652
    %v654 = vrot.slane %v653, 1
    %v655 = vadd.f32 %v653, %v654
    %v656 = vsel %vm179, %v87, 0.0
    %v657 = vrot.slane %v656, 4
    %v658 = vadd.f32 %v656, %v657
    %v659 = vrot.slane %v658, 2
    %v660 = vadd.f32 %v658, %v659
    %v661 = vrot.slane %v660, 1
    %v662 = vadd.f32 %v660, %v661
    %v663 = vsel %vm179, %v88, 0.0
    %v664 = vrot.slane %v663, 4
    %v665 = vadd.f32 %v663, %v664
    %v666 = vrot.slane %v665, 2
    %v667 = vadd.f32 %v665, %v666
    %v668 = vrot.slane %v667, 1
    %v669 = vadd.f32 %v667, %v668
    %v670 = vsel %vm179, %v89, 0.0
    %v671 = vrot.slane %v670, 4
    %v672 = vadd.f32 %v670, %v671
    %v673 = vrot.slane %v672, 2
    %v674 = vadd.f32 %v672, %v673
    %v675 = vrot.slane %v674, 1
    %v676 = vadd.f32 %v674, %v675
    %v677 = vsel %vm179, %v90, 0.0
    %v678 = vrot.slane %v677, 4
    %v679 = vadd.f32 %v677, %v678
    %v680 = vrot.slane %v679, 2
    %v681 = vadd.f32 %v679, %v680
    %v682 = vrot.slane %v681, 1
    %v683 = vadd.f32 %v681, %v682
    %v684 = vsel %vm179, %v91, 0.0
    %v685 = vrot.slane %v684, 4
    %v686 = vadd.f32 %v684, %v685
    %v687 = vrot.slane %v686, 2
    %v688 = vadd.f32 %v686, %v687
    %v689 = vrot.slane %v688, 1
    %v690 = vadd.f32 %v688, %v689
    %v691 = vsel %vm179, %v92, 0.0
    %v692 = vrot.slane %v691, 4
    %v693 = vadd.f32 %v691, %v692
    %v694 = vrot.slane %v693, 2
    %v695 = vadd.f32 %v693, %v694
    %v696 = vrot.slane %v695, 1
    %v697 = vadd.f32 %v695, %v696
    %v698 = vsel %vm179, %v93, 0.0
    %v699 = vrot.slane %v698, 4
    %v700 = vadd.f32 %v698, %v699
    %v701 = vrot.slane %v700, 2
    %v702 = vadd.f32 %v700, %v701
    %v703 = vrot.slane %v702, 1
    %v704 = vadd.f32 %v702, %v703
    %v705 = vsel %vm179, %v94, 0.0
    %v706 = vrot.slane %v705, 4
    %v707 = vadd.f32 %v705, %v706
    %v708 = vrot.slane %v707, 2
    %v709 = vadd.f32 %v707, %v708
    %v710 = vrot.slane %v709, 1
    %v711 = vadd.f32 %v709, %v710
    %v712 = vsel %vm179, %v95, 0.0
    %v713 = vrot.slane %v712, 4
    %v714 = vadd.f32 %v712, %v713
    %v715 = vrot.slane %v714, 2
    %v716 = vadd.f32 %v714, %v715
    %v717 = vrot.slane %v716, 1
    %v718 = vadd.f32 %v716, %v717
    %v719 = vsel %vm179, %v96, 0.0
    %v720 = vrot.slane %v719, 4
    %v721 = vadd.f32 %v719, %v720
    %v722 = vrot.slane %v721, 2
    %v723 = vadd.f32 %v721, %v722
    %v724 = vrot.slane %v723, 1
    %v725 = vadd.f32 %v723, %v724
    %v726 = vsel %vm179, %v97, 0.0
    %v727 = vrot.slane %v726, 4
    %v728 = vadd.f32 %v726, %v727
    %v729 = vrot.slane %v728, 2
    %v730 = vadd.f32 %v728, %v729
    %v731 = vrot.slane %v730, 1
    %v732 = vadd.f32 %v730, %v731
    %v733 = vsel %vm179, %v98, 0.0
    %v734 = vrot.slane %v733, 4
    %v735 = vadd.f32 %v733, %v734
    %v736 = vrot.slane %v735, 2
    %v737 = vadd.f32 %v735, %v736
    %v738 = vrot.slane %v737, 1
    %v739 = vadd.f32 %v737, %v738
    %v740 = vsel %vm179, %v99, 0.0
    %v741 = vrot.slane %v740, 4
    %v742 = vadd.f32 %v740, %v741
    %v743 = vrot.slane %v742, 2
    %v744 = vadd.f32 %v742, %v743
    %v745 = vrot.slane %v744, 1
    %v746 = vadd.f32 %v744, %v745
    %v747 = vsel %vm179, %v100, 0.0
    %v748 = vrot.slane %v747, 4
    %v749 = vadd.f32 %v747, %v748
    %v750 = vrot.slane %v749, 2
    %v751 = vadd.f32 %v749, %v750
    %v752 = vrot.slane %v751, 1
    %v753 = vadd.f32 %v751, %v752
    %v754 = vsel %vm179, %v101, 0.0
    %v755 = vrot.slane %v754, 4
    %v756 = vadd.f32 %v754, %v755
    %v757 = vrot.slane %v756, 2
    %v758 = vadd.f32 %v756, %v757
    %v759 = vrot.slane %v758, 1
    %v760 = vadd.f32 %v758, %v759
    %v761 = vsel %vm179, %v102, 0.0
    %v762 = vrot.slane %v761, 4
    %v763 = vadd.f32 %v761, %v762
    %v764 = vrot.slane %v763, 2
    %v765 = vadd.f32 %v763, %v764
    %v766 = vrot.slane %v765, 1
    %v767 = vadd.f32 %v765, %v766
    %v768 = vsel %vm179, %v103, 0.0
    %v769 = vrot.slane %v768, 4
    %v770 = vadd.f32 %v768, %v769
    %v771 = vrot.slane %v770, 2
    %v772 = vadd.f32 %v770, %v771
    %v773 = vrot.slane %v772, 1
    %v774 = vadd.f32 %v772, %v773
    %v775 = vsel %vm179, %v104, 0.0
    %v776 = vrot.slane %v775, 4
    %v777 = vadd.f32 %v775, %v776
    %v778 = vrot.slane %v777, 2
    %v779 = vadd.f32 %v777, %v778
    %v780 = vrot.slane %v779, 1
    %v781 = vadd.f32 %v779, %v780
    %v782 = vsel %vm179, %v105, 0.0
    %v783 = vrot.slane %v782, 4
    %v784 = vadd.f32 %v782, %v783
    %v785 = vrot.slane %v784, 2
    %v786 = vadd.f32 %v784, %v785
    %v787 = vrot.slane %v786, 1
    %v788 = vadd.f32 %v786, %v787
    %v789 = vsel %vm179, %v106, 0.0
    %v790 = vrot.slane %v789, 4
    %v791 = vadd.f32 %v789, %v790
    %v792 = vrot.slane %v791, 2
    %v793 = vadd.f32 %v791, %v792
    %v794 = vrot.slane %v793, 1
    %v795 = vadd.f32 %v793, %v794
    %v796 = vsel %vm179, %v107, 0.0
    %v797 = vrot.slane %v796, 4
    %v798 = vadd.f32 %v796, %v797
    %v799 = vrot.slane %v798, 2
    %v800 = vadd.f32 %v798, %v799
    %v801 = vrot.slane %v800, 1
    %v802 = vadd.f32 %v800, %v801
    %v803 = vsel %vm179, %v108, 0.0
    %v804 = vrot.slane %v803, 4
    %v805 = vadd.f32 %v803, %v804
    %v806 = vrot.slane %v805, 2
    %v807 = vadd.f32 %v805, %v806
    %v808 = vrot.slane %v807, 1
    %v809 = vadd.f32 %v807, %v808
    %v810 = vsel %vm179, %v109, 0.0
    %v811 = vrot.slane %v810, 4
    %v812 = vadd.f32 %v810, %v811
    %v813 = vrot.slane %v812, 2
    %v814 = vadd.f32 %v812, %v813
    %v815 = vrot.slane %v814, 1
    %v816 = vadd.f32 %v814, %v815
    %v817 = vsel %vm179, %v110, 0.0
    %v818 = vrot.slane %v817, 4
    %v819 = vadd.f32 %v817, %v818
    %v820 = vrot.slane %v819, 2
    %v821 = vadd.f32 %v819, %v820
    %v822 = vrot.slane %v821, 1
    %v823 = vadd.f32 %v821, %v822
    %v824 = vsel %vm179, %v111, 0.0
    %v825 = vrot.slane %v824, 4
    %v826 = vadd.f32 %v824, %v825
    %v827 = vrot.slane %v826, 2
    %v828 = vadd.f32 %v826, %v827
    %v829 = vrot.slane %v828, 1
    %v830 = vadd.f32 %v828, %v829
    %v831 = vsel %vm179, %v112, 0.0
    %v832 = vrot.slane %v831, 4
    %v833 = vadd.f32 %v831, %v832
    %v834 = vrot.slane %v833, 2
    %v835 = vadd.f32 %v833, %v834
    %v836 = vrot.slane %v835, 1
    %v837 = vadd.f32 %v835, %v836
    %v838 = vsel %vm179, %v113, 0.0
    %v839 = vrot.slane %v838, 4
    %v840 = vadd.f32 %v838, %v839
    %v841 = vrot.slane %v840, 2
    %v842 = vadd.f32 %v840, %v841
    %v843 = vrot.slane %v842, 1
    %v844 = vadd.f32 %v842, %v843
    %v845 = vsel %vm179, %v114, 0.0
    %v846 = vrot.slane %v845, 4
    %v847 = vadd.f32 %v845, %v846
    %v848 = vrot.slane %v847, 2
    %v849 = vadd.f32 %v847, %v848
    %v850 = vrot.slane %v849, 1
    %v851 = vadd.f32 %v849, %v850
    %v852 = vsel %vm179, %v115, 0.0
    %v853 = vrot.slane %v852, 4
    %v854 = vadd.f32 %v852, %v853
    %v855 = vrot.slane %v854, 2
    %v856 = vadd.f32 %v854, %v855
    %v857 = vrot.slane %v856, 1
    %v858 = vadd.f32 %v856, %v857
    %v859 = vsel %vm179, %v116, 0.0
    %v860 = vrot.slane %v859, 4
    %v861 = vadd.f32 %v859, %v860
    %v862 = vrot.slane %v861, 2
    %v863 = vadd.f32 %v861, %v862
    %v864 = vrot.slane %v863, 1
    %v865 = vadd.f32 %v863, %v864
    %v866 = vsel %vm179, %v117, 0.0
    %v867 = vrot.slane %v866, 4
    %v868 = vadd.f32 %v866, %v867
    %v869 = vrot.slane %v868, 2
    %v870 = vadd.f32 %v868, %v869
    %v871 = vrot.slane %v870, 1
    %v872 = vadd.f32 %v870, %v871
    %v873 = vsel %vm179, %v118, 0.0
    %v874 = vrot.slane %v873, 4
    %v875 = vadd.f32 %v873, %v874
    %v876 = vrot.slane %v875, 2
    %v877 = vadd.f32 %v875, %v876
    %v878 = vrot.slane %v877, 1
    %v879 = vadd.f32 %v877, %v878
    %v880 = vsel %vm179, %v119, 0.0
    %v881 = vrot.slane %v880, 4
    %v882 = vadd.f32 %v880, %v881
    %v883 = vrot.slane %v882, 2
    %v884 = vadd.f32 %v882, %v883
    %v885 = vrot.slane %v884, 1
    %v886 = vadd.f32 %v884, %v885
    %v887 = vsel %vm179, %v120, 0.0
    %v888 = vrot.slane %v887, 4
    %v889 = vadd.f32 %v887, %v888
    %v890 = vrot.slane %v889, 2
    %v891 = vadd.f32 %v889, %v890
    %v892 = vrot.slane %v891, 1
    %v893 = vadd.f32 %v891, %v892
    %v894 = vsel %vm179, %v121, 0.0
    %v895 = vrot.slane %v894, 4
    %v896 = vadd.f32 %v894, %v895
    %v897 = vrot.slane %v896, 2
    %v898 = vadd.f32 %v896, %v897
    %v899 = vrot.slane %v898, 1
    %v900 = vadd.f32 %v898, %v899
    %v901 = vsel %vm179, %v122, 0.0
    %v902 = vrot.slane %v901, 4
    %v903 = vadd.f32 %v901, %v902
    %v904 = vrot.slane %v903, 2
    %v905 = vadd.f32 %v903, %v904
    %v906 = vrot.slane %v905, 1
    %v907 = vadd.f32 %v905, %v906
    %v908 = vsel %vm179, %v123, 0.0
    %v909 = vrot.slane %v908, 4
    %v910 = vadd.f32 %v908, %v909
    %v911 = vrot.slane %v910, 2
    %v912 = vadd.f32 %v910, %v911
    %v913 = vrot.slane %v912, 1
    %v914 = vadd.f32 %v912, %v913
    %v915 = vsel %vm179, %v124, 0.0
    %v916 = vrot.slane %v915, 4
    %v917 = vadd.f32 %v915, %v916
    %v918 = vrot.slane %v917, 2
    %v919 = vadd.f32 %v917, %v918
    %v920 = vrot.slane %v919, 1
    %v921 = vadd.f32 %v919, %v920
    %v922 = vsel %vm179, %v125, 0.0
    %v923 = vrot.slane %v922, 4
    %v924 = vadd.f32 %v922, %v923
    %v925 = vrot.slane %v924, 2
    %v926 = vadd.f32 %v924, %v925
    %v927 = vrot.slane %v926, 1
    %v928 = vadd.f32 %v926, %v927
    %v929 = vsel %vm179, %v126, 0.0
    %v930 = vrot.slane %v929, 4
    %v931 = vadd.f32 %v929, %v930
    %v932 = vrot.slane %v931, 2
    %v933 = vadd.f32 %v931, %v932
    %v934 = vrot.slane %v933, 1
    %v935 = vadd.f32 %v933, %v934
    %v936 = vsel %vm179, %v127, 0.0
    %v937 = vrot.slane %v936, 4
    %v938 = vadd.f32 %v936, %v937
    %v939 = vrot.slane %v938, 2
    %v940 = vadd.f32 %v938, %v939
    %v941 = vrot.slane %v940, 1
    %v942 = vadd.f32 %v940, %v941
    %v943 = vsel %vm179, %v128, 0.0
    %v944 = vrot.slane %v943, 4
    %v945 = vadd.f32 %v943, %v944
    %v946 = vrot.slane %v945, 2
    %v947 = vadd.f32 %v945, %v946
    %v948 = vrot.slane %v947, 1
    %v949 = vadd.f32 %v947, %v948
    %v950 = vsel %vm179, %v129, 0.0
    %v951 = vrot.slane %v950, 4
    %v952 = vadd.f32 %v950, %v951
    %v953 = vrot.slane %v952, 2
    %v954 = vadd.f32 %v952, %v953
    %v955 = vrot.slane %v954, 1
    %v956 = vadd.f32 %v954, %v955
    %v957 = vsel %vm179, %v130, 0.0
    %v958 = vrot.slane %v957, 4
    %v959 = vadd.f32 %v957, %v958
    %v960 = vrot.slane %v959, 2
    %v961 = vadd.f32 %v959, %v960
    %v962 = vrot.slane %v961, 1
    %v963 = vadd.f32 %v961, %v962
    %v964 = vsel %vm179, %v131, 0.0
    %v965 = vrot.slane %v964, 4
    %v966 = vadd.f32 %v964, %v965
    %v967 = vrot.slane %v966, 2
    %v968 = vadd.f32 %v966, %v967
    %v969 = vrot.slane %v968, 1
    %v970 = vadd.f32 %v968, %v969
    %v971 = vsel %vm179, %v132, 0.0
    %v972 = vrot.slane %v971, 4
    %v973 = vadd.f32 %v971, %v972
    %v974 = vrot.slane %v973, 2
    %v975 = vadd.f32 %v973, %v974
    %v976 = vrot.slane %v975, 1
    %v977 = vadd.f32 %v975, %v976
    %v978 = vsel %vm179, %v133, 0.0
    %v979 = vrot.slane %v978, 4
    %v980 = vadd.f32 %v978, %v979
    %v981 = vrot.slane %v980, 2
    %v982 = vadd.f32 %v980, %v981
    %v983 = vrot.slane %v982, 1
    %v984 = vadd.f32 %v982, %v983
    %v985 = vsel %vm179, %v134, 0.0
    %v986 = vrot.slane %v985, 4
    %v987 = vadd.f32 %v985, %v986
    %v988 = vrot.slane %v987, 2
    %v989 = vadd.f32 %v987, %v988
    %v990 = vrot.slane %v989, 1
    %v991 = vadd.f32 %v989, %v990
    %v992 = vsel %vm179, %v135, 0.0
    %v993 = vrot.slane %v992, 4
    %v994 = vadd.f32 %v992, %v993
    %v995 = vrot.slane %v994, 2
    %v996 = vadd.f32 %v994, %v995
    %v997 = vrot.slane %v996, 1
    %v998 = vadd.f32 %v996, %v997
    %v999 = vsel %vm179, %v136, 0.0
    %v1000 = vrot.slane %v999, 4
    %v1001 = vadd.f32 %v999, %v1000
    %v1002 = vrot.slane %v1001, 2
    %v1003 = vadd.f32 %v1001, %v1002
    %v1004 = vrot.slane %v1003, 1
    %v1005 = vadd.f32 %v1003, %v1004
    %v1006 = vsel %vm179, %v137, 0.0
    %v1007 = vrot.slane %v1006, 4
    %v1008 = vadd.f32 %v1006, %v1007
    %v1009 = vrot.slane %v1008, 2
    %v1010 = vadd.f32 %v1008, %v1009
    %v1011 = vrot.slane %v1010, 1
    %v1012 = vadd.f32 %v1010, %v1011
    %v1013 = vsel %vm179, %v138, 0.0
    %v1014 = vrot.slane %v1013, 4
    %v1015 = vadd.f32 %v1013, %v1014
    %v1016 = vrot.slane %v1015, 2
    %v1017 = vadd.f32 %v1015, %v1016
    %v1018 = vrot.slane %v1017, 1
    %v1019 = vadd.f32 %v1017, %v1018
    %v1020 = vsel %vm179, %v139, 0.0
    %v1021 = vrot.slane %v1020, 4
    %v1022 = vadd.f32 %v1020, %v1021
    %v1023 = vrot.slane %v1022, 2
    %v1024 = vadd.f32 %v1022, %v1023
    %v1025 = vrot.slane %v1024, 1
    %v1026 = vadd.f32 %v1024, %v1025
    %v1027 = vsel %vm179, %v140, 0.0
    %v1028 = vrot.slane %v1027, 4
    %v1029 = vadd.f32 %v1027, %v1028
    %v1030 = vrot.slane %v1029, 2
    %v1031 = vadd.f32 %v1029, %v1030
    %v1032 = vrot.slane %v1031, 1
    %v1033 = vadd.f32 %v1031, %v1032
    %v1034 = vsel %vm179, %v141, 0.0
    %v1035 = vrot.slane %v1034, 4
    %v1036 = vadd.f32 %v1034, %v1035
    %v1037 = vrot.slane %v1036, 2
    %v1038 = vadd.f32 %v1036, %v1037
    %v1039 = vrot.slane %v1038, 1
    %v1040 = vadd.f32 %v1038, %v1039
    %v1041 = vsel %vm179, %v142, 0.0
    %v1042 = vrot.slane %v1041, 4
    %v1043 = vadd.f32 %v1041, %v1042
    %v1044 = vrot.slane %v1043, 2
    %v1045 = vadd.f32 %v1043, %v1044
    %v1046 = vrot.slane %v1045, 1
    %v1047 = vadd.f32 %v1045, %v1046
    %v1048 = vsel %vm179, %v143, 0.0
    %v1049 = vrot.slane %v1048, 4
    %v1050 = vadd.f32 %v1048, %v1049
    %v1051 = vrot.slane %v1050, 2
    %v1052 = vadd.f32 %v1050, %v1051
    %v1053 = vrot.slane %v1052, 1
    %v1054 = vadd.f32 %v1052, %v1053
    %v1055 = vsel %vm179, %v144, 0.0
    %v1056 = vrot.slane %v1055, 4
    %v1057 = vadd.f32 %v1055, %v1056
    %v1058 = vrot.slane %v1057, 2
    %v1059 = vadd.f32 %v1057, %v1058
    %v1060 = vrot.slane %v1059, 1
    %v1061 = vadd.f32 %v1059, %v1060
    %v1062 = vsel %vm179, %v145, 0.0
    %v1063 = vrot.slane %v1062, 4
    %v1064 = vadd.f32 %v1062, %v1063
    %v1065 = vrot.slane %v1064, 2
    %v1066 = vadd.f32 %v1064, %v1065
    %v1067 = vrot.slane %v1066, 1
    %v1068 = vadd.f32 %v1066, %v1067
    %v1069 = vsel %vm179, %v146, 0.0
    %v1070 = vrot.slane %v1069, 4
    %v1071 = vadd.f32 %v1069, %v1070
    %v1072 = vrot.slane %v1071, 2
    %v1073 = vadd.f32 %v1071, %v1072
    %v1074 = vrot.slane %v1073, 1
    %v1075 = vadd.f32 %v1073, %v1074
    %v1076 = vlaneseq
    %v1077 = vshrl.u32 %v1076, 7
    %v1078 = vsub.s32 0, %v1077
    %v1079 = vrot.slane %v163, %v1078
    %1081 = vbcast.lane.b32.xlu0 %v1079, 256
    %v1082 = vpop.permute.xlu0 %1081
    %v1083 = vlaneseq
    %v1084 = vshrl.u32 %v1083, 7
    %v1085 = vsub.s32 1, %v1084
    %v1086 = vrot.slane %v163, %v1085
    %1088 = vbcast.lane.b32.xlu0 %v1086, 256
    %v1089 = vpop.permute.xlu0 %1088
    %v1090 = vlaneseq
    %v1091 = vshrl.u32 %v1090, 7
    %v1092 = vsub.s32 2, %v1091
    %v1093 = vrot.slane %v163, %v1092
    %1095 = vbcast.lane.b32.xlu0 %v1093, 256
    %v1096 = vpop.permute.xlu0 %1095
    %v1097 = vlaneseq
    %v1098 = vshrl.u32 %v1097, 7
    %v1099 = vsub.s32 3, %v1098
    %v1100 = vrot.slane %v163, %v1099
    %1102 = vbcast.lane.b32.xlu0 %v1100, 256
    %v1103 = vpop.permute.xlu0 %1102
    %v1104 = vlaneseq
    %v1105 = vshrl.u32 %v1104, 7
    %v1106 = vsub.s32 4, %v1105
    %v1107 = vrot.slane %v163, %v1106
    %1109 = vbcast.lane.b32.xlu0 %v1107, 256
    %v1110 = vpop.permute.xlu0 %1109
    %v1111 = vlaneseq
    %v1112 = vshrl.u32 %v1111, 7
    %v1113 = vsub.s32 5, %v1112
    %v1114 = vrot.slane %v163, %v1113
    %1116 = vbcast.lane.b32.xlu0 %v1114, 256
    %v1117 = vpop.permute.xlu0 %1116
    %v1118 = vlaneseq
    %v1119 = vshrl.u32 %v1118, 7
    %v1120 = vsub.s32 6, %v1119
    %v1121 = vrot.slane %v163, %v1120
    %1123 = vbcast.lane.b32.xlu0 %v1121, 256
    %v1124 = vpop.permute.xlu0 %1123
    %v1125 = vlaneseq
    %v1126 = vshrl.u32 %v1125, 7
    %v1127 = vsub.s32 7, %v1126
    %v1128 = vrot.slane %v163, %v1127
    %1130 = vbcast.lane.b32.xlu0 %v1128, 256
    %v1131 = vpop.permute.xlu0 %1130
    %v1132 = vlaneseq
    %v1133 = vshrl.u32 %v1132, 7
    %v1134 = vsub.s32 0, %v1133
    %v1135 = vrot.slane %v164, %v1134
    %1137 = vbcast.lane.b32.xlu0 %v1135, 256
    %v1138 = vpop.permute.xlu0 %1137
    %v1139 = vlaneseq
    %v1140 = vshrl.u32 %v1139, 7
    %v1141 = vsub.s32 1, %v1140
    %v1142 = vrot.slane %v164, %v1141
    %1144 = vbcast.lane.b32.xlu0 %v1142, 256
    %v1145 = vpop.permute.xlu0 %1144
    %v1146 = vlaneseq
    %v1147 = vshrl.u32 %v1146, 7
    %v1148 = vsub.s32 2, %v1147
    %v1149 = vrot.slane %v164, %v1148
    %1151 = vbcast.lane.b32.xlu0 %v1149, 256
    %v1152 = vpop.permute.xlu0 %1151
    %v1153 = vlaneseq
    %v1154 = vshrl.u32 %v1153, 7
    %v1155 = vsub.s32 3, %v1154
    %v1156 = vrot.slane %v164, %v1155
    %1158 = vbcast.lane.b32.xlu0 %v1156, 256
    %v1159 = vpop.permute.xlu0 %1158
    %v1160 = vlaneseq
    %v1161 = vshrl.u32 %v1160, 7
    %v1162 = vsub.s32 4, %v1161
    %v1163 = vrot.slane %v164, %v1162
    %1165 = vbcast.lane.b32.xlu0 %v1163, 256
    %v1166 = vpop.permute.xlu0 %1165
    %v1167 = vlaneseq
    %v1168 = vshrl.u32 %v1167, 7
    %v1169 = vsub.s32 5, %v1168
    %v1170 = vrot.slane %v164, %v1169
    %1172 = vbcast.lane.b32.xlu0 %v1170, 256
    %v1173 = vpop.permute.xlu0 %1172
    %v1174 = vlaneseq
    %v1175 = vshrl.u32 %v1174, 7
    %v1176 = vsub.s32 6, %v1175
    %v1177 = vrot.slane %v164, %v1176
    %1179 = vbcast.lane.b32.xlu0 %v1177, 256
    %v1180 = vpop.permute.xlu0 %1179
    %v1181 = vlaneseq
    %v1182 = vshrl.u32 %v1181, 7
    %v1183 = vsub.s32 7, %v1182
    %v1184 = vrot.slane %v164, %v1183
    %1186 = vbcast.lane.b32.xlu0 %v1184, 256
    %v1187 = vpop.permute.xlu0 %1186
    %v1188 = vlaneseq
    %v1189 = vshrl.u32 %v1188, 7
    %v1190 = vsub.s32 0, %v1189
    %v1191 = vrot.slane %v165, %v1190
    %1193 = vbcast.lane.b32.xlu0 %v1191, 256
    %v1194 = vpop.permute.xlu0 %1193
    %v1195 = vlaneseq
    %v1196 = vshrl.u32 %v1195, 7
    %v1197 = vsub.s32 1, %v1196
    %v1198 = vrot.slane %v165, %v1197
    %1200 = vbcast.lane.b32.xlu0 %v1198, 256
    %v1201 = vpop.permute.xlu0 %1200
    %v1202 = vlaneseq
    %v1203 = vshrl.u32 %v1202, 7
    %v1204 = vsub.s32 2, %v1203
    %v1205 = vrot.slane %v165, %v1204
    %1207 = vbcast.lane.b32.xlu0 %v1205, 256
    %v1208 = vpop.permute.xlu0 %1207
    %v1209 = vlaneseq
    %v1210 = vshrl.u32 %v1209, 7
    %v1211 = vsub.s32 3, %v1210
    %v1212 = vrot.slane %v165, %v1211
    %1214 = vbcast.lane.b32.xlu0 %v1212, 256
    %v1215 = vpop.permute.xlu0 %1214
    %v1216 = vlaneseq
    %v1217 = vshrl.u32 %v1216, 7
    %v1218 = vsub.s32 4, %v1217
    %v1219 = vrot.slane %v165, %v1218
    %1221 = vbcast.lane.b32.xlu0 %v1219, 256
    %v1222 = vpop.permute.xlu0 %1221
    %v1223 = vlaneseq
    %v1224 = vshrl.u32 %v1223, 7
    %v1225 = vsub.s32 5, %v1224
    %v1226 = vrot.slane %v165, %v1225
    %1228 = vbcast.lane.b32.xlu0 %v1226, 256
    %v1229 = vpop.permute.xlu0 %1228
    %v1230 = vlaneseq
    %v1231 = vshrl.u32 %v1230, 7
    %v1232 = vsub.s32 6, %v1231
    %v1233 = vrot.slane %v165, %v1232
    %1235 = vbcast.lane.b32.xlu0 %v1233, 256
    %v1236 = vpop.permute.xlu0 %1235
    %v1237 = vlaneseq
    %v1238 = vshrl.u32 %v1237, 7
    %v1239 = vsub.s32 7, %v1238
    %v1240 = vrot.slane %v165, %v1239
    %1242 = vbcast.lane.b32.xlu0 %v1240, 256
    %v1243 = vpop.permute.xlu0 %1242
    %v1244 = vlaneseq
    %v1245 = vshrl.u32 %v1244, 7
    %v1246 = vsub.s32 0, %v1245
    %v1247 = vrot.slane %v166, %v1246
    %1249 = vbcast.lane.b32.xlu0 %v1247, 256
    %v1250 = vpop.permute.xlu0 %1249
    %v1251 = vlaneseq
    %v1252 = vshrl.u32 %v1251, 7
    %v1253 = vsub.s32 1, %v1252
    %v1254 = vrot.slane %v166, %v1253
    %1256 = vbcast.lane.b32.xlu0 %v1254, 256
    %v1257 = vpop.permute.xlu0 %1256
    %v1258 = vlaneseq
    %v1259 = vshrl.u32 %v1258, 7
    %v1260 = vsub.s32 2, %v1259
    %v1261 = vrot.slane %v166, %v1260
    %1263 = vbcast.lane.b32.xlu0 %v1261, 256
    %v1264 = vpop.permute.xlu0 %1263
    %v1265 = vlaneseq
    %v1266 = vshrl.u32 %v1265, 7
    %v1267 = vsub.s32 3, %v1266
    %v1268 = vrot.slane %v166, %v1267
    %1270 = vbcast.lane.b32.xlu0 %v1268, 256
    %v1271 = vpop.permute.xlu0 %1270
    %v1272 = vlaneseq
    %v1273 = vshrl.u32 %v1272, 7
    %v1274 = vsub.s32 4, %v1273
    %v1275 = vrot.slane %v166, %v1274
    %1277 = vbcast.lane.b32.xlu0 %v1275, 256
    %v1278 = vpop.permute.xlu0 %1277
    %v1279 = vlaneseq
    %v1280 = vshrl.u32 %v1279, 7
    %v1281 = vsub.s32 5, %v1280
    %v1282 = vrot.slane %v166, %v1281
    %1284 = vbcast.lane.b32.xlu0 %v1282, 256
    %v1285 = vpop.permute.xlu0 %1284
    %v1286 = vlaneseq
    %v1287 = vshrl.u32 %v1286, 7
    %v1288 = vsub.s32 6, %v1287
    %v1289 = vrot.slane %v166, %v1288
    %1291 = vbcast.lane.b32.xlu0 %v1289, 256
    %v1292 = vpop.permute.xlu0 %1291
    %v1293 = vlaneseq
    %v1294 = vshrl.u32 %v1293, 7
    %v1295 = vsub.s32 7, %v1294
    %v1296 = vrot.slane %v166, %v1295
    %1298 = vbcast.lane.b32.xlu0 %v1296, 256
    %v1299 = vpop.permute.xlu0 %1298
    %v1300 = vlaneseq
    %v1301 = vshrl.u32 %v1300, 7
    %v1302 = vsub.s32 0, %v1301
    %v1303 = vrot.slane %v167, %v1302
    %1305 = vbcast.lane.b32.xlu0 %v1303, 256
    %v1306 = vpop.permute.xlu0 %1305
    %v1307 = vlaneseq
    %v1308 = vshrl.u32 %v1307, 7
    %v1309 = vsub.s32 1, %v1308
    %v1310 = vrot.slane %v167, %v1309
    %1312 = vbcast.lane.b32.xlu0 %v1310, 256
    %v1313 = vpop.permute.xlu0 %1312
    %v1314 = vlaneseq
    %v1315 = vshrl.u32 %v1314, 7
    %v1316 = vsub.s32 2, %v1315
    %v1317 = vrot.slane %v167, %v1316
    %1319 = vbcast.lane.b32.xlu0 %v1317, 256
    %v1320 = vpop.permute.xlu0 %1319
    %v1321 = vlaneseq
    %v1322 = vshrl.u32 %v1321, 7
    %v1323 = vsub.s32 3, %v1322
    %v1324 = vrot.slane %v167, %v1323
    %1326 = vbcast.lane.b32.xlu0 %v1324, 256
    %v1327 = vpop.permute.xlu0 %1326
    %v1328 = vlaneseq
    %v1329 = vshrl.u32 %v1328, 7
    %v1330 = vsub.s32 4, %v1329
    %v1331 = vrot.slane %v167, %v1330
    %1333 = vbcast.lane.b32.xlu0 %v1331, 256
    %v1334 = vpop.permute.xlu0 %1333
    %v1335 = vlaneseq
    %v1336 = vshrl.u32 %v1335, 7
    %v1337 = vsub.s32 5, %v1336
    %v1338 = vrot.slane %v167, %v1337
    %1340 = vbcast.lane.b32.xlu0 %v1338, 256
    %v1341 = vpop.permute.xlu0 %1340
    %v1342 = vlaneseq
    %v1343 = vshrl.u32 %v1342, 7
    %v1344 = vsub.s32 6, %v1343
    %v1345 = vrot.slane %v167, %v1344
    %1347 = vbcast.lane.b32.xlu0 %v1345, 256
    %v1348 = vpop.permute.xlu0 %1347
    %v1349 = vlaneseq
    %v1350 = vshrl.u32 %v1349, 7
    %v1351 = vsub.s32 7, %v1350
    %v1352 = vrot.slane %v167, %v1351
    %1354 = vbcast.lane.b32.xlu0 %v1352, 256
    %v1355 = vpop.permute.xlu0 %1354
    %v1356 = vlaneseq
    %v1357 = vshrl.u32 %v1356, 7
    %v1358 = vsub.s32 0, %v1357
    %v1359 = vrot.slane %v168, %v1358
    %1361 = vbcast.lane.b32.xlu0 %v1359, 256
    %v1362 = vpop.permute.xlu0 %1361
    %v1363 = vlaneseq
    %v1364 = vshrl.u32 %v1363, 7
    %v1365 = vsub.s32 1, %v1364
    %v1366 = vrot.slane %v168, %v1365
    %1368 = vbcast.lane.b32.xlu0 %v1366, 256
    %v1369 = vpop.permute.xlu0 %1368
    %v1370 = vlaneseq
    %v1371 = vshrl.u32 %v1370, 7
    %v1372 = vsub.s32 2, %v1371
    %v1373 = vrot.slane %v168, %v1372
    %1375 = vbcast.lane.b32.xlu0 %v1373, 256
    %v1376 = vpop.permute.xlu0 %1375
    %v1377 = vlaneseq
    %v1378 = vshrl.u32 %v1377, 7
    %v1379 = vsub.s32 3, %v1378
    %v1380 = vrot.slane %v168, %v1379
    %1382 = vbcast.lane.b32.xlu0 %v1380, 256
    %v1383 = vpop.permute.xlu0 %1382
    %v1384 = vlaneseq
    %v1385 = vshrl.u32 %v1384, 7
    %v1386 = vsub.s32 4, %v1385
    %v1387 = vrot.slane %v168, %v1386
    %1389 = vbcast.lane.b32.xlu0 %v1387, 256
    %v1390 = vpop.permute.xlu0 %1389
    %v1391 = vlaneseq
    %v1392 = vshrl.u32 %v1391, 7
    %v1393 = vsub.s32 5, %v1392
    %v1394 = vrot.slane %v168, %v1393
    %1396 = vbcast.lane.b32.xlu0 %v1394, 256
    %v1397 = vpop.permute.xlu0 %1396
    %v1398 = vlaneseq
    %v1399 = vshrl.u32 %v1398, 7
    %v1400 = vsub.s32 6, %v1399
    %v1401 = vrot.slane %v168, %v1400
    %1403 = vbcast.lane.b32.xlu0 %v1401, 256
    %v1404 = vpop.permute.xlu0 %1403
    %v1405 = vlaneseq
    %v1406 = vshrl.u32 %v1405, 7
    %v1407 = vsub.s32 7, %v1406
    %v1408 = vrot.slane %v168, %v1407
    %1410 = vbcast.lane.b32.xlu0 %v1408, 256
    %v1411 = vpop.permute.xlu0 %1410
    %v1412 = vlaneseq
    %v1413 = vshrl.u32 %v1412, 7
    %v1414 = vsub.s32 0, %v1413
    %v1415 = vrot.slane %v169, %v1414
    %1417 = vbcast.lane.b32.xlu0 %v1415, 256
    %v1418 = vpop.permute.xlu0 %1417
    %v1419 = vlaneseq
    %v1420 = vshrl.u32 %v1419, 7
    %v1421 = vsub.s32 1, %v1420
    %v1422 = vrot.slane %v169, %v1421
    %1424 = vbcast.lane.b32.xlu0 %v1422, 256
    %v1425 = vpop.permute.xlu0 %1424
    %v1426 = vlaneseq
    %v1427 = vshrl.u32 %v1426, 7
    %v1428 = vsub.s32 2, %v1427
    %v1429 = vrot.slane %v169, %v1428
    %1431 = vbcast.lane.b32.xlu0 %v1429, 256
    %v1432 = vpop.permute.xlu0 %1431
    %v1433 = vlaneseq
    %v1434 = vshrl.u32 %v1433, 7
    %v1435 = vsub.s32 3, %v1434
    %v1436 = vrot.slane %v169, %v1435
    %1438 = vbcast.lane.b32.xlu0 %v1436, 256
    %v1439 = vpop.permute.xlu0 %1438
    %v1440 = vlaneseq
    %v1441 = vshrl.u32 %v1440, 7
    %v1442 = vsub.s32 4, %v1441
    %v1443 = vrot.slane %v169, %v1442
    %1445 = vbcast.lane.b32.xlu0 %v1443, 256
    %v1446 = vpop.permute.xlu0 %1445
    %v1447 = vlaneseq
    %v1448 = vshrl.u32 %v1447, 7
    %v1449 = vsub.s32 5, %v1448
    %v1450 = vrot.slane %v169, %v1449
    %1452 = vbcast.lane.b32.xlu0 %v1450, 256
    %v1453 = vpop.permute.xlu0 %1452
    %v1454 = vlaneseq
    %v1455 = vshrl.u32 %v1454, 7
    %v1456 = vsub.s32 6, %v1455
    %v1457 = vrot.slane %v169, %v1456
    %1459 = vbcast.lane.b32.xlu0 %v1457, 256
    %v1460 = vpop.permute.xlu0 %1459
    %v1461 = vlaneseq
    %v1462 = vshrl.u32 %v1461, 7
    %v1463 = vsub.s32 7, %v1462
    %v1464 = vrot.slane %v169, %v1463
    %1466 = vbcast.lane.b32.xlu0 %v1464, 256
    %v1467 = vpop.permute.xlu0 %1466
    %v1468 = vlaneseq
    %v1469 = vshrl.u32 %v1468, 7
    %v1470 = vsub.s32 0, %v1469
    %v1471 = vrot.slane %v170, %v1470
    %1473 = vbcast.lane.b32.xlu0 %v1471, 256
    %v1474 = vpop.permute.xlu0 %1473
    %v1475 = vlaneseq
    %v1476 = vshrl.u32 %v1475, 7
    %v1477 = vsub.s32 1, %v1476
    %v1478 = vrot.slane %v170, %v1477
    %1480 = vbcast.lane.b32.xlu0 %v1478, 256
    %v1481 = vpop.permute.xlu0 %1480
    %v1482 = vlaneseq
    %v1483 = vshrl.u32 %v1482, 7
    %v1484 = vsub.s32 2, %v1483
    %v1485 = vrot.slane %v170, %v1484
    %1487 = vbcast.lane.b32.xlu0 %v1485, 256
    %v1488 = vpop.permute.xlu0 %1487
    %v1489 = vlaneseq
    %v1490 = vshrl.u32 %v1489, 7
    %v1491 = vsub.s32 3, %v1490
    %v1492 = vrot.slane %v170, %v1491
    %1494 = vbcast.lane.b32.xlu0 %v1492, 256
    %v1495 = vpop.permute.xlu0 %1494
    %v1496 = vlaneseq
    %v1497 = vshrl.u32 %v1496, 7
    %v1498 = vsub.s32 4, %v1497
    %v1499 = vrot.slane %v170, %v1498
    %1501 = vbcast.lane.b32.xlu0 %v1499, 256
    %v1502 = vpop.permute.xlu0 %1501
    %v1503 = vlaneseq
    %v1504 = vshrl.u32 %v1503, 7
    %v1505 = vsub.s32 5, %v1504
    %v1506 = vrot.slane %v170, %v1505
    %1508 = vbcast.lane.b32.xlu0 %v1506, 256
    %v1509 = vpop.permute.xlu0 %1508
    %v1510 = vlaneseq
    %v1511 = vshrl.u32 %v1510, 7
    %v1512 = vsub.s32 6, %v1511
    %v1513 = vrot.slane %v170, %v1512
    %1515 = vbcast.lane.b32.xlu0 %v1513, 256
    %v1516 = vpop.permute.xlu0 %1515
    %v1517 = vlaneseq
    %v1518 = vshrl.u32 %v1517, 7
    %v1519 = vsub.s32 7, %v1518
    %v1520 = vrot.slane %v170, %v1519
    %1522 = vbcast.lane.b32.xlu0 %v1520, 256
    %v1523 = vpop.permute.xlu0 %1522
    %v1524 = vlaneseq
    %v1525 = vshrl.u32 %v1524, 7
    %v1526 = vsub.s32 0, %v1525
    %v1527 = vrot.slane %v171, %v1526
    %1529 = vbcast.lane.b32.xlu0 %v1527, 256
    %v1530 = vpop.permute.xlu0 %1529
    %v1531 = vlaneseq
    %v1532 = vshrl.u32 %v1531, 7
    %v1533 = vsub.s32 1, %v1532
    %v1534 = vrot.slane %v171, %v1533
    %1536 = vbcast.lane.b32.xlu0 %v1534, 256
    %v1537 = vpop.permute.xlu0 %1536
    %v1538 = vlaneseq
    %v1539 = vshrl.u32 %v1538, 7
    %v1540 = vsub.s32 2, %v1539
    %v1541 = vrot.slane %v171, %v1540
    %1543 = vbcast.lane.b32.xlu0 %v1541, 256
    %v1544 = vpop.permute.xlu0 %1543
    %v1545 = vlaneseq
    %v1546 = vshrl.u32 %v1545, 7
    %v1547 = vsub.s32 3, %v1546
    %v1548 = vrot.slane %v171, %v1547
    %1550 = vbcast.lane.b32.xlu0 %v1548, 256
    %v1551 = vpop.permute.xlu0 %1550
    %v1552 = vlaneseq
    %v1553 = vshrl.u32 %v1552, 7
    %v1554 = vsub.s32 4, %v1553
    %v1555 = vrot.slane %v171, %v1554
    %1557 = vbcast.lane.b32.xlu0 %v1555, 256
    %v1558 = vpop.permute.xlu0 %1557
    %v1559 = vlaneseq
    %v1560 = vshrl.u32 %v1559, 7
    %v1561 = vsub.s32 5, %v1560
    %v1562 = vrot.slane %v171, %v1561
    %1564 = vbcast.lane.b32.xlu0 %v1562, 256
    %v1565 = vpop.permute.xlu0 %1564
    %v1566 = vlaneseq
    %v1567 = vshrl.u32 %v1566, 7
    %v1568 = vsub.s32 6, %v1567
    %v1569 = vrot.slane %v171, %v1568
    %1571 = vbcast.lane.b32.xlu0 %v1569, 256
    %v1572 = vpop.permute.xlu0 %1571
    %v1573 = vlaneseq
    %v1574 = vshrl.u32 %v1573, 7
    %v1575 = vsub.s32 7, %v1574
    %v1576 = vrot.slane %v171, %v1575
    %1578 = vbcast.lane.b32.xlu0 %v1576, 256
    %v1579 = vpop.permute.xlu0 %1578
    %v1580 = vlaneseq
    %v1581 = vshrl.u32 %v1580, 7
    %v1582 = vsub.s32 0, %v1581
    %v1583 = vrot.slane %v172, %v1582
    %1585 = vbcast.lane.b32.xlu0 %v1583, 256
    %v1586 = vpop.permute.xlu0 %1585
    %v1587 = vlaneseq
    %v1588 = vshrl.u32 %v1587, 7
    %v1589 = vsub.s32 1, %v1588
    %v1590 = vrot.slane %v172, %v1589
    %1592 = vbcast.lane.b32.xlu0 %v1590, 256
    %v1593 = vpop.permute.xlu0 %1592
    %v1594 = vlaneseq
    %v1595 = vshrl.u32 %v1594, 7
    %v1596 = vsub.s32 2, %v1595
    %v1597 = vrot.slane %v172, %v1596
    %1599 = vbcast.lane.b32.xlu0 %v1597, 256
    %v1600 = vpop.permute.xlu0 %1599
    %v1601 = vlaneseq
    %v1602 = vshrl.u32 %v1601, 7
    %v1603 = vsub.s32 3, %v1602
    %v1604 = vrot.slane %v172, %v1603
    %1606 = vbcast.lane.b32.xlu0 %v1604, 256
    %v1607 = vpop.permute.xlu0 %1606
    %v1608 = vlaneseq
    %v1609 = vshrl.u32 %v1608, 7
    %v1610 = vsub.s32 4, %v1609
    %v1611 = vrot.slane %v172, %v1610
    %1613 = vbcast.lane.b32.xlu0 %v1611, 256
    %v1614 = vpop.permute.xlu0 %1613
    %v1615 = vlaneseq
    %v1616 = vshrl.u32 %v1615, 7
    %v1617 = vsub.s32 5, %v1616
    %v1618 = vrot.slane %v172, %v1617
    %1620 = vbcast.lane.b32.xlu0 %v1618, 256
    %v1621 = vpop.permute.xlu0 %1620
    %v1622 = vlaneseq
    %v1623 = vshrl.u32 %v1622, 7
    %v1624 = vsub.s32 6, %v1623
    %v1625 = vrot.slane %v172, %v1624
    %1627 = vbcast.lane.b32.xlu0 %v1625, 256
    %v1628 = vpop.permute.xlu0 %1627
    %v1629 = vlaneseq
    %v1630 = vshrl.u32 %v1629, 7
    %v1631 = vsub.s32 7, %v1630
    %v1632 = vrot.slane %v172, %v1631
    %1634 = vbcast.lane.b32.xlu0 %v1632, 256
    %v1635 = vpop.permute.xlu0 %1634
    %v1636 = vlaneseq
    %v1637 = vshrl.u32 %v1636, 7
    %v1638 = vsub.s32 0, %v1637
    %v1639 = vrot.slane %v173, %v1638
    %1641 = vbcast.lane.b32.xlu0 %v1639, 256
    %v1642 = vpop.permute.xlu0 %1641
    %v1643 = vlaneseq
    %v1644 = vshrl.u32 %v1643, 7
    %v1645 = vsub.s32 1, %v1644
    %v1646 = vrot.slane %v173, %v1645
    %1648 = vbcast.lane.b32.xlu0 %v1646, 256
    %v1649 = vpop.permute.xlu0 %1648
    %v1650 = vlaneseq
    %v1651 = vshrl.u32 %v1650, 7
    %v1652 = vsub.s32 2, %v1651
    %v1653 = vrot.slane %v173, %v1652
    %1655 = vbcast.lane.b32.xlu0 %v1653, 256
    %v1656 = vpop.permute.xlu0 %1655
    %v1657 = vlaneseq
    %v1658 = vshrl.u32 %v1657, 7
    %v1659 = vsub.s32 3, %v1658
    %v1660 = vrot.slane %v173, %v1659
    %1662 = vbcast.lane.b32.xlu0 %v1660, 256
    %v1663 = vpop.permute.xlu0 %1662
    %v1664 = vlaneseq
    %v1665 = vshrl.u32 %v1664, 7
    %v1666 = vsub.s32 4, %v1665
    %v1667 = vrot.slane %v173, %v1666
    %1669 = vbcast.lane.b32.xlu0 %v1667, 256
    %v1670 = vpop.permute.xlu0 %1669
    %v1671 = vlaneseq
    %v1672 = vshrl.u32 %v1671, 7
    %v1673 = vsub.s32 5, %v1672
    %v1674 = vrot.slane %v173, %v1673
    %1676 = vbcast.lane.b32.xlu0 %v1674, 256
    %v1677 = vpop.permute.xlu0 %1676
    %v1678 = vlaneseq
    %v1679 = vshrl.u32 %v1678, 7
    %v1680 = vsub.s32 6, %v1679
    %v1681 = vrot.slane %v173, %v1680
    %1683 = vbcast.lane.b32.xlu0 %v1681, 256
    %v1684 = vpop.permute.xlu0 %1683
    %v1685 = vlaneseq
    %v1686 = vshrl.u32 %v1685, 7
    %v1687 = vsub.s32 7, %v1686
    %v1688 = vrot.slane %v173, %v1687
    %1690 = vbcast.lane.b32.xlu0 %v1688, 256
    %v1691 = vpop.permute.xlu0 %1690
    %v1692 = vlaneseq
    %v1693 = vshrl.u32 %v1692, 7
    %v1694 = vsub.s32 0, %v1693
    %v1695 = vrot.slane %v174, %v1694
    %1697 = vbcast.lane.b32.xlu0 %v1695, 256
    %v1698 = vpop.permute.xlu0 %1697
    %v1699 = vlaneseq
    %v1700 = vshrl.u32 %v1699, 7
    %v1701 = vsub.s32 1, %v1700
    %v1702 = vrot.slane %v174, %v1701
    %1704 = vbcast.lane.b32.xlu0 %v1702, 256
    %v1705 = vpop.permute.xlu0 %1704
    %v1706 = vlaneseq
    %v1707 = vshrl.u32 %v1706, 7
    %v1708 = vsub.s32 2, %v1707
    %v1709 = vrot.slane %v174, %v1708
    %1711 = vbcast.lane.b32.xlu0 %v1709, 256
    %v1712 = vpop.permute.xlu0 %1711
    %v1713 = vlaneseq
    %v1714 = vshrl.u32 %v1713, 7
    %v1715 = vsub.s32 3, %v1714
    %v1716 = vrot.slane %v174, %v1715
    %1718 = vbcast.lane.b32.xlu0 %v1716, 256
    %v1719 = vpop.permute.xlu0 %1718
    %v1720 = vlaneseq
    %v1721 = vshrl.u32 %v1720, 7
    %v1722 = vsub.s32 4, %v1721
    %v1723 = vrot.slane %v174, %v1722
    %1725 = vbcast.lane.b32.xlu0 %v1723, 256
    %v1726 = vpop.permute.xlu0 %1725
    %v1727 = vlaneseq
    %v1728 = vshrl.u32 %v1727, 7
    %v1729 = vsub.s32 5, %v1728
    %v1730 = vrot.slane %v174, %v1729
    %1732 = vbcast.lane.b32.xlu0 %v1730, 256
    %v1733 = vpop.permute.xlu0 %1732
    %v1734 = vlaneseq
    %v1735 = vshrl.u32 %v1734, 7
    %v1736 = vsub.s32 6, %v1735
    %v1737 = vrot.slane %v174, %v1736
    %1739 = vbcast.lane.b32.xlu0 %v1737, 256
    %v1740 = vpop.permute.xlu0 %1739
    %v1741 = vlaneseq
    %v1742 = vshrl.u32 %v1741, 7
    %v1743 = vsub.s32 7, %v1742
    %v1744 = vrot.slane %v174, %v1743
    %1746 = vbcast.lane.b32.xlu0 %v1744, 256
    %v1747 = vpop.permute.xlu0 %1746
    %v1748 = vlaneseq
    %v1749 = vshrl.u32 %v1748, 7
    %v1750 = vsub.s32 0, %v1749
    %v1751 = vrot.slane %v175, %v1750
    %1753 = vbcast.lane.b32.xlu0 %v1751, 256
    %v1754 = vpop.permute.xlu0 %1753
    %v1755 = vlaneseq
    %v1756 = vshrl.u32 %v1755, 7
    %v1757 = vsub.s32 1, %v1756
    %v1758 = vrot.slane %v175, %v1757
    %1760 = vbcast.lane.b32.xlu0 %v1758, 256
    %v1761 = vpop.permute.xlu0 %1760
    %v1762 = vlaneseq
    %v1763 = vshrl.u32 %v1762, 7
    %v1764 = vsub.s32 2, %v1763
    %v1765 = vrot.slane %v175, %v1764
    %1767 = vbcast.lane.b32.xlu0 %v1765, 256
    %v1768 = vpop.permute.xlu0 %1767
    %v1769 = vlaneseq
    %v1770 = vshrl.u32 %v1769, 7
    %v1771 = vsub.s32 3, %v1770
    %v1772 = vrot.slane %v175, %v1771
    %1774 = vbcast.lane.b32.xlu0 %v1772, 256
    %v1775 = vpop.permute.xlu0 %1774
    %v1776 = vlaneseq
    %v1777 = vshrl.u32 %v1776, 7
    %v1778 = vsub.s32 4, %v1777
    %v1779 = vrot.slane %v175, %v1778
    %1781 = vbcast.lane.b32.xlu0 %v1779, 256
    %v1782 = vpop.permute.xlu0 %1781
    %v1783 = vlaneseq
    %v1784 = vshrl.u32 %v1783, 7
    %v1785 = vsub.s32 5, %v1784
    %v1786 = vrot.slane %v175, %v1785
    %1788 = vbcast.lane.b32.xlu0 %v1786, 256
    %v1789 = vpop.permute.xlu0 %1788
    %v1790 = vlaneseq
    %v1791 = vshrl.u32 %v1790, 7
    %v1792 = vsub.s32 6, %v1791
    %v1793 = vrot.slane %v175, %v1792
    %1795 = vbcast.lane.b32.xlu0 %v1793, 256
    %v1796 = vpop.permute.xlu0 %1795
    %v1797 = vlaneseq
    %v1798 = vshrl.u32 %v1797, 7
    %v1799 = vsub.s32 7, %v1798
    %v1800 = vrot.slane %v175, %v1799
    %1802 = vbcast.lane.b32.xlu0 %v1800, 256
    %v1803 = vpop.permute.xlu0 %1802
    %v1804 = vlaneseq
    %v1805 = vshrl.u32 %v1804, 7
    %v1806 = vsub.s32 0, %v1805
    %v1807 = vrot.slane %v176, %v1806
    %1809 = vbcast.lane.b32.xlu0 %v1807, 256
    %v1810 = vpop.permute.xlu0 %1809
    %v1811 = vlaneseq
    %v1812 = vshrl.u32 %v1811, 7
    %v1813 = vsub.s32 1, %v1812
    %v1814 = vrot.slane %v176, %v1813
    %1816 = vbcast.lane.b32.xlu0 %v1814, 256
    %v1817 = vpop.permute.xlu0 %1816
    %v1818 = vlaneseq
    %v1819 = vshrl.u32 %v1818, 7
    %v1820 = vsub.s32 2, %v1819
    %v1821 = vrot.slane %v176, %v1820
    %1823 = vbcast.lane.b32.xlu0 %v1821, 256
    %v1824 = vpop.permute.xlu0 %1823
    %v1825 = vlaneseq
    %v1826 = vshrl.u32 %v1825, 7
    %v1827 = vsub.s32 3, %v1826
    %v1828 = vrot.slane %v176, %v1827
    %1830 = vbcast.lane.b32.xlu0 %v1828, 256
    %v1831 = vpop.permute.xlu0 %1830
    %v1832 = vlaneseq
    %v1833 = vshrl.u32 %v1832, 7
    %v1834 = vsub.s32 4, %v1833
    %v1835 = vrot.slane %v176, %v1834
    %1837 = vbcast.lane.b32.xlu0 %v1835, 256
    %v1838 = vpop.permute.xlu0 %1837
    %v1839 = vlaneseq
    %v1840 = vshrl.u32 %v1839, 7
    %v1841 = vsub.s32 5, %v1840
    %v1842 = vrot.slane %v176, %v1841
    %1844 = vbcast.lane.b32.xlu0 %v1842, 256
    %v1845 = vpop.permute.xlu0 %1844
    %v1846 = vlaneseq
    %v1847 = vshrl.u32 %v1846, 7
    %v1848 = vsub.s32 6, %v1847
    %v1849 = vrot.slane %v176, %v1848
    %1851 = vbcast.lane.b32.xlu0 %v1849, 256
    %v1852 = vpop.permute.xlu0 %1851
    %v1853 = vlaneseq
    %v1854 = vshrl.u32 %v1853, 7
    %v1855 = vsub.s32 7, %v1854
    %v1856 = vrot.slane %v176, %v1855
    %1858 = vbcast.lane.b32.xlu0 %v1856, 256
    %v1859 = vpop.permute.xlu0 %1858
    %v1860 = vlaneseq
    %v1861 = vshrl.u32 %v1860, 7
    %v1862 = vsub.s32 0, %v1861
    %v1863 = vrot.slane %v177, %v1862
    %1865 = vbcast.lane.b32.xlu0 %v1863, 256
    %v1866 = vpop.permute.xlu0 %1865
    %v1867 = vlaneseq
    %v1868 = vshrl.u32 %v1867, 7
    %v1869 = vsub.s32 1, %v1868
    %v1870 = vrot.slane %v177, %v1869
    %1872 = vbcast.lane.b32.xlu0 %v1870, 256
    %v1873 = vpop.permute.xlu0 %1872
    %v1874 = vlaneseq
    %v1875 = vshrl.u32 %v1874, 7
    %v1876 = vsub.s32 2, %v1875
    %v1877 = vrot.slane %v177, %v1876
    %1879 = vbcast.lane.b32.xlu0 %v1877, 256
    %v1880 = vpop.permute.xlu0 %1879
    %v1881 = vlaneseq
    %v1882 = vshrl.u32 %v1881, 7
    %v1883 = vsub.s32 3, %v1882
    %v1884 = vrot.slane %v177, %v1883
    %1886 = vbcast.lane.b32.xlu0 %v1884, 256
    %v1887 = vpop.permute.xlu0 %1886
    %v1888 = vlaneseq
    %v1889 = vshrl.u32 %v1888, 7
    %v1890 = vsub.s32 4, %v1889
    %v1891 = vrot.slane %v177, %v1890
    %1893 = vbcast.lane.b32.xlu0 %v1891, 256
    %v1894 = vpop.permute.xlu0 %1893
    %v1895 = vlaneseq
    %v1896 = vshrl.u32 %v1895, 7
    %v1897 = vsub.s32 5, %v1896
    %v1898 = vrot.slane %v177, %v1897
    %1900 = vbcast.lane.b32.xlu0 %v1898, 256
    %v1901 = vpop.permute.xlu0 %1900
    %v1902 = vlaneseq
    %v1903 = vshrl.u32 %v1902, 7
    %v1904 = vsub.s32 6, %v1903
    %v1905 = vrot.slane %v177, %v1904
    %1907 = vbcast.lane.b32.xlu0 %v1905, 256
    %v1908 = vpop.permute.xlu0 %1907
    %v1909 = vlaneseq
    %v1910 = vshrl.u32 %v1909, 7
    %v1911 = vsub.s32 7, %v1910
    %v1912 = vrot.slane %v177, %v1911
    %1914 = vbcast.lane.b32.xlu0 %v1912, 256
    %v1915 = vpop.permute.xlu0 %1914
    %v1916 = vlaneseq
    %v1917 = vshrl.u32 %v1916, 7
    %v1918 = vsub.s32 0, %v1917
    %v1919 = vrot.slane %v178, %v1918
    %1921 = vbcast.lane.b32.xlu0 %v1919, 256
    %v1922 = vpop.permute.xlu0 %1921
    %v1923 = vlaneseq
    %v1924 = vshrl.u32 %v1923, 7
    %v1925 = vsub.s32 1, %v1924
    %v1926 = vrot.slane %v178, %v1925
    %1928 = vbcast.lane.b32.xlu0 %v1926, 256
    %v1929 = vpop.permute.xlu0 %1928
    %v1930 = vlaneseq
    %v1931 = vshrl.u32 %v1930, 7
    %v1932 = vsub.s32 2, %v1931
    %v1933 = vrot.slane %v178, %v1932
    %1935 = vbcast.lane.b32.xlu0 %v1933, 256
    %v1936 = vpop.permute.xlu0 %1935
    %v1937 = vlaneseq
    %v1938 = vshrl.u32 %v1937, 7
    %v1939 = vsub.s32 3, %v1938
    %v1940 = vrot.slane %v178, %v1939
    %1942 = vbcast.lane.b32.xlu0 %v1940, 256
    %v1943 = vpop.permute.xlu0 %1942
    %v1944 = vlaneseq
    %v1945 = vshrl.u32 %v1944, 7
    %v1946 = vsub.s32 4, %v1945
    %v1947 = vrot.slane %v178, %v1946
    %1949 = vbcast.lane.b32.xlu0 %v1947, 256
    %v1950 = vpop.permute.xlu0 %1949
    %v1951 = vlaneseq
    %v1952 = vshrl.u32 %v1951, 7
    %v1953 = vsub.s32 5, %v1952
    %v1954 = vrot.slane %v178, %v1953
    %1956 = vbcast.lane.b32.xlu0 %v1954, 256
    %v1957 = vpop.permute.xlu0 %1956
    %v1958 = vlaneseq
    %v1959 = vshrl.u32 %v1958, 7
    %v1960 = vsub.s32 6, %v1959
    %v1961 = vrot.slane %v178, %v1960
    %1963 = vbcast.lane.b32.xlu0 %v1961, 256
    %v1964 = vpop.permute.xlu0 %1963
    %v1965 = vlaneseq
    %v1966 = vshrl.u32 %v1965, 7
    %v1967 = vsub.s32 7, %v1966
    %v1968 = vrot.slane %v178, %v1967
    %1970 = vbcast.lane.b32.xlu0 %v1968, 256
    %v1971 = vpop.permute.xlu0 %1970
    %v1972 = vmul.f32 %v19, %v1082
    %v1973 = vmul.f32 %v20, %v1089
    %v1974 = vmul.f32 %v21, %v1096
    %v1975 = vmul.f32 %v22, %v1103
    %v1976 = vmul.f32 %v23, %v1110
    %v1977 = vmul.f32 %v24, %v1117
    %v1978 = vmul.f32 %v25, %v1124
    %v1979 = vmul.f32 %v26, %v1131
    %v1980 = vmul.f32 %v27, %v1138
    %v1981 = vmul.f32 %v28, %v1145
    %v1982 = vmul.f32 %v29, %v1152
    %v1983 = vmul.f32 %v30, %v1159
    %v1984 = vmul.f32 %v31, %v1166
    %v1985 = vmul.f32 %v32, %v1173
    %v1986 = vmul.f32 %v33, %v1180
    %v1987 = vmul.f32 %v34, %v1187
    %v1988 = vmul.f32 %v35, %v1194
    %v1989 = vmul.f32 %v36, %v1201
    %v1990 = vmul.f32 %v37, %v1208
    %v1991 = vmul.f32 %v38, %v1215
    %v1992 = vmul.f32 %v39, %v1222
    %v1993 = vmul.f32 %v40, %v1229
    %v1994 = vmul.f32 %v41, %v1236
    %v1995 = vmul.f32 %v42, %v1243
    %v1996 = vmul.f32 %v43, %v1250
    %v1997 = vmul.f32 %v44, %v1257
    %v1998 = vmul.f32 %v45, %v1264
    %v1999 = vmul.f32 %v46, %v1271
    %v2000 = vmul.f32 %v47, %v1278
    %v2001 = vmul.f32 %v48, %v1285
    %v2002 = vmul.f32 %v49, %v1292
    %v2003 = vmul.f32 %v50, %v1299
    %v2004 = vmul.f32 %v51, %v1306
    %v2005 = vmul.f32 %v52, %v1313
    %v2006 = vmul.f32 %v53, %v1320
    %v2007 = vmul.f32 %v54, %v1327
    %v2008 = vmul.f32 %v55, %v1334
    %v2009 = vmul.f32 %v56, %v1341
    %v2010 = vmul.f32 %v57, %v1348
    %v2011 = vmul.f32 %v58, %v1355
    %v2012 = vmul.f32 %v59, %v1362
    %v2013 = vmul.f32 %v60, %v1369
    %v2014 = vmul.f32 %v61, %v1376
    %v2015 = vmul.f32 %v62, %v1383
    %v2016 = vmul.f32 %v63, %v1390
    %v2017 = vmul.f32 %v64, %v1397
    %v2018 = vmul.f32 %v65, %v1404
    %v2019 = vmul.f32 %v66, %v1411
    %v2020 = vmul.f32 %v67, %v1418
    %v2021 = vmul.f32 %v68, %v1425
    %v2022 = vmul.f32 %v69, %v1432
    %v2023 = vmul.f32 %v70, %v1439
    %v2024 = vmul.f32 %v71, %v1446
    %v2025 = vmul.f32 %v72, %v1453
    %v2026 = vmul.f32 %v73, %v1460
    %v2027 = vmul.f32 %v74, %v1467
    %v2028 = vmul.f32 %v75, %v1474
    %v2029 = vmul.f32 %v76, %v1481
    %v2030 = vmul.f32 %v77, %v1488
    %v2031 = vmul.f32 %v78, %v1495
    %v2032 = vmul.f32 %v79, %v1502
    %v2033 = vmul.f32 %v80, %v1509
    %v2034 = vmul.f32 %v81, %v1516
    %v2035 = vmul.f32 %v82, %v1523
    %v2036 = vmul.f32 %v83, %v1530
    %v2037 = vmul.f32 %v84, %v1537
    %v2038 = vmul.f32 %v85, %v1544
    %v2039 = vmul.f32 %v86, %v1551
    %v2040 = vmul.f32 %v87, %v1558
    %v2041 = vmul.f32 %v88, %v1565
    %v2042 = vmul.f32 %v89, %v1572
    %v2043 = vmul.f32 %v90, %v1579
    %v2044 = vmul.f32 %v91, %v1586
    %v2045 = vmul.f32 %v92, %v1593
    %v2046 = vmul.f32 %v93, %v1600
    %v2047 = vmul.f32 %v94, %v1607
    %v2048 = vmul.f32 %v95, %v1614
    %v2049 = vmul.f32 %v96, %v1621
    %v2050 = vmul.f32 %v97, %v1628
    %v2051 = vmul.f32 %v98, %v1635
    %v2052 = vmul.f32 %v99, %v1642
    %v2053 = vmul.f32 %v100, %v1649
    %v2054 = vmul.f32 %v101, %v1656
    %v2055 = vmul.f32 %v102, %v1663
    %v2056 = vmul.f32 %v103, %v1670
    %v2057 = vmul.f32 %v104, %v1677
    %v2058 = vmul.f32 %v105, %v1684
    %v2059 = vmul.f32 %v106, %v1691
    %v2060 = vmul.f32 %v107, %v1698
    %v2061 = vmul.f32 %v108, %v1705
    %v2062 = vmul.f32 %v109, %v1712
    %v2063 = vmul.f32 %v110, %v1719
    %v2064 = vmul.f32 %v111, %v1726
    %v2065 = vmul.f32 %v112, %v1733
    %v2066 = vmul.f32 %v113, %v1740
    %v2067 = vmul.f32 %v114, %v1747
    %v2068 = vmul.f32 %v115, %v1754
    %v2069 = vmul.f32 %v116, %v1761
    %v2070 = vmul.f32 %v117, %v1768
    %v2071 = vmul.f32 %v118, %v1775
    %v2072 = vmul.f32 %v119, %v1782
    %v2073 = vmul.f32 %v120, %v1789
    %v2074 = vmul.f32 %v121, %v1796
    %v2075 = vmul.f32 %v122, %v1803
    %v2076 = vmul.f32 %v123, %v1810
    %v2077 = vmul.f32 %v124, %v1817
    %v2078 = vmul.f32 %v125, %v1824
    %v2079 = vmul.f32 %v126, %v1831
    %v2080 = vmul.f32 %v127, %v1838
    %v2081 = vmul.f32 %v128, %v1845
    %v2082 = vmul.f32 %v129, %v1852
    %v2083 = vmul.f32 %v130, %v1859
    %v2084 = vmul.f32 %v131, %v1866
    %v2085 = vmul.f32 %v132, %v1873
    %v2086 = vmul.f32 %v133, %v1880
    %v2087 = vmul.f32 %v134, %v1887
    %v2088 = vmul.f32 %v135, %v1894
    %v2089 = vmul.f32 %v136, %v1901
    %v2090 = vmul.f32 %v137, %v1908
    %v2091 = vmul.f32 %v138, %v1915
    %v2092 = vmul.f32 %v139, %v1922
    %v2093 = vmul.f32 %v140, %v1929
    %v2094 = vmul.f32 %v141, %v1936
    %v2095 = vmul.f32 %v142, %v1943
    %v2096 = vmul.f32 %v143, %v1950
    %v2097 = vmul.f32 %v144, %v1957
    %v2098 = vmul.f32 %v145, %v1964
    %v2099 = vmul.f32 %v146, %v1971
    %v2100 = vsel %vm179, %v1972, 0.0
    %v2101 = vrot.slane %v2100, 4
    %v2102 = vadd.f32 %v2100, %v2101
    %v2103 = vrot.slane %v2102, 2
    %v2104 = vadd.f32 %v2102, %v2103
    %v2105 = vrot.slane %v2104, 1
    %v2106 = vadd.f32 %v2104, %v2105
    %v2107 = vsel %vm179, %v1973, 0.0
    %v2108 = vrot.slane %v2107, 4
    %v2109 = vadd.f32 %v2107, %v2108
    %v2110 = vrot.slane %v2109, 2
    %v2111 = vadd.f32 %v2109, %v2110
    %v2112 = vrot.slane %v2111, 1
    %v2113 = vadd.f32 %v2111, %v2112
    %v2114 = vsel %vm179, %v1974, 0.0
    %v2115 = vrot.slane %v2114, 4
    %v2116 = vadd.f32 %v2114, %v2115
    %v2117 = vrot.slane %v2116, 2
    %v2118 = vadd.f32 %v2116, %v2117
    %v2119 = vrot.slane %v2118, 1
    %v2120 = vadd.f32 %v2118, %v2119
    %v2121 = vsel %vm179, %v1975, 0.0
    %v2122 = vrot.slane %v2121, 4
    %v2123 = vadd.f32 %v2121, %v2122
    %v2124 = vrot.slane %v2123, 2
    %v2125 = vadd.f32 %v2123, %v2124
    %v2126 = vrot.slane %v2125, 1
    %v2127 = vadd.f32 %v2125, %v2126
    %v2128 = vsel %vm179, %v1976, 0.0
    %v2129 = vrot.slane %v2128, 4
    %v2130 = vadd.f32 %v2128, %v2129
    %v2131 = vrot.slane %v2130, 2
    %v2132 = vadd.f32 %v2130, %v2131
    %v2133 = vrot.slane %v2132, 1
    %v2134 = vadd.f32 %v2132, %v2133
    %v2135 = vsel %vm179, %v1977, 0.0
    %v2136 = vrot.slane %v2135, 4
    %v2137 = vadd.f32 %v2135, %v2136
    %v2138 = vrot.slane %v2137, 2
    %v2139 = vadd.f32 %v2137, %v2138
    %v2140 = vrot.slane %v2139, 1
    %v2141 = vadd.f32 %v2139, %v2140
    %v2142 = vsel %vm179, %v1978, 0.0
    %v2143 = vrot.slane %v2142, 4
    %v2144 = vadd.f32 %v2142, %v2143
    %v2145 = vrot.slane %v2144, 2
    %v2146 = vadd.f32 %v2144, %v2145
    %v2147 = vrot.slane %v2146, 1
    %v2148 = vadd.f32 %v2146, %v2147
    %v2149 = vsel %vm179, %v1979, 0.0
    %v2150 = vrot.slane %v2149, 4
    %v2151 = vadd.f32 %v2149, %v2150
    %v2152 = vrot.slane %v2151, 2
    %v2153 = vadd.f32 %v2151, %v2152
    %v2154 = vrot.slane %v2153, 1
    %v2155 = vadd.f32 %v2153, %v2154
    %v2156 = vsel %vm179, %v1980, 0.0
    %v2157 = vrot.slane %v2156, 4
    %v2158 = vadd.f32 %v2156, %v2157
    %v2159 = vrot.slane %v2158, 2
    %v2160 = vadd.f32 %v2158, %v2159
    %v2161 = vrot.slane %v2160, 1
    %v2162 = vadd.f32 %v2160, %v2161
    %v2163 = vsel %vm179, %v1981, 0.0
    %v2164 = vrot.slane %v2163, 4
    %v2165 = vadd.f32 %v2163, %v2164
    %v2166 = vrot.slane %v2165, 2
    %v2167 = vadd.f32 %v2165, %v2166
    %v2168 = vrot.slane %v2167, 1
    %v2169 = vadd.f32 %v2167, %v2168
    %v2170 = vsel %vm179, %v1982, 0.0
    %v2171 = vrot.slane %v2170, 4
    %v2172 = vadd.f32 %v2170, %v2171
    %v2173 = vrot.slane %v2172, 2
    %v2174 = vadd.f32 %v2172, %v2173
    %v2175 = vrot.slane %v2174, 1
    %v2176 = vadd.f32 %v2174, %v2175
    %v2177 = vsel %vm179, %v1983, 0.0
    %v2178 = vrot.slane %v2177, 4
    %v2179 = vadd.f32 %v2177, %v2178
    %v2180 = vrot.slane %v2179, 2
    %v2181 = vadd.f32 %v2179, %v2180
    %v2182 = vrot.slane %v2181, 1
    %v2183 = vadd.f32 %v2181, %v2182
    %v2184 = vsel %vm179, %v1984, 0.0
    %v2185 = vrot.slane %v2184, 4
    %v2186 = vadd.f32 %v2184, %v2185
    %v2187 = vrot.slane %v2186, 2
    %v2188 = vadd.f32 %v2186, %v2187
    %v2189 = vrot.slane %v2188, 1
    %v2190 = vadd.f32 %v2188, %v2189
    %v2191 = vsel %vm179, %v1985, 0.0
    %v2192 = vrot.slane %v2191, 4
    %v2193 = vadd.f32 %v2191, %v2192
    %v2194 = vrot.slane %v2193, 2
    %v2195 = vadd.f32 %v2193, %v2194
    %v2196 = vrot.slane %v2195, 1
    %v2197 = vadd.f32 %v2195, %v2196
    %v2198 = vsel %vm179, %v1986, 0.0
    %v2199 = vrot.slane %v2198, 4
    %v2200 = vadd.f32 %v2198, %v2199
    %v2201 = vrot.slane %v2200, 2
    %v2202 = vadd.f32 %v2200, %v2201
    %v2203 = vrot.slane %v2202, 1
    %v2204 = vadd.f32 %v2202, %v2203
    %v2205 = vsel %vm179, %v1987, 0.0
    %v2206 = vrot.slane %v2205, 4
    %v2207 = vadd.f32 %v2205, %v2206
    %v2208 = vrot.slane %v2207, 2
    %v2209 = vadd.f32 %v2207, %v2208
    %v2210 = vrot.slane %v2209, 1
    %v2211 = vadd.f32 %v2209, %v2210
    %v2212 = vsel %vm179, %v1988, 0.0
    %v2213 = vrot.slane %v2212, 4
    %v2214 = vadd.f32 %v2212, %v2213
    %v2215 = vrot.slane %v2214, 2
    %v2216 = vadd.f32 %v2214, %v2215
    %v2217 = vrot.slane %v2216, 1
    %v2218 = vadd.f32 %v2216, %v2217
    %v2219 = vsel %vm179, %v1989, 0.0
    %v2220 = vrot.slane %v2219, 4
    %v2221 = vadd.f32 %v2219, %v2220
    %v2222 = vrot.slane %v2221, 2
    %v2223 = vadd.f32 %v2221, %v2222
    %v2224 = vrot.slane %v2223, 1
    %v2225 = vadd.f32 %v2223, %v2224
    %v2226 = vsel %vm179, %v1990, 0.0
    %v2227 = vrot.slane %v2226, 4
    %v2228 = vadd.f32 %v2226, %v2227
    %v2229 = vrot.slane %v2228, 2
    %v2230 = vadd.f32 %v2228, %v2229
    %v2231 = vrot.slane %v2230, 1
    %v2232 = vadd.f32 %v2230, %v2231
    %v2233 = vsel %vm179, %v1991, 0.0
    %v2234 = vrot.slane %v2233, 4
    %v2235 = vadd.f32 %v2233, %v2234
    %v2236 = vrot.slane %v2235, 2
    %v2237 = vadd.f32 %v2235, %v2236
    %v2238 = vrot.slane %v2237, 1
    %v2239 = vadd.f32 %v2237, %v2238
    %v2240 = vsel %vm179, %v1992, 0.0
    %v2241 = vrot.slane %v2240, 4
    %v2242 = vadd.f32 %v2240, %v2241
    %v2243 = vrot.slane %v2242, 2
    %v2244 = vadd.f32 %v2242, %v2243
    %v2245 = vrot.slane %v2244, 1
    %v2246 = vadd.f32 %v2244, %v2245
    %v2247 = vsel %vm179, %v1993, 0.0
    %v2248 = vrot.slane %v2247, 4
    %v2249 = vadd.f32 %v2247, %v2248
    %v2250 = vrot.slane %v2249, 2
    %v2251 = vadd.f32 %v2249, %v2250
    %v2252 = vrot.slane %v2251, 1
    %v2253 = vadd.f32 %v2251, %v2252
    %v2254 = vsel %vm179, %v1994, 0.0
    %v2255 = vrot.slane %v2254, 4
    %v2256 = vadd.f32 %v2254, %v2255
    %v2257 = vrot.slane %v2256, 2
    %v2258 = vadd.f32 %v2256, %v2257
    %v2259 = vrot.slane %v2258, 1
    %v2260 = vadd.f32 %v2258, %v2259
    %v2261 = vsel %vm179, %v1995, 0.0
    %v2262 = vrot.slane %v2261, 4
    %v2263 = vadd.f32 %v2261, %v2262
    %v2264 = vrot.slane %v2263, 2
    %v2265 = vadd.f32 %v2263, %v2264
    %v2266 = vrot.slane %v2265, 1
    %v2267 = vadd.f32 %v2265, %v2266
    %v2268 = vsel %vm179, %v1996, 0.0
    %v2269 = vrot.slane %v2268, 4
    %v2270 = vadd.f32 %v2268, %v2269
    %v2271 = vrot.slane %v2270, 2
    %v2272 = vadd.f32 %v2270, %v2271
    %v2273 = vrot.slane %v2272, 1
    %v2274 = vadd.f32 %v2272, %v2273
    %v2275 = vsel %vm179, %v1997, 0.0
    %v2276 = vrot.slane %v2275, 4
    %v2277 = vadd.f32 %v2275, %v2276
    %v2278 = vrot.slane %v2277, 2
    %v2279 = vadd.f32 %v2277, %v2278
    %v2280 = vrot.slane %v2279, 1
    %v2281 = vadd.f32 %v2279, %v2280
    %v2282 = vsel %vm179, %v1998, 0.0
    %v2283 = vrot.slane %v2282, 4
    %v2284 = vadd.f32 %v2282, %v2283
    %v2285 = vrot.slane %v2284, 2
    %v2286 = vadd.f32 %v2284, %v2285
    %v2287 = vrot.slane %v2286, 1
    %v2288 = vadd.f32 %v2286, %v2287
    %v2289 = vsel %vm179, %v1999, 0.0
    %v2290 = vrot.slane %v2289, 4
    %v2291 = vadd.f32 %v2289, %v2290
    %v2292 = vrot.slane %v2291, 2
    %v2293 = vadd.f32 %v2291, %v2292
    %v2294 = vrot.slane %v2293, 1
    %v2295 = vadd.f32 %v2293, %v2294
    %v2296 = vsel %vm179, %v2000, 0.0
    %v2297 = vrot.slane %v2296, 4
    %v2298 = vadd.f32 %v2296, %v2297
    %v2299 = vrot.slane %v2298, 2
    %v2300 = vadd.f32 %v2298, %v2299
    %v2301 = vrot.slane %v2300, 1
    %v2302 = vadd.f32 %v2300, %v2301
    %v2303 = vsel %vm179, %v2001, 0.0
    %v2304 = vrot.slane %v2303, 4
    %v2305 = vadd.f32 %v2303, %v2304
    %v2306 = vrot.slane %v2305, 2
    %v2307 = vadd.f32 %v2305, %v2306
    %v2308 = vrot.slane %v2307, 1
    %v2309 = vadd.f32 %v2307, %v2308
    %v2310 = vsel %vm179, %v2002, 0.0
    %v2311 = vrot.slane %v2310, 4
    %v2312 = vadd.f32 %v2310, %v2311
    %v2313 = vrot.slane %v2312, 2
    %v2314 = vadd.f32 %v2312, %v2313
    %v2315 = vrot.slane %v2314, 1
    %v2316 = vadd.f32 %v2314, %v2315
    %v2317 = vsel %vm179, %v2003, 0.0
    %v2318 = vrot.slane %v2317, 4
    %v2319 = vadd.f32 %v2317, %v2318
    %v2320 = vrot.slane %v2319, 2
    %v2321 = vadd.f32 %v2319, %v2320
    %v2322 = vrot.slane %v2321, 1
    %v2323 = vadd.f32 %v2321, %v2322
    %v2324 = vsel %vm179, %v2004, 0.0
    %v2325 = vrot.slane %v2324, 4
    %v2326 = vadd.f32 %v2324, %v2325
    %v2327 = vrot.slane %v2326, 2
    %v2328 = vadd.f32 %v2326, %v2327
    %v2329 = vrot.slane %v2328, 1
    %v2330 = vadd.f32 %v2328, %v2329
    %v2331 = vsel %vm179, %v2005, 0.0
    %v2332 = vrot.slane %v2331, 4
    %v2333 = vadd.f32 %v2331, %v2332
    %v2334 = vrot.slane %v2333, 2
    %v2335 = vadd.f32 %v2333, %v2334
    %v2336 = vrot.slane %v2335, 1
    %v2337 = vadd.f32 %v2335, %v2336
    %v2338 = vsel %vm179, %v2006, 0.0
    %v2339 = vrot.slane %v2338, 4
    %v2340 = vadd.f32 %v2338, %v2339
    %v2341 = vrot.slane %v2340, 2
    %v2342 = vadd.f32 %v2340, %v2341
    %v2343 = vrot.slane %v2342, 1
    %v2344 = vadd.f32 %v2342, %v2343
    %v2345 = vsel %vm179, %v2007, 0.0
    %v2346 = vrot.slane %v2345, 4
    %v2347 = vadd.f32 %v2345, %v2346
    %v2348 = vrot.slane %v2347, 2
    %v2349 = vadd.f32 %v2347, %v2348
    %v2350 = vrot.slane %v2349, 1
    %v2351 = vadd.f32 %v2349, %v2350
    %v2352 = vsel %vm179, %v2008, 0.0
    %v2353 = vrot.slane %v2352, 4
    %v2354 = vadd.f32 %v2352, %v2353
    %v2355 = vrot.slane %v2354, 2
    %v2356 = vadd.f32 %v2354, %v2355
    %v2357 = vrot.slane %v2356, 1
    %v2358 = vadd.f32 %v2356, %v2357
    %v2359 = vsel %vm179, %v2009, 0.0
    %v2360 = vrot.slane %v2359, 4
    %v2361 = vadd.f32 %v2359, %v2360
    %v2362 = vrot.slane %v2361, 2
    %v2363 = vadd.f32 %v2361, %v2362
    %v2364 = vrot.slane %v2363, 1
    %v2365 = vadd.f32 %v2363, %v2364
    %v2366 = vsel %vm179, %v2010, 0.0
    %v2367 = vrot.slane %v2366, 4
    %v2368 = vadd.f32 %v2366, %v2367
    %v2369 = vrot.slane %v2368, 2
    %v2370 = vadd.f32 %v2368, %v2369
    %v2371 = vrot.slane %v2370, 1
    %v2372 = vadd.f32 %v2370, %v2371
    %v2373 = vsel %vm179, %v2011, 0.0
    %v2374 = vrot.slane %v2373, 4
    %v2375 = vadd.f32 %v2373, %v2374
    %v2376 = vrot.slane %v2375, 2
    %v2377 = vadd.f32 %v2375, %v2376
    %v2378 = vrot.slane %v2377, 1
    %v2379 = vadd.f32 %v2377, %v2378
    %v2380 = vsel %vm179, %v2012, 0.0
    %v2381 = vrot.slane %v2380, 4
    %v2382 = vadd.f32 %v2380, %v2381
    %v2383 = vrot.slane %v2382, 2
    %v2384 = vadd.f32 %v2382, %v2383
    %v2385 = vrot.slane %v2384, 1
    %v2386 = vadd.f32 %v2384, %v2385
    %v2387 = vsel %vm179, %v2013, 0.0
    %v2388 = vrot.slane %v2387, 4
    %v2389 = vadd.f32 %v2387, %v2388
    %v2390 = vrot.slane %v2389, 2
    %v2391 = vadd.f32 %v2389, %v2390
    %v2392 = vrot.slane %v2391, 1
    %v2393 = vadd.f32 %v2391, %v2392
    %v2394 = vsel %vm179, %v2014, 0.0
    %v2395 = vrot.slane %v2394, 4
    %v2396 = vadd.f32 %v2394, %v2395
    %v2397 = vrot.slane %v2396, 2
    %v2398 = vadd.f32 %v2396, %v2397
    %v2399 = vrot.slane %v2398, 1
    %v2400 = vadd.f32 %v2398, %v2399
    %v2401 = vsel %vm179, %v2015, 0.0
    %v2402 = vrot.slane %v2401, 4
    %v2403 = vadd.f32 %v2401, %v2402
    %v2404 = vrot.slane %v2403, 2
    %v2405 = vadd.f32 %v2403, %v2404
    %v2406 = vrot.slane %v2405, 1
    %v2407 = vadd.f32 %v2405, %v2406
    %v2408 = vsel %vm179, %v2016, 0.0
    %v2409 = vrot.slane %v2408, 4
    %v2410 = vadd.f32 %v2408, %v2409
    %v2411 = vrot.slane %v2410, 2
    %v2412 = vadd.f32 %v2410, %v2411
    %v2413 = vrot.slane %v2412, 1
    %v2414 = vadd.f32 %v2412, %v2413
    %v2415 = vsel %vm179, %v2017, 0.0
    %v2416 = vrot.slane %v2415, 4
    %v2417 = vadd.f32 %v2415, %v2416
    %v2418 = vrot.slane %v2417, 2
    %v2419 = vadd.f32 %v2417, %v2418
    %v2420 = vrot.slane %v2419, 1
    %v2421 = vadd.f32 %v2419, %v2420
    %v2422 = vsel %vm179, %v2018, 0.0
    %v2423 = vrot.slane %v2422, 4
    %v2424 = vadd.f32 %v2422, %v2423
    %v2425 = vrot.slane %v2424, 2
    %v2426 = vadd.f32 %v2424, %v2425
    %v2427 = vrot.slane %v2426, 1
    %v2428 = vadd.f32 %v2426, %v2427
    %v2429 = vsel %vm179, %v2019, 0.0
    %v2430 = vrot.slane %v2429, 4
    %v2431 = vadd.f32 %v2429, %v2430
    %v2432 = vrot.slane %v2431, 2
    %v2433 = vadd.f32 %v2431, %v2432
    %v2434 = vrot.slane %v2433, 1
    %v2435 = vadd.f32 %v2433, %v2434
    %v2436 = vsel %vm179, %v2020, 0.0
    %v2437 = vrot.slane %v2436, 4
    %v2438 = vadd.f32 %v2436, %v2437
    %v2439 = vrot.slane %v2438, 2
    %v2440 = vadd.f32 %v2438, %v2439
    %v2441 = vrot.slane %v2440, 1
    %v2442 = vadd.f32 %v2440, %v2441
    %v2443 = vsel %vm179, %v2021, 0.0
    %v2444 = vrot.slane %v2443, 4
    %v2445 = vadd.f32 %v2443, %v2444
    %v2446 = vrot.slane %v2445, 2
    %v2447 = vadd.f32 %v2445, %v2446
    %v2448 = vrot.slane %v2447, 1
    %v2449 = vadd.f32 %v2447, %v2448
    %v2450 = vsel %vm179, %v2022, 0.0
    %v2451 = vrot.slane %v2450, 4
    %v2452 = vadd.f32 %v2450, %v2451
    %v2453 = vrot.slane %v2452, 2
    %v2454 = vadd.f32 %v2452, %v2453
    %v2455 = vrot.slane %v2454, 1
    %v2456 = vadd.f32 %v2454, %v2455
    %v2457 = vsel %vm179, %v2023, 0.0
    %v2458 = vrot.slane %v2457, 4
    %v2459 = vadd.f32 %v2457, %v2458
    %v2460 = vrot.slane %v2459, 2
    %v2461 = vadd.f32 %v2459, %v2460
    %v2462 = vrot.slane %v2461, 1
    %v2463 = vadd.f32 %v2461, %v2462
    %v2464 = vsel %vm179, %v2024, 0.0
    %v2465 = vrot.slane %v2464, 4
    %v2466 = vadd.f32 %v2464, %v2465
    %v2467 = vrot.slane %v2466, 2
    %v2468 = vadd.f32 %v2466, %v2467
    %v2469 = vrot.slane %v2468, 1
    %v2470 = vadd.f32 %v2468, %v2469
    %v2471 = vsel %vm179, %v2025, 0.0
    %v2472 = vrot.slane %v2471, 4
    %v2473 = vadd.f32 %v2471, %v2472
    %v2474 = vrot.slane %v2473, 2
    %v2475 = vadd.f32 %v2473, %v2474
    %v2476 = vrot.slane %v2475, 1
    %v2477 = vadd.f32 %v2475, %v2476
    %v2478 = vsel %vm179, %v2026, 0.0
    %v2479 = vrot.slane %v2478, 4
    %v2480 = vadd.f32 %v2478, %v2479
    %v2481 = vrot.slane %v2480, 2
    %v2482 = vadd.f32 %v2480, %v2481
    %v2483 = vrot.slane %v2482, 1
    %v2484 = vadd.f32 %v2482, %v2483
    %v2485 = vsel %vm179, %v2027, 0.0
    %v2486 = vrot.slane %v2485, 4
    %v2487 = vadd.f32 %v2485, %v2486
    %v2488 = vrot.slane %v2487, 2
    %v2489 = vadd.f32 %v2487, %v2488
    %v2490 = vrot.slane %v2489, 1
    %v2491 = vadd.f32 %v2489, %v2490
    %v2492 = vsel %vm179, %v2028, 0.0
    %v2493 = vrot.slane %v2492, 4
    %v2494 = vadd.f32 %v2492, %v2493
    %v2495 = vrot.slane %v2494, 2
    %v2496 = vadd.f32 %v2494, %v2495
    %v2497 = vrot.slane %v2496, 1
    %v2498 = vadd.f32 %v2496, %v2497
    %v2499 = vsel %vm179, %v2029, 0.0
    %v2500 = vrot.slane %v2499, 4
    %v2501 = vadd.f32 %v2499, %v2500
    %v2502 = vrot.slane %v2501, 2
    %v2503 = vadd.f32 %v2501, %v2502
    %v2504 = vrot.slane %v2503, 1
    %v2505 = vadd.f32 %v2503, %v2504
    %v2506 = vsel %vm179, %v2030, 0.0
    %v2507 = vrot.slane %v2506, 4
    %v2508 = vadd.f32 %v2506, %v2507
    %v2509 = vrot.slane %v2508, 2
    %v2510 = vadd.f32 %v2508, %v2509
    %v2511 = vrot.slane %v2510, 1
    %v2512 = vadd.f32 %v2510, %v2511
    %v2513 = vsel %vm179, %v2031, 0.0
    %v2514 = vrot.slane %v2513, 4
    %v2515 = vadd.f32 %v2513, %v2514
    %v2516 = vrot.slane %v2515, 2
    %v2517 = vadd.f32 %v2515, %v2516
    %v2518 = vrot.slane %v2517, 1
    %v2519 = vadd.f32 %v2517, %v2518
    %v2520 = vsel %vm179, %v2032, 0.0
    %v2521 = vrot.slane %v2520, 4
    %v2522 = vadd.f32 %v2520, %v2521
    %v2523 = vrot.slane %v2522, 2
    %v2524 = vadd.f32 %v2522, %v2523
    %v2525 = vrot.slane %v2524, 1
    %v2526 = vadd.f32 %v2524, %v2525
    %v2527 = vsel %vm179, %v2033, 0.0
    %v2528 = vrot.slane %v2527, 4
    %v2529 = vadd.f32 %v2527, %v2528
    %v2530 = vrot.slane %v2529, 2
    %v2531 = vadd.f32 %v2529, %v2530
    %v2532 = vrot.slane %v2531, 1
    %v2533 = vadd.f32 %v2531, %v2532
    %v2534 = vsel %vm179, %v2034, 0.0
    %v2535 = vrot.slane %v2534, 4
    %v2536 = vadd.f32 %v2534, %v2535
    %v2537 = vrot.slane %v2536, 2
    %v2538 = vadd.f32 %v2536, %v2537
    %v2539 = vrot.slane %v2538, 1
    %v2540 = vadd.f32 %v2538, %v2539
    %v2541 = vsel %vm179, %v2035, 0.0
    %v2542 = vrot.slane %v2541, 4
    %v2543 = vadd.f32 %v2541, %v2542
    %v2544 = vrot.slane %v2543, 2
    %v2545 = vadd.f32 %v2543, %v2544
    %v2546 = vrot.slane %v2545, 1
    %v2547 = vadd.f32 %v2545, %v2546
    %v2548 = vsel %vm179, %v2036, 0.0
    %v2549 = vrot.slane %v2548, 4
    %v2550 = vadd.f32 %v2548, %v2549
    %v2551 = vrot.slane %v2550, 2
    %v2552 = vadd.f32 %v2550, %v2551
    %v2553 = vrot.slane %v2552, 1
    %v2554 = vadd.f32 %v2552, %v2553
    %v2555 = vsel %vm179, %v2037, 0.0
    %v2556 = vrot.slane %v2555, 4
    %v2557 = vadd.f32 %v2555, %v2556
    %v2558 = vrot.slane %v2557, 2
    %v2559 = vadd.f32 %v2557, %v2558
    %v2560 = vrot.slane %v2559, 1
    %v2561 = vadd.f32 %v2559, %v2560
    %v2562 = vsel %vm179, %v2038, 0.0
    %v2563 = vrot.slane %v2562, 4
    %v2564 = vadd.f32 %v2562, %v2563
    %v2565 = vrot.slane %v2564, 2
    %v2566 = vadd.f32 %v2564, %v2565
    %v2567 = vrot.slane %v2566, 1
    %v2568 = vadd.f32 %v2566, %v2567
    %v2569 = vsel %vm179, %v2039, 0.0
    %v2570 = vrot.slane %v2569, 4
    %v2571 = vadd.f32 %v2569, %v2570
    %v2572 = vrot.slane %v2571, 2
    %v2573 = vadd.f32 %v2571, %v2572
    %v2574 = vrot.slane %v2573, 1
    %v2575 = vadd.f32 %v2573, %v2574
    %v2576 = vsel %vm179, %v2040, 0.0
    %v2577 = vrot.slane %v2576, 4
    %v2578 = vadd.f32 %v2576, %v2577
    %v2579 = vrot.slane %v2578, 2
    %v2580 = vadd.f32 %v2578, %v2579
    %v2581 = vrot.slane %v2580, 1
    %v2582 = vadd.f32 %v2580, %v2581
    %v2583 = vsel %vm179, %v2041, 0.0
    %v2584 = vrot.slane %v2583, 4
    %v2585 = vadd.f32 %v2583, %v2584
    %v2586 = vrot.slane %v2585, 2
    %v2587 = vadd.f32 %v2585, %v2586
    %v2588 = vrot.slane %v2587, 1
    %v2589 = vadd.f32 %v2587, %v2588
    %v2590 = vsel %vm179, %v2042, 0.0
    %v2591 = vrot.slane %v2590, 4
    %v2592 = vadd.f32 %v2590, %v2591
    %v2593 = vrot.slane %v2592, 2
    %v2594 = vadd.f32 %v2592, %v2593
    %v2595 = vrot.slane %v2594, 1
    %v2596 = vadd.f32 %v2594, %v2595
    %v2597 = vsel %vm179, %v2043, 0.0
    %v2598 = vrot.slane %v2597, 4
    %v2599 = vadd.f32 %v2597, %v2598
    %v2600 = vrot.slane %v2599, 2
    %v2601 = vadd.f32 %v2599, %v2600
    %v2602 = vrot.slane %v2601, 1
    %v2603 = vadd.f32 %v2601, %v2602
    %v2604 = vsel %vm179, %v2044, 0.0
    %v2605 = vrot.slane %v2604, 4
    %v2606 = vadd.f32 %v2604, %v2605
    %v2607 = vrot.slane %v2606, 2
    %v2608 = vadd.f32 %v2606, %v2607
    %v2609 = vrot.slane %v2608, 1
    %v2610 = vadd.f32 %v2608, %v2609
    %v2611 = vsel %vm179, %v2045, 0.0
    %v2612 = vrot.slane %v2611, 4
    %v2613 = vadd.f32 %v2611, %v2612
    %v2614 = vrot.slane %v2613, 2
    %v2615 = vadd.f32 %v2613, %v2614
    %v2616 = vrot.slane %v2615, 1
    %v2617 = vadd.f32 %v2615, %v2616
    %v2618 = vsel %vm179, %v2046, 0.0
    %v2619 = vrot.slane %v2618, 4
    %v2620 = vadd.f32 %v2618, %v2619
    %v2621 = vrot.slane %v2620, 2
    %v2622 = vadd.f32 %v2620, %v2621
    %v2623 = vrot.slane %v2622, 1
    %v2624 = vadd.f32 %v2622, %v2623
    %v2625 = vsel %vm179, %v2047, 0.0
    %v2626 = vrot.slane %v2625, 4
    %v2627 = vadd.f32 %v2625, %v2626
    %v2628 = vrot.slane %v2627, 2
    %v2629 = vadd.f32 %v2627, %v2628
    %v2630 = vrot.slane %v2629, 1
    %v2631 = vadd.f32 %v2629, %v2630
    %v2632 = vsel %vm179, %v2048, 0.0
    %v2633 = vrot.slane %v2632, 4
    %v2634 = vadd.f32 %v2632, %v2633
    %v2635 = vrot.slane %v2634, 2
    %v2636 = vadd.f32 %v2634, %v2635
    %v2637 = vrot.slane %v2636, 1
    %v2638 = vadd.f32 %v2636, %v2637
    %v2639 = vsel %vm179, %v2049, 0.0
    %v2640 = vrot.slane %v2639, 4
    %v2641 = vadd.f32 %v2639, %v2640
    %v2642 = vrot.slane %v2641, 2
    %v2643 = vadd.f32 %v2641, %v2642
    %v2644 = vrot.slane %v2643, 1
    %v2645 = vadd.f32 %v2643, %v2644
    %v2646 = vsel %vm179, %v2050, 0.0
    %v2647 = vrot.slane %v2646, 4
    %v2648 = vadd.f32 %v2646, %v2647
    %v2649 = vrot.slane %v2648, 2
    %v2650 = vadd.f32 %v2648, %v2649
    %v2651 = vrot.slane %v2650, 1
    %v2652 = vadd.f32 %v2650, %v2651
    %v2653 = vsel %vm179, %v2051, 0.0
    %v2654 = vrot.slane %v2653, 4
    %v2655 = vadd.f32 %v2653, %v2654
    %v2656 = vrot.slane %v2655, 2
    %v2657 = vadd.f32 %v2655, %v2656
    %v2658 = vrot.slane %v2657, 1
    %v2659 = vadd.f32 %v2657, %v2658
    %v2660 = vsel %vm179, %v2052, 0.0
    %v2661 = vrot.slane %v2660, 4
    %v2662 = vadd.f32 %v2660, %v2661
    %v2663 = vrot.slane %v2662, 2
    %v2664 = vadd.f32 %v2662, %v2663
    %v2665 = vrot.slane %v2664, 1
    %v2666 = vadd.f32 %v2664, %v2665
    %v2667 = vsel %vm179, %v2053, 0.0
    %v2668 = vrot.slane %v2667, 4
    %v2669 = vadd.f32 %v2667, %v2668
    %v2670 = vrot.slane %v2669, 2
    %v2671 = vadd.f32 %v2669, %v2670
    %v2672 = vrot.slane %v2671, 1
    %v2673 = vadd.f32 %v2671, %v2672
    %v2674 = vsel %vm179, %v2054, 0.0
    %v2675 = vrot.slane %v2674, 4
    %v2676 = vadd.f32 %v2674, %v2675
    %v2677 = vrot.slane %v2676, 2
    %v2678 = vadd.f32 %v2676, %v2677
    %v2679 = vrot.slane %v2678, 1
    %v2680 = vadd.f32 %v2678, %v2679
    %v2681 = vsel %vm179, %v2055, 0.0
    %v2682 = vrot.slane %v2681, 4
    %v2683 = vadd.f32 %v2681, %v2682
    %v2684 = vrot.slane %v2683, 2
    %v2685 = vadd.f32 %v2683, %v2684
    %v2686 = vrot.slane %v2685, 1
    %v2687 = vadd.f32 %v2685, %v2686
    %v2688 = vsel %vm179, %v2056, 0.0
    %v2689 = vrot.slane %v2688, 4
    %v2690 = vadd.f32 %v2688, %v2689
    %v2691 = vrot.slane %v2690, 2
    %v2692 = vadd.f32 %v2690, %v2691
    %v2693 = vrot.slane %v2692, 1
    %v2694 = vadd.f32 %v2692, %v2693
    %v2695 = vsel %vm179, %v2057, 0.0
    %v2696 = vrot.slane %v2695, 4
    %v2697 = vadd.f32 %v2695, %v2696
    %v2698 = vrot.slane %v2697, 2
    %v2699 = vadd.f32 %v2697, %v2698
    %v2700 = vrot.slane %v2699, 1
    %v2701 = vadd.f32 %v2699, %v2700
    %v2702 = vsel %vm179, %v2058, 0.0
    %v2703 = vrot.slane %v2702, 4
    %v2704 = vadd.f32 %v2702, %v2703
    %v2705 = vrot.slane %v2704, 2
    %v2706 = vadd.f32 %v2704, %v2705
    %v2707 = vrot.slane %v2706, 1
    %v2708 = vadd.f32 %v2706, %v2707
    %v2709 = vsel %vm179, %v2059, 0.0
    %v2710 = vrot.slane %v2709, 4
    %v2711 = vadd.f32 %v2709, %v2710
    %v2712 = vrot.slane %v2711, 2
    %v2713 = vadd.f32 %v2711, %v2712
    %v2714 = vrot.slane %v2713, 1
    %v2715 = vadd.f32 %v2713, %v2714
    %v2716 = vsel %vm179, %v2060, 0.0
    %v2717 = vrot.slane %v2716, 4
    %v2718 = vadd.f32 %v2716, %v2717
    %v2719 = vrot.slane %v2718, 2
    %v2720 = vadd.f32 %v2718, %v2719
    %v2721 = vrot.slane %v2720, 1
    %v2722 = vadd.f32 %v2720, %v2721
    %v2723 = vsel %vm179, %v2061, 0.0
    %v2724 = vrot.slane %v2723, 4
    %v2725 = vadd.f32 %v2723, %v2724
    %v2726 = vrot.slane %v2725, 2
    %v2727 = vadd.f32 %v2725, %v2726
    %v2728 = vrot.slane %v2727, 1
    %v2729 = vadd.f32 %v2727, %v2728
    %v2730 = vsel %vm179, %v2062, 0.0
    %v2731 = vrot.slane %v2730, 4
    %v2732 = vadd.f32 %v2730, %v2731
    %v2733 = vrot.slane %v2732, 2
    %v2734 = vadd.f32 %v2732, %v2733
    %v2735 = vrot.slane %v2734, 1
    %v2736 = vadd.f32 %v2734, %v2735
    %v2737 = vsel %vm179, %v2063, 0.0
    %v2738 = vrot.slane %v2737, 4
    %v2739 = vadd.f32 %v2737, %v2738
    %v2740 = vrot.slane %v2739, 2
    %v2741 = vadd.f32 %v2739, %v2740
    %v2742 = vrot.slane %v2741, 1
    %v2743 = vadd.f32 %v2741, %v2742
    %v2744 = vsel %vm179, %v2064, 0.0
    %v2745 = vrot.slane %v2744, 4
    %v2746 = vadd.f32 %v2744, %v2745
    %v2747 = vrot.slane %v2746, 2
    %v2748 = vadd.f32 %v2746, %v2747
    %v2749 = vrot.slane %v2748, 1
    %v2750 = vadd.f32 %v2748, %v2749
    %v2751 = vsel %vm179, %v2065, 0.0
    %v2752 = vrot.slane %v2751, 4
    %v2753 = vadd.f32 %v2751, %v2752
    %v2754 = vrot.slane %v2753, 2
    %v2755 = vadd.f32 %v2753, %v2754
    %v2756 = vrot.slane %v2755, 1
    %v2757 = vadd.f32 %v2755, %v2756
    %v2758 = vsel %vm179, %v2066, 0.0
    %v2759 = vrot.slane %v2758, 4
    %v2760 = vadd.f32 %v2758, %v2759
    %v2761 = vrot.slane %v2760, 2
    %v2762 = vadd.f32 %v2760, %v2761
    %v2763 = vrot.slane %v2762, 1
    %v2764 = vadd.f32 %v2762, %v2763
    %v2765 = vsel %vm179, %v2067, 0.0
    %v2766 = vrot.slane %v2765, 4
    %v2767 = vadd.f32 %v2765, %v2766
    %v2768 = vrot.slane %v2767, 2
    %v2769 = vadd.f32 %v2767, %v2768
    %v2770 = vrot.slane %v2769, 1
    %v2771 = vadd.f32 %v2769, %v2770
    %v2772 = vsel %vm179, %v2068, 0.0
    %v2773 = vrot.slane %v2772, 4
    %v2774 = vadd.f32 %v2772, %v2773
    %v2775 = vrot.slane %v2774, 2
    %v2776 = vadd.f32 %v2774, %v2775
    %v2777 = vrot.slane %v2776, 1
    %v2778 = vadd.f32 %v2776, %v2777
    %v2779 = vsel %vm179, %v2069, 0.0
    %v2780 = vrot.slane %v2779, 4
    %v2781 = vadd.f32 %v2779, %v2780
    %v2782 = vrot.slane %v2781, 2
    %v2783 = vadd.f32 %v2781, %v2782
    %v2784 = vrot.slane %v2783, 1
    %v2785 = vadd.f32 %v2783, %v2784
    %v2786 = vsel %vm179, %v2070, 0.0
    %v2787 = vrot.slane %v2786, 4
    %v2788 = vadd.f32 %v2786, %v2787
    %v2789 = vrot.slane %v2788, 2
    %v2790 = vadd.f32 %v2788, %v2789
    %v2791 = vrot.slane %v2790, 1
    %v2792 = vadd.f32 %v2790, %v2791
    %v2793 = vsel %vm179, %v2071, 0.0
    %v2794 = vrot.slane %v2793, 4
    %v2795 = vadd.f32 %v2793, %v2794
    %v2796 = vrot.slane %v2795, 2
    %v2797 = vadd.f32 %v2795, %v2796
    %v2798 = vrot.slane %v2797, 1
    %v2799 = vadd.f32 %v2797, %v2798
    %v2800 = vsel %vm179, %v2072, 0.0
    %v2801 = vrot.slane %v2800, 4
    %v2802 = vadd.f32 %v2800, %v2801
    %v2803 = vrot.slane %v2802, 2
    %v2804 = vadd.f32 %v2802, %v2803
    %v2805 = vrot.slane %v2804, 1
    %v2806 = vadd.f32 %v2804, %v2805
    %v2807 = vsel %vm179, %v2073, 0.0
    %v2808 = vrot.slane %v2807, 4
    %v2809 = vadd.f32 %v2807, %v2808
    %v2810 = vrot.slane %v2809, 2
    %v2811 = vadd.f32 %v2809, %v2810
    %v2812 = vrot.slane %v2811, 1
    %v2813 = vadd.f32 %v2811, %v2812
    %v2814 = vsel %vm179, %v2074, 0.0
    %v2815 = vrot.slane %v2814, 4
    %v2816 = vadd.f32 %v2814, %v2815
    %v2817 = vrot.slane %v2816, 2
    %v2818 = vadd.f32 %v2816, %v2817
    %v2819 = vrot.slane %v2818, 1
    %v2820 = vadd.f32 %v2818, %v2819
    %v2821 = vsel %vm179, %v2075, 0.0
    %v2822 = vrot.slane %v2821, 4
    %v2823 = vadd.f32 %v2821, %v2822
    %v2824 = vrot.slane %v2823, 2
    %v2825 = vadd.f32 %v2823, %v2824
    %v2826 = vrot.slane %v2825, 1
    %v2827 = vadd.f32 %v2825, %v2826
    %v2828 = vsel %vm179, %v2076, 0.0
    %v2829 = vrot.slane %v2828, 4
    %v2830 = vadd.f32 %v2828, %v2829
    %v2831 = vrot.slane %v2830, 2
    %v2832 = vadd.f32 %v2830, %v2831
    %v2833 = vrot.slane %v2832, 1
    %v2834 = vadd.f32 %v2832, %v2833
    %v2835 = vsel %vm179, %v2077, 0.0
    %v2836 = vrot.slane %v2835, 4
    %v2837 = vadd.f32 %v2835, %v2836
    %v2838 = vrot.slane %v2837, 2
    %v2839 = vadd.f32 %v2837, %v2838
    %v2840 = vrot.slane %v2839, 1
    %v2841 = vadd.f32 %v2839, %v2840
    %v2842 = vsel %vm179, %v2078, 0.0
    %v2843 = vrot.slane %v2842, 4
    %v2844 = vadd.f32 %v2842, %v2843
    %v2845 = vrot.slane %v2844, 2
    %v2846 = vadd.f32 %v2844, %v2845
    %v2847 = vrot.slane %v2846, 1
    %v2848 = vadd.f32 %v2846, %v2847
    %v2849 = vsel %vm179, %v2079, 0.0
    %v2850 = vrot.slane %v2849, 4
    %v2851 = vadd.f32 %v2849, %v2850
    %v2852 = vrot.slane %v2851, 2
    %v2853 = vadd.f32 %v2851, %v2852
    %v2854 = vrot.slane %v2853, 1
    %v2855 = vadd.f32 %v2853, %v2854
    %v2856 = vsel %vm179, %v2080, 0.0
    %v2857 = vrot.slane %v2856, 4
    %v2858 = vadd.f32 %v2856, %v2857
    %v2859 = vrot.slane %v2858, 2
    %v2860 = vadd.f32 %v2858, %v2859
    %v2861 = vrot.slane %v2860, 1
    %v2862 = vadd.f32 %v2860, %v2861
    %v2863 = vsel %vm179, %v2081, 0.0
    %v2864 = vrot.slane %v2863, 4
    %v2865 = vadd.f32 %v2863, %v2864
    %v2866 = vrot.slane %v2865, 2
    %v2867 = vadd.f32 %v2865, %v2866
    %v2868 = vrot.slane %v2867, 1
    %v2869 = vadd.f32 %v2867, %v2868
    %v2870 = vsel %vm179, %v2082, 0.0
    %v2871 = vrot.slane %v2870, 4
    %v2872 = vadd.f32 %v2870, %v2871
    %v2873 = vrot.slane %v2872, 2
    %v2874 = vadd.f32 %v2872, %v2873
    %v2875 = vrot.slane %v2874, 1
    %v2876 = vadd.f32 %v2874, %v2875
    %v2877 = vsel %vm179, %v2083, 0.0
    %v2878 = vrot.slane %v2877, 4
    %v2879 = vadd.f32 %v2877, %v2878
    %v2880 = vrot.slane %v2879, 2
    %v2881 = vadd.f32 %v2879, %v2880
    %v2882 = vrot.slane %v2881, 1
    %v2883 = vadd.f32 %v2881, %v2882
    %v2884 = vsel %vm179, %v2084, 0.0
    %v2885 = vrot.slane %v2884, 4
    %v2886 = vadd.f32 %v2884, %v2885
    %v2887 = vrot.slane %v2886, 2
    %v2888 = vadd.f32 %v2886, %v2887
    %v2889 = vrot.slane %v2888, 1
    %v2890 = vadd.f32 %v2888, %v2889
    %v2891 = vsel %vm179, %v2085, 0.0
    %v2892 = vrot.slane %v2891, 4
    %v2893 = vadd.f32 %v2891, %v2892
    %v2894 = vrot.slane %v2893, 2
    %v2895 = vadd.f32 %v2893, %v2894
    %v2896 = vrot.slane %v2895, 1
    %v2897 = vadd.f32 %v2895, %v2896
    %v2898 = vsel %vm179, %v2086, 0.0
    %v2899 = vrot.slane %v2898, 4
    %v2900 = vadd.f32 %v2898, %v2899
    %v2901 = vrot.slane %v2900, 2
    %v2902 = vadd.f32 %v2900, %v2901
    %v2903 = vrot.slane %v2902, 1
    %v2904 = vadd.f32 %v2902, %v2903
    %v2905 = vsel %vm179, %v2087, 0.0
    %v2906 = vrot.slane %v2905, 4
    %v2907 = vadd.f32 %v2905, %v2906
    %v2908 = vrot.slane %v2907, 2
    %v2909 = vadd.f32 %v2907, %v2908
    %v2910 = vrot.slane %v2909, 1
    %v2911 = vadd.f32 %v2909, %v2910
    %v2912 = vsel %vm179, %v2088, 0.0
    %v2913 = vrot.slane %v2912, 4
    %v2914 = vadd.f32 %v2912, %v2913
    %v2915 = vrot.slane %v2914, 2
    %v2916 = vadd.f32 %v2914, %v2915
    %v2917 = vrot.slane %v2916, 1
    %v2918 = vadd.f32 %v2916, %v2917
    %v2919 = vsel %vm179, %v2089, 0.0
    %v2920 = vrot.slane %v2919, 4
    %v2921 = vadd.f32 %v2919, %v2920
    %v2922 = vrot.slane %v2921, 2
    %v2923 = vadd.f32 %v2921, %v2922
    %v2924 = vrot.slane %v2923, 1
    %v2925 = vadd.f32 %v2923, %v2924
    %v2926 = vsel %vm179, %v2090, 0.0
    %v2927 = vrot.slane %v2926, 4
    %v2928 = vadd.f32 %v2926, %v2927
    %v2929 = vrot.slane %v2928, 2
    %v2930 = vadd.f32 %v2928, %v2929
    %v2931 = vrot.slane %v2930, 1
    %v2932 = vadd.f32 %v2930, %v2931
    %v2933 = vsel %vm179, %v2091, 0.0
    %v2934 = vrot.slane %v2933, 4
    %v2935 = vadd.f32 %v2933, %v2934
    %v2936 = vrot.slane %v2935, 2
    %v2937 = vadd.f32 %v2935, %v2936
    %v2938 = vrot.slane %v2937, 1
    %v2939 = vadd.f32 %v2937, %v2938
    %v2940 = vsel %vm179, %v2092, 0.0
    %v2941 = vrot.slane %v2940, 4
    %v2942 = vadd.f32 %v2940, %v2941
    %v2943 = vrot.slane %v2942, 2
    %v2944 = vadd.f32 %v2942, %v2943
    %v2945 = vrot.slane %v2944, 1
    %v2946 = vadd.f32 %v2944, %v2945
    %v2947 = vsel %vm179, %v2093, 0.0
    %v2948 = vrot.slane %v2947, 4
    %v2949 = vadd.f32 %v2947, %v2948
    %v2950 = vrot.slane %v2949, 2
    %v2951 = vadd.f32 %v2949, %v2950
    %v2952 = vrot.slane %v2951, 1
    %v2953 = vadd.f32 %v2951, %v2952
    %v2954 = vsel %vm179, %v2094, 0.0
    %v2955 = vrot.slane %v2954, 4
    %v2956 = vadd.f32 %v2954, %v2955
    %v2957 = vrot.slane %v2956, 2
    %v2958 = vadd.f32 %v2956, %v2957
    %v2959 = vrot.slane %v2958, 1
    %v2960 = vadd.f32 %v2958, %v2959
    %v2961 = vsel %vm179, %v2095, 0.0
    %v2962 = vrot.slane %v2961, 4
    %v2963 = vadd.f32 %v2961, %v2962
    %v2964 = vrot.slane %v2963, 2
    %v2965 = vadd.f32 %v2963, %v2964
    %v2966 = vrot.slane %v2965, 1
    %v2967 = vadd.f32 %v2965, %v2966
    %v2968 = vsel %vm179, %v2096, 0.0
    %v2969 = vrot.slane %v2968, 4
    %v2970 = vadd.f32 %v2968, %v2969
    %v2971 = vrot.slane %v2970, 2
    %v2972 = vadd.f32 %v2970, %v2971
    %v2973 = vrot.slane %v2972, 1
    %v2974 = vadd.f32 %v2972, %v2973
    %v2975 = vsel %vm179, %v2097, 0.0
    %v2976 = vrot.slane %v2975, 4
    %v2977 = vadd.f32 %v2975, %v2976
    %v2978 = vrot.slane %v2977, 2
    %v2979 = vadd.f32 %v2977, %v2978
    %v2980 = vrot.slane %v2979, 1
    %v2981 = vadd.f32 %v2979, %v2980
    %v2982 = vsel %vm179, %v2098, 0.0
    %v2983 = vrot.slane %v2982, 4
    %v2984 = vadd.f32 %v2982, %v2983
    %v2985 = vrot.slane %v2984, 2
    %v2986 = vadd.f32 %v2984, %v2985
    %v2987 = vrot.slane %v2986, 1
    %v2988 = vadd.f32 %v2986, %v2987
    %v2989 = vsel %vm179, %v2099, 0.0
    %v2990 = vrot.slane %v2989, 4
    %v2991 = vadd.f32 %v2989, %v2990
    %v2992 = vrot.slane %v2991, 2
    %v2993 = vadd.f32 %v2991, %v2992
    %v2994 = vrot.slane %v2993, 1
    %v2995 = vadd.f32 %v2993, %v2994
    %v3012 = vrot.slane %v147, 1
    %v3013 = vrot.slane %v147, 2
    %v3014 = vrot.slane %v147, 3
    %v3015 = vrot.slane %v147, 4
    %v3016 = vrot.slane %v147, 5
    %v3017 = vrot.slane %v147, 6
    %v3018 = vrot.slane %v147, 7
    %v3019 = vrot.slane %v148, 1
    %v3020 = vrot.slane %v148, 2
    %v3021 = vrot.slane %v148, 3
    %v3022 = vrot.slane %v148, 4
    %v3023 = vrot.slane %v148, 5
    %v3024 = vrot.slane %v148, 6
    %v3025 = vrot.slane %v148, 7
    %v3026 = vrot.slane %v149, 1
    %v3027 = vrot.slane %v149, 2
    %v3028 = vrot.slane %v149, 3
    %v3029 = vrot.slane %v149, 4
    %v3030 = vrot.slane %v149, 5
    %v3031 = vrot.slane %v149, 6
    %v3032 = vrot.slane %v149, 7
    %v3033 = vrot.slane %v150, 1
    %v3034 = vrot.slane %v150, 2
    %v3035 = vrot.slane %v150, 3
    %v3036 = vrot.slane %v150, 4
    %v3037 = vrot.slane %v150, 5
    %v3038 = vrot.slane %v150, 6
    %v3039 = vrot.slane %v150, 7
    %v3040 = vrot.slane %v151, 1
    %v3041 = vrot.slane %v151, 2
    %v3042 = vrot.slane %v151, 3
    %v3043 = vrot.slane %v151, 4
    %v3044 = vrot.slane %v151, 5
    %v3045 = vrot.slane %v151, 6
    %v3046 = vrot.slane %v151, 7
    %v3047 = vrot.slane %v152, 1
    %v3048 = vrot.slane %v152, 2
    %v3049 = vrot.slane %v152, 3
    %v3050 = vrot.slane %v152, 4
    %v3051 = vrot.slane %v152, 5
    %v3052 = vrot.slane %v152, 6
    %v3053 = vrot.slane %v152, 7
    %v3054 = vrot.slane %v153, 1
    %v3055 = vrot.slane %v153, 2
    %v3056 = vrot.slane %v153, 3
    %v3057 = vrot.slane %v153, 4
    %v3058 = vrot.slane %v153, 5
    %v3059 = vrot.slane %v153, 6
    %v3060 = vrot.slane %v153, 7
    %v3061 = vrot.slane %v154, 1
    %v3062 = vrot.slane %v154, 2
    %v3063 = vrot.slane %v154, 3
    %v3064 = vrot.slane %v154, 4
    %v3065 = vrot.slane %v154, 5
    %v3066 = vrot.slane %v154, 6
    %v3067 = vrot.slane %v154, 7
    %v3068 = vrot.slane %v155, 1
    %v3069 = vrot.slane %v155, 2
    %v3070 = vrot.slane %v155, 3
    %v3071 = vrot.slane %v155, 4
    %v3072 = vrot.slane %v155, 5
    %v3073 = vrot.slane %v155, 6
    %v3074 = vrot.slane %v155, 7
    %v3075 = vrot.slane %v156, 1
    %v3076 = vrot.slane %v156, 2
    %v3077 = vrot.slane %v156, 3
    %v3078 = vrot.slane %v156, 4
    %v3079 = vrot.slane %v156, 5
    %v3080 = vrot.slane %v156, 6
    %v3081 = vrot.slane %v156, 7
    %v3082 = vrot.slane %v157, 1
    %v3083 = vrot.slane %v157, 2
    %v3084 = vrot.slane %v157, 3
    %v3085 = vrot.slane %v157, 4
    %v3086 = vrot.slane %v157, 5
    %v3087 = vrot.slane %v157, 6
    %v3088 = vrot.slane %v157, 7
    %v3089 = vrot.slane %v158, 1
    %v3090 = vrot.slane %v158, 2
    %v3091 = vrot.slane %v158, 3
    %v3092 = vrot.slane %v158, 4
    %v3093 = vrot.slane %v158, 5
    %v3094 = vrot.slane %v158, 6
    %v3095 = vrot.slane %v158, 7
    %v3096 = vrot.slane %v159, 1
    %v3097 = vrot.slane %v159, 2
    %v3098 = vrot.slane %v159, 3
    %v3099 = vrot.slane %v159, 4
    %v3100 = vrot.slane %v159, 5
    %v3101 = vrot.slane %v159, 6
    %v3102 = vrot.slane %v159, 7
    %v3103 = vrot.slane %v160, 1
    %v3104 = vrot.slane %v160, 2
    %v3105 = vrot.slane %v160, 3
    %v3106 = vrot.slane %v160, 4
    %v3107 = vrot.slane %v160, 5
    %v3108 = vrot.slane %v160, 6
    %v3109 = vrot.slane %v160, 7
    %v3110 = vrot.slane %v161, 1
    %v3111 = vrot.slane %v161, 2
    %v3112 = vrot.slane %v161, 3
    %v3113 = vrot.slane %v161, 4
    %v3114 = vrot.slane %v161, 5
    %v3115 = vrot.slane %v161, 6
    %v3116 = vrot.slane %v161, 7
    %v3117 = vrot.slane %v162, 1
    %v3118 = vrot.slane %v162, 2
    %v3119 = vrot.slane %v162, 3
    %v3120 = vrot.slane %v162, 4
    %v3121 = vrot.slane %v162, 5
    %v3122 = vrot.slane %v162, 6
    %v3123 = vrot.slane %v162, 7
    %v3252 = vmul.f32 %v186, %v147
    %v3253 = vmul.f32 %v193, %v3012
    %v3254 = vmul.f32 %v200, %v3013
    %v3255 = vmul.f32 %v207, %v3014
    %v3256 = vmul.f32 %v214, %v3015
    %v3257 = vmul.f32 %v221, %v3016
    %v3258 = vmul.f32 %v228, %v3017
    %v3259 = vmul.f32 %v235, %v3018
    %v3260 = vmul.f32 %v242, %v148
    %v3261 = vmul.f32 %v249, %v3019
    %v3262 = vmul.f32 %v256, %v3020
    %v3263 = vmul.f32 %v263, %v3021
    %v3264 = vmul.f32 %v270, %v3022
    %v3265 = vmul.f32 %v277, %v3023
    %v3266 = vmul.f32 %v284, %v3024
    %v3267 = vmul.f32 %v291, %v3025
    %v3268 = vmul.f32 %v298, %v149
    %v3269 = vmul.f32 %v305, %v3026
    %v3270 = vmul.f32 %v312, %v3027
    %v3271 = vmul.f32 %v319, %v3028
    %v3272 = vmul.f32 %v326, %v3029
    %v3273 = vmul.f32 %v333, %v3030
    %v3274 = vmul.f32 %v340, %v3031
    %v3275 = vmul.f32 %v347, %v3032
    %v3276 = vmul.f32 %v354, %v150
    %v3277 = vmul.f32 %v361, %v3033
    %v3278 = vmul.f32 %v368, %v3034
    %v3279 = vmul.f32 %v375, %v3035
    %v3280 = vmul.f32 %v382, %v3036
    %v3281 = vmul.f32 %v389, %v3037
    %v3282 = vmul.f32 %v396, %v3038
    %v3283 = vmul.f32 %v403, %v3039
    %v3284 = vmul.f32 %v410, %v151
    %v3285 = vmul.f32 %v417, %v3040
    %v3286 = vmul.f32 %v424, %v3041
    %v3287 = vmul.f32 %v431, %v3042
    %v3288 = vmul.f32 %v438, %v3043
    %v3289 = vmul.f32 %v445, %v3044
    %v3290 = vmul.f32 %v452, %v3045
    %v3291 = vmul.f32 %v459, %v3046
    %v3292 = vmul.f32 %v466, %v152
    %v3293 = vmul.f32 %v473, %v3047
    %v3294 = vmul.f32 %v480, %v3048
    %v3295 = vmul.f32 %v487, %v3049
    %v3296 = vmul.f32 %v494, %v3050
    %v3297 = vmul.f32 %v501, %v3051
    %v3298 = vmul.f32 %v508, %v3052
    %v3299 = vmul.f32 %v515, %v3053
    %v3300 = vmul.f32 %v522, %v153
    %v3301 = vmul.f32 %v529, %v3054
    %v3302 = vmul.f32 %v536, %v3055
    %v3303 = vmul.f32 %v543, %v3056
    %v3304 = vmul.f32 %v550, %v3057
    %v3305 = vmul.f32 %v557, %v3058
    %v3306 = vmul.f32 %v564, %v3059
    %v3307 = vmul.f32 %v571, %v3060
    %v3308 = vmul.f32 %v578, %v154
    %v3309 = vmul.f32 %v585, %v3061
    %v3310 = vmul.f32 %v592, %v3062
    %v3311 = vmul.f32 %v599, %v3063
    %v3312 = vmul.f32 %v606, %v3064
    %v3313 = vmul.f32 %v613, %v3065
    %v3314 = vmul.f32 %v620, %v3066
    %v3315 = vmul.f32 %v627, %v3067
    %v3316 = vmul.f32 %v634, %v155
    %v3317 = vmul.f32 %v641, %v3068
    %v3318 = vmul.f32 %v648, %v3069
    %v3319 = vmul.f32 %v655, %v3070
    %v3320 = vmul.f32 %v662, %v3071
    %v3321 = vmul.f32 %v669, %v3072
    %v3322 = vmul.f32 %v676, %v3073
    %v3323 = vmul.f32 %v683, %v3074
    %v3324 = vmul.f32 %v690, %v156
    %v3325 = vmul.f32 %v697, %v3075
    %v3326 = vmul.f32 %v704, %v3076
    %v3327 = vmul.f32 %v711, %v3077
    %v3328 = vmul.f32 %v718, %v3078
    %v3329 = vmul.f32 %v725, %v3079
    %v3330 = vmul.f32 %v732, %v3080
    %v3331 = vmul.f32 %v739, %v3081
    %v3332 = vmul.f32 %v746, %v157
    %v3333 = vmul.f32 %v753, %v3082
    %v3334 = vmul.f32 %v760, %v3083
    %v3335 = vmul.f32 %v767, %v3084
    %v3336 = vmul.f32 %v774, %v3085
    %v3337 = vmul.f32 %v781, %v3086
    %v3338 = vmul.f32 %v788, %v3087
    %v3339 = vmul.f32 %v795, %v3088
    %v3340 = vmul.f32 %v802, %v158
    %v3341 = vmul.f32 %v809, %v3089
    %v3342 = vmul.f32 %v816, %v3090
    %v3343 = vmul.f32 %v823, %v3091
    %v3344 = vmul.f32 %v830, %v3092
    %v3345 = vmul.f32 %v837, %v3093
    %v3346 = vmul.f32 %v844, %v3094
    %v3347 = vmul.f32 %v851, %v3095
    %v3348 = vmul.f32 %v858, %v159
    %v3349 = vmul.f32 %v865, %v3096
    %v3350 = vmul.f32 %v872, %v3097
    %v3351 = vmul.f32 %v879, %v3098
    %v3352 = vmul.f32 %v886, %v3099
    %v3353 = vmul.f32 %v893, %v3100
    %v3354 = vmul.f32 %v900, %v3101
    %v3355 = vmul.f32 %v907, %v3102
    %v3356 = vmul.f32 %v914, %v160
    %v3357 = vmul.f32 %v921, %v3103
    %v3358 = vmul.f32 %v928, %v3104
    %v3359 = vmul.f32 %v935, %v3105
    %v3360 = vmul.f32 %v942, %v3106
    %v3361 = vmul.f32 %v949, %v3107
    %v3362 = vmul.f32 %v956, %v3108
    %v3363 = vmul.f32 %v963, %v3109
    %v3364 = vmul.f32 %v970, %v161
    %v3365 = vmul.f32 %v977, %v3110
    %v3366 = vmul.f32 %v984, %v3111
    %v3367 = vmul.f32 %v991, %v3112
    %v3368 = vmul.f32 %v998, %v3113
    %v3369 = vmul.f32 %v1005, %v3114
    %v3370 = vmul.f32 %v1012, %v3115
    %v3371 = vmul.f32 %v1019, %v3116
    %v3372 = vmul.f32 %v1026, %v162
    %v3373 = vmul.f32 %v1033, %v3117
    %v3374 = vmul.f32 %v1040, %v3118
    %v3375 = vmul.f32 %v1047, %v3119
    %v3376 = vmul.f32 %v1054, %v3120
    %v3377 = vmul.f32 %v1061, %v3121
    %v3378 = vmul.f32 %v1068, %v3122
    %v3379 = vmul.f32 %v1075, %v3123
    %v3380 = vmul.f32 %v3252, %v2106
    %v3381 = vmul.f32 %v3253, %v2113
    %v3382 = vmul.f32 %v3254, %v2120
    %v3383 = vmul.f32 %v3255, %v2127
    %v3384 = vmul.f32 %v3256, %v2134
    %v3385 = vmul.f32 %v3257, %v2141
    %v3386 = vmul.f32 %v3258, %v2148
    %v3387 = vmul.f32 %v3259, %v2155
    %v3388 = vmul.f32 %v3260, %v2162
    %v3389 = vmul.f32 %v3261, %v2169
    %v3390 = vmul.f32 %v3262, %v2176
    %v3391 = vmul.f32 %v3263, %v2183
    %v3392 = vmul.f32 %v3264, %v2190
    %v3393 = vmul.f32 %v3265, %v2197
    %v3394 = vmul.f32 %v3266, %v2204
    %v3395 = vmul.f32 %v3267, %v2211
    %v3396 = vmul.f32 %v3268, %v2218
    %v3397 = vmul.f32 %v3269, %v2225
    %v3398 = vmul.f32 %v3270, %v2232
    %v3399 = vmul.f32 %v3271, %v2239
    %v3400 = vmul.f32 %v3272, %v2246
    %v3401 = vmul.f32 %v3273, %v2253
    %v3402 = vmul.f32 %v3274, %v2260
    %v3403 = vmul.f32 %v3275, %v2267
    %v3404 = vmul.f32 %v3276, %v2274
    %v3405 = vmul.f32 %v3277, %v2281
    %v3406 = vmul.f32 %v3278, %v2288
    %v3407 = vmul.f32 %v3279, %v2295
    %v3408 = vmul.f32 %v3280, %v2302
    %v3409 = vmul.f32 %v3281, %v2309
    %v3410 = vmul.f32 %v3282, %v2316
    %v3411 = vmul.f32 %v3283, %v2323
    %v3412 = vmul.f32 %v3284, %v2330
    %v3413 = vmul.f32 %v3285, %v2337
    %v3414 = vmul.f32 %v3286, %v2344
    %v3415 = vmul.f32 %v3287, %v2351
    %v3416 = vmul.f32 %v3288, %v2358
    %v3417 = vmul.f32 %v3289, %v2365
    %v3418 = vmul.f32 %v3290, %v2372
    %v3419 = vmul.f32 %v3291, %v2379
    %v3420 = vmul.f32 %v3292, %v2386
    %v3421 = vmul.f32 %v3293, %v2393
    %v3422 = vmul.f32 %v3294, %v2400
    %v3423 = vmul.f32 %v3295, %v2407
    %v3424 = vmul.f32 %v3296, %v2414
    %v3425 = vmul.f32 %v3297, %v2421
    %v3426 = vmul.f32 %v3298, %v2428
    %v3427 = vmul.f32 %v3299, %v2435
    %v3428 = vmul.f32 %v3300, %v2442
    %v3429 = vmul.f32 %v3301, %v2449
    %v3430 = vmul.f32 %v3302, %v2456
    %v3431 = vmul.f32 %v3303, %v2463
    %v3432 = vmul.f32 %v3304, %v2470
    %v3433 = vmul.f32 %v3305, %v2477
    %v3434 = vmul.f32 %v3306, %v2484
    %v3435 = vmul.f32 %v3307, %v2491
    %v3436 = vmul.f32 %v3308, %v2498
    %v3437 = vmul.f32 %v3309, %v2505
    %v3438 = vmul.f32 %v3310, %v2512
    %v3439 = vmul.f32 %v3311, %v2519
    %v3440 = vmul.f32 %v3312, %v2526
    %v3441 = vmul.f32 %v3313, %v2533
    %v3442 = vmul.f32 %v3314, %v2540
    %v3443 = vmul.f32 %v3315, %v2547
    %v3444 = vmul.f32 %v3316, %v2554
    %v3445 = vmul.f32 %v3317, %v2561
    %v3446 = vmul.f32 %v3318, %v2568
    %v3447 = vmul.f32 %v3319, %v2575
    %v3448 = vmul.f32 %v3320, %v2582
    %v3449 = vmul.f32 %v3321, %v2589
    %v3450 = vmul.f32 %v3322, %v2596
    %v3451 = vmul.f32 %v3323, %v2603
    %v3452 = vmul.f32 %v3324, %v2610
    %v3453 = vmul.f32 %v3325, %v2617
    %v3454 = vmul.f32 %v3326, %v2624
    %v3455 = vmul.f32 %v3327, %v2631
    %v3456 = vmul.f32 %v3328, %v2638
    %v3457 = vmul.f32 %v3329, %v2645
    %v3458 = vmul.f32 %v3330, %v2652
    %v3459 = vmul.f32 %v3331, %v2659
    %v3460 = vmul.f32 %v3332, %v2666
    %v3461 = vmul.f32 %v3333, %v2673
    %v3462 = vmul.f32 %v3334, %v2680
    %v3463 = vmul.f32 %v3335, %v2687
    %v3464 = vmul.f32 %v3336, %v2694
    %v3465 = vmul.f32 %v3337, %v2701
    %v3466 = vmul.f32 %v3338, %v2708
    %v3467 = vmul.f32 %v3339, %v2715
    %v3468 = vmul.f32 %v3340, %v2722
    %v3469 = vmul.f32 %v3341, %v2729
    %v3470 = vmul.f32 %v3342, %v2736
    %v3471 = vmul.f32 %v3343, %v2743
    %v3472 = vmul.f32 %v3344, %v2750
    %v3473 = vmul.f32 %v3345, %v2757
    %v3474 = vmul.f32 %v3346, %v2764
    %v3475 = vmul.f32 %v3347, %v2771
    %v3476 = vmul.f32 %v3348, %v2778
    %v3477 = vmul.f32 %v3349, %v2785
    %v3478 = vmul.f32 %v3350, %v2792
    %v3479 = vmul.f32 %v3351, %v2799
    %v3480 = vmul.f32 %v3352, %v2806
    %v3481 = vmul.f32 %v3353, %v2813
    %v3482 = vmul.f32 %v3354, %v2820
    %v3483 = vmul.f32 %v3355, %v2827
    %v3484 = vmul.f32 %v3356, %v2834
    %v3485 = vmul.f32 %v3357, %v2841
    %v3486 = vmul.f32 %v3358, %v2848
    %v3487 = vmul.f32 %v3359, %v2855
    %v3488 = vmul.f32 %v3360, %v2862
    %v3489 = vmul.f32 %v3361, %v2869
    %v3490 = vmul.f32 %v3362, %v2876
    %v3491 = vmul.f32 %v3363, %v2883
    %v3492 = vmul.f32 %v3364, %v2890
    %v3493 = vmul.f32 %v3365, %v2897
    %v3494 = vmul.f32 %v3366, %v2904
    %v3495 = vmul.f32 %v3367, %v2911
    %v3496 = vmul.f32 %v3368, %v2918
    %v3497 = vmul.f32 %v3369, %v2925
    %v3498 = vmul.f32 %v3370, %v2932
    %v3499 = vmul.f32 %v3371, %v2939
    %v3500 = vmul.f32 %v3372, %v2946
    %v3501 = vmul.f32 %v3373, %v2953
    %v3502 = vmul.f32 %v3374, %v2960
    %v3503 = vmul.f32 %v3375, %v2967
    %v3504 = vmul.f32 %v3376, %v2974
    %v3505 = vmul.f32 %v3377, %v2981
    %v3506 = vmul.f32 %v3378, %v2988
    %v3507 = vmul.f32 %v3379, %v2995
    %s3508 = sld [smem:[#allocation2]]
    %v3509 = vstv %s3508
    %v3638 = vrot.slane %v3381, 7
    %vm3639 = vcmask 1041409
    %v3640 = vsel %vm3639, %v3638, %v3380
    %v3641 = vrot.slane %v3382, 6
    %vm3642 = vcmask 1042434
    %v3643 = vsel %vm3642, %v3641, %v3640
    %v3644 = vrot.slane %v3383, 5
    %vm3645 = vcmask 1043459
    %v3646 = vsel %vm3645, %v3644, %v3643
    %v3647 = vrot.slane %v3384, 4
    %vm3648 = vcmask 1044484
    %v3649 = vsel %vm3648, %v3647, %v3646
    %v3650 = vrot.slane %v3385, 3
    %vm3651 = vcmask 1045509
    %v3652 = vsel %vm3651, %v3650, %v3649
    %v3653 = vrot.slane %v3386, 2
    %vm3654 = vcmask 1046534
    %v3655 = vsel %vm3654, %v3653, %v3652
    %v3656 = vrot.slane %v3387, 1
    %vm3657 = vcmask 1047559
    %v3658 = vsel %vm3657, %v3656, %v3655
    %v3659 = vrot.slane %v3389, 7
    %v3660 = vsel %vm3639, %v3659, %v3388
    %v3661 = vrot.slane %v3390, 6
    %v3662 = vsel %vm3642, %v3661, %v3660
    %v3663 = vrot.slane %v3391, 5
    %v3664 = vsel %vm3645, %v3663, %v3662
    %v3665 = vrot.slane %v3392, 4
    %v3666 = vsel %vm3648, %v3665, %v3664
    %v3667 = vrot.slane %v3393, 3
    %v3668 = vsel %vm3651, %v3667, %v3666
    %v3669 = vrot.slane %v3394, 2
    %v3670 = vsel %vm3654, %v3669, %v3668
    %v3671 = vrot.slane %v3395, 1
    %v3672 = vsel %vm3657, %v3671, %v3670
    %v3673 = vrot.slane %v3397, 7
    %v3674 = vsel %vm3639, %v3673, %v3396
    %v3675 = vrot.slane %v3398, 6
    %v3676 = vsel %vm3642, %v3675, %v3674
    %v3677 = vrot.slane %v3399, 5
    %v3678 = vsel %vm3645, %v3677, %v3676
    %v3679 = vrot.slane %v3400, 4
    %v3680 = vsel %vm3648, %v3679, %v3678
    %v3681 = vrot.slane %v3401, 3
    %v3682 = vsel %vm3651, %v3681, %v3680
    %v3683 = vrot.slane %v3402, 2
    %v3684 = vsel %vm3654, %v3683, %v3682
    %v3685 = vrot.slane %v3403, 1
    %v3686 = vsel %vm3657, %v3685, %v3684
    %v3687 = vrot.slane %v3405, 7
    %v3688 = vsel %vm3639, %v3687, %v3404
    %v3689 = vrot.slane %v3406, 6
    %v3690 = vsel %vm3642, %v3689, %v3688
    %v3691 = vrot.slane %v3407, 5
    %v3692 = vsel %vm3645, %v3691, %v3690
    %v3693 = vrot.slane %v3408, 4
    %v3694 = vsel %vm3648, %v3693, %v3692
    %v3695 = vrot.slane %v3409, 3
    %v3696 = vsel %vm3651, %v3695, %v3694
    %v3697 = vrot.slane %v3410, 2
    %v3698 = vsel %vm3654, %v3697, %v3696
    %v3699 = vrot.slane %v3411, 1
    %v3700 = vsel %vm3657, %v3699, %v3698
    %v3701 = vrot.slane %v3413, 7
    %v3702 = vsel %vm3639, %v3701, %v3412
    %v3703 = vrot.slane %v3414, 6
    %v3704 = vsel %vm3642, %v3703, %v3702
    %v3705 = vrot.slane %v3415, 5
    %v3706 = vsel %vm3645, %v3705, %v3704
    %v3707 = vrot.slane %v3416, 4
    %v3708 = vsel %vm3648, %v3707, %v3706
    %v3709 = vrot.slane %v3417, 3
    %v3710 = vsel %vm3651, %v3709, %v3708
    %v3711 = vrot.slane %v3418, 2
    %v3712 = vsel %vm3654, %v3711, %v3710
    %v3713 = vrot.slane %v3419, 1
    %v3714 = vsel %vm3657, %v3713, %v3712
    %v3715 = vrot.slane %v3421, 7
    %v3716 = vsel %vm3639, %v3715, %v3420
    %v3717 = vrot.slane %v3422, 6
    %v3718 = vsel %vm3642, %v3717, %v3716
    %v3719 = vrot.slane %v3423, 5
    %v3720 = vsel %vm3645, %v3719, %v3718
    %v3721 = vrot.slane %v3424, 4
    %v3722 = vsel %vm3648, %v3721, %v3720
    %v3723 = vrot.slane %v3425, 3
    %v3724 = vsel %vm3651, %v3723, %v3722
    %v3725 = vrot.slane %v3426, 2
    %v3726 = vsel %vm3654, %v3725, %v3724
    %v3727 = vrot.slane %v3427, 1
    %v3728 = vsel %vm3657, %v3727, %v3726
    %v3729 = vrot.slane %v3429, 7
    %v3730 = vsel %vm3639, %v3729, %v3428
    %v3731 = vrot.slane %v3430, 6
    %v3732 = vsel %vm3642, %v3731, %v3730
    %v3733 = vrot.slane %v3431, 5
    %v3734 = vsel %vm3645, %v3733, %v3732
    %v3735 = vrot.slane %v3432, 4
    %v3736 = vsel %vm3648, %v3735, %v3734
    %v3737 = vrot.slane %v3433, 3
    %v3738 = vsel %vm3651, %v3737, %v3736
    %v3739 = vrot.slane %v3434, 2
    %v3740 = vsel %vm3654, %v3739, %v3738
    %v3741 = vrot.slane %v3435, 1
    %v3742 = vsel %vm3657, %v3741, %v3740
    %v3743 = vrot.slane %v3437, 7
    %v3744 = vsel %vm3639, %v3743, %v3436
    %v3745 = vrot.slane %v3438, 6
    %v3746 = vsel %vm3642, %v3745, %v3744
    %v3747 = vrot.slane %v3439, 5
    %v3748 = vsel %vm3645, %v3747, %v3746
    %v3749 = vrot.slane %v3440, 4
    %v3750 = vsel %vm3648, %v3749, %v3748
    %v3751 = vrot.slane %v3441, 3
    %v3752 = vsel %vm3651, %v3751, %v3750
    %v3753 = vrot.slane %v3442, 2
    %v3754 = vsel %vm3654, %v3753, %v3752
    %v3755 = vrot.slane %v3443, 1
    %v3756 = vsel %vm3657, %v3755, %v3754
    %v3757 = vrot.slane %v3445, 7
    %v3758 = vsel %vm3639, %v3757, %v3444
    %v3759 = vrot.slane %v3446, 6
    %v3760 = vsel %vm3642, %v3759, %v3758
    %v3761 = vrot.slane %v3447, 5
    %v3762 = vsel %vm3645, %v3761, %v3760
    %v3763 = vrot.slane %v3448, 4
    %v3764 = vsel %vm3648, %v3763, %v3762
    %v3765 = vrot.slane %v3449, 3
    %v3766 = vsel %vm3651, %v3765, %v3764
    %v3767 = vrot.slane %v3450, 2
    %v3768 = vsel %vm3654, %v3767, %v3766
    %v3769 = vrot.slane %v3451, 1
    %v3770 = vsel %vm3657, %v3769, %v3768
    %v3771 = vrot.slane %v3453, 7
    %v3772 = vsel %vm3639, %v3771, %v3452
    %v3773 = vrot.slane %v3454, 6
    %v3774 = vsel %vm3642, %v3773, %v3772
    %v3775 = vrot.slane %v3455, 5
    %v3776 = vsel %vm3645, %v3775, %v3774
    %v3777 = vrot.slane %v3456, 4
    %v3778 = vsel %vm3648, %v3777, %v3776
    %v3779 = vrot.slane %v3457, 3
    %v3780 = vsel %vm3651, %v3779, %v3778
    %v3781 = vrot.slane %v3458, 2
    %v3782 = vsel %vm3654, %v3781, %v3780
    %v3783 = vrot.slane %v3459, 1
    %v3784 = vsel %vm3657, %v3783, %v3782
    %v3785 = vrot.slane %v3461, 7
    %v3786 = vsel %vm3639, %v3785, %v3460
    %v3787 = vrot.slane %v3462, 6
    %v3788 = vsel %vm3642, %v3787, %v3786
    %v3789 = vrot.slane %v3463, 5
    %v3790 = vsel %vm3645, %v3789, %v3788
    %v3791 = vrot.slane %v3464, 4
    %v3792 = vsel %vm3648, %v3791, %v3790
    %v3793 = vrot.slane %v3465, 3
    %v3794 = vsel %vm3651, %v3793, %v3792
    %v3795 = vrot.slane %v3466, 2
    %v3796 = vsel %vm3654, %v3795, %v3794
    %v3797 = vrot.slane %v3467, 1
    %v3798 = vsel %vm3657, %v3797, %v3796
    %v3799 = vrot.slane %v3469, 7
    %v3800 = vsel %vm3639, %v3799, %v3468
    %v3801 = vrot.slane %v3470, 6
    %v3802 = vsel %vm3642, %v3801, %v3800
    %v3803 = vrot.slane %v3471, 5
    %v3804 = vsel %vm3645, %v3803, %v3802
    %v3805 = vrot.slane %v3472, 4
    %v3806 = vsel %vm3648, %v3805, %v3804
    %v3807 = vrot.slane %v3473, 3
    %v3808 = vsel %vm3651, %v3807, %v3806
    %v3809 = vrot.slane %v3474, 2
    %v3810 = vsel %vm3654, %v3809, %v3808
    %v3811 = vrot.slane %v3475, 1
    %v3812 = vsel %vm3657, %v3811, %v3810
    %v3813 = vrot.slane %v3477, 7
    %v3814 = vsel %vm3639, %v3813, %v3476
    %v3815 = vrot.slane %v3478, 6
    %v3816 = vsel %vm3642, %v3815, %v3814
    %v3817 = vrot.slane %v3479, 5
    %v3818 = vsel %vm3645, %v3817, %v3816
    %v3819 = vrot.slane %v3480, 4
    %v3820 = vsel %vm3648, %v3819, %v3818
    %v3821 = vrot.slane %v3481, 3
    %v3822 = vsel %vm3651, %v3821, %v3820
    %v3823 = vrot.slane %v3482, 2
    %v3824 = vsel %vm3654, %v3823, %v3822
    %v3825 = vrot.slane %v3483, 1
    %v3826 = vsel %vm3657, %v3825, %v3824
    %v3827 = vrot.slane %v3485, 7
    %v3828 = vsel %vm3639, %v3827, %v3484
    %v3829 = vrot.slane %v3486, 6
    %v3830 = vsel %vm3642, %v3829, %v3828
    %v3831 = vrot.slane %v3487, 5
    %v3832 = vsel %vm3645, %v3831, %v3830
    %v3833 = vrot.slane %v3488, 4
    %v3834 = vsel %vm3648, %v3833, %v3832
    %v3835 = vrot.slane %v3489, 3
    %v3836 = vsel %vm3651, %v3835, %v3834
    %v3837 = vrot.slane %v3490, 2
    %v3838 = vsel %vm3654, %v3837, %v3836
    %v3839 = vrot.slane %v3491, 1
    %v3840 = vsel %vm3657, %v3839, %v3838
    %v3841 = vrot.slane %v3493, 7
    %v3842 = vsel %vm3639, %v3841, %v3492
    %v3843 = vrot.slane %v3494, 6
    %v3844 = vsel %vm3642, %v3843, %v3842
    %v3845 = vrot.slane %v3495, 5
    %v3846 = vsel %vm3645, %v3845, %v3844
    %v3847 = vrot.slane %v3496, 4
    %v3848 = vsel %vm3648, %v3847, %v3846
    %v3849 = vrot.slane %v3497, 3
    %v3850 = vsel %vm3651, %v3849, %v3848
    %v3851 = vrot.slane %v3498, 2
    %v3852 = vsel %vm3654, %v3851, %v3850
    %v3853 = vrot.slane %v3499, 1
    %v3854 = vsel %vm3657, %v3853, %v3852
    %v3855 = vrot.slane %v3501, 7
    %v3856 = vsel %vm3639, %v3855, %v3500
    %v3857 = vrot.slane %v3502, 6
    %v3858 = vsel %vm3642, %v3857, %v3856
    %v3859 = vrot.slane %v3503, 5
    %v3860 = vsel %vm3645, %v3859, %v3858
    %v3861 = vrot.slane %v3504, 4
    %v3862 = vsel %vm3648, %v3861, %v3860
    %v3863 = vrot.slane %v3505, 3
    %v3864 = vsel %vm3651, %v3863, %v3862
    %v3865 = vrot.slane %v3506, 2
    %v3866 = vsel %vm3654, %v3865, %v3864
    %v3867 = vrot.slane %v3507, 1
    %v3868 = vsel %vm3657, %v3867, %v3866
    %vm3869 = vcmask 48128
    %v3871 = vsel %vm3869, 1.0, 0
    %v3873 = vsel %vm3869, %v3658, 0
    %v3875 = vsel %vm3869, %v3672, 0
    %v3877 = vsel %vm3869, %v3686, 0
    %v3879 = vsel %vm3869, %v3700, 0
    %v3881 = vsel %vm3869, %v3714, 0
    %v3883 = vsel %vm3869, %v3728, 0
    %v3885 = vsel %vm3869, %v3742, 0
    %v3887 = vsel %vm3869, %v3756, 0
    %v3889 = vsel %vm3869, %v3770, 0
    %v3891 = vsel %vm3869, %v3784, 0
    %v3893 = vsel %vm3869, %v3798, 0
    %v3895 = vsel %vm3869, %v3812, 0
    %v3897 = vsel %vm3869, %v3826, 0
    %v3899 = vsel %vm3869, %v3840, 0
    %v3901 = vsel %vm3869, %v3854, 0
    %v3903 = vsel %vm3869, %v3868, 0
    %3905 = vmatprep.subr.mxu0 0.0
    %3906 = vmatpush1.xpose.msra.mxu0 %v3903
    %3907 = vmatprep.subr.mxu0 0.0
    %3908 = vmatpush1.xpose.msra.mxu0 %v3901
    %3909 = vmatprep.subr.mxu0 0.0
    %3910 = vmatpush1.xpose.msra.mxu0 %v3899
    %3911 = vmatprep.subr.mxu0 0.0
    %3912 = vmatpush1.xpose.msra.mxu0 %v3897
    %3913 = vmatprep.subr.mxu0 0.0
    %3914 = vmatpush1.xpose.msra.mxu0 %v3895
    %3915 = vmatprep.subr.mxu0 0.0
    %3916 = vmatpush1.xpose.msra.mxu0 %v3893
    %3917 = vmatprep.subr.mxu0 0.0
    %3918 = vmatpush1.xpose.msra.mxu0 %v3891
    %3919 = vmatprep.subr.mxu0 0.0
    %3920 = vmatpush1.xpose.msra.mxu0 %v3889
    %3921 = vmatprep.subr.mxu0 0.0
    %3922 = vmatpush1.xpose.msra.mxu0 %v3887
    %3923 = vmatprep.subr.mxu0 0.0
    %3924 = vmatpush1.xpose.msra.mxu0 %v3885
    %3925 = vmatprep.subr.mxu0 0.0
    %3926 = vmatpush1.xpose.msra.mxu0 %v3883
    %3927 = vmatprep.subr.mxu0 0.0
    %3928 = vmatpush1.xpose.msra.mxu0 %v3881
    %3929 = vmatprep.subr.mxu0 0.0
    %3930 = vmatpush1.xpose.msra.mxu0 %v3879
    %3931 = vmatprep.subr.mxu0 0.0
    %3932 = vmatpush1.xpose.msra.mxu0 %v3877
    %3933 = vmatprep.subr.mxu0 0.0
    %3934 = vmatpush1.xpose.msra.mxu0 %v3875
    %3935 = vmatprep.subr.mxu0 0.0
    %3936 = vmatpush1.xpose.msra.mxu0 %v3873
    %3937 = vmatprep.subr.mxu0 0.0
    %3938 = vmatpush2.xpose.msra.mxu0 0.0
    %3939 = vmatprep.subr.mxu0 0.0
    %3940 = vmatpush2.xpose.msra.mxu0 0.0
    %3941 = vmatprep.subr.mxu0 0.0
    %3942 = vmatpush2.xpose.msra.mxu0 0.0
    %3943 = vmatprep.subr.mxu0 0.0
    %3944 = vmatpush2.xpose.msra.mxu0 0.0
    %3945 = vmatprep.subr.mxu0 0.0
    %3946 = vmatpush2.xpose.msra.mxu0 0.0
    %3947 = vmatprep.subr.mxu0 0.0
    %3948 = vmatpush2.xpose.msra.mxu0 0.0
    %3949 = vmatprep.subr.mxu0 0.0
    %3950 = vmatpush2.xpose.msra.mxu0 0.0
    %3951 = vmatprep.subr.mxu0 0.0
    %3952 = vmatpush2.xpose.msra.mxu0 0.0
    %3953 = vmatprep.subr.mxu0 0.0
    %3954 = vmatpush2.xpose.msra.mxu0 0.0
    %3955 = vmatprep.subr.mxu0 0.0
    %3956 = vmatpush2.xpose.msra.mxu0 0.0
    %3957 = vmatprep.subr.mxu0 0.0
    %3958 = vmatpush2.xpose.msra.mxu0 0.0
    %3959 = vmatprep.subr.mxu0 0.0
    %3960 = vmatpush2.xpose.msra.mxu0 0.0
    %3961 = vmatprep.subr.mxu0 0.0
    %3962 = vmatpush2.xpose.msra.mxu0 0.0
    %3963 = vmatprep.subr.mxu0 0.0
    %3964 = vmatpush2.xpose.msra.mxu0 0.0
    %3965 = vmatprep.subr.mxu0 0.0
    %3966 = vmatpush2.xpose.msra.mxu0 0.0
    %3967 = vmatprep.subr.mxu0 0.0
    %3968 = vmatpush2.xpose.msra.mxu0 0.0
    %3969 = vmatprep.mubr.f32.mxu0 0.0
    %3970 = vmatmul.mubr.f32.gmra.mxu0 %v3871
    %v3971 = vpop.f32.mrf.mxu0
    %v3972 = vadd.f32 %v3509, %v3971
    %v3973 = vpop.f32.mrf.mxu0
    %3974 = vdwg.mxu0
    %3975 = vst [vmem:[#allocation3] sm:$0x1] %v3972
    // Predicated region
    $region18: #{tpu_custom_call.1} parent=1 // pred_check
      _
    $region19: #{tpu_custom_call.1} parent=1 // pred_check_branch
      %3977 = sbr.rel (0) target = $region21
    $region20: #{tpu_custom_call.1} parent=1 // pred_region
      %s3979 = ssub.s32 16, 16
      %3980 = vsyncadd [#allocation4], %s3979
      %s3982 = sshll.u32 [#allocation3], 4
      %s3983 = int_to_ptr.vmem [resolvable:$true] %s3982
      %3985 = dma.vmem_to_hbm [thread:$0]  %s3983, 16, %s4, [#allocation4]
    $region21: #{tpu_custom_call.1} parent=1 // pred_fallthru
      _
    // Predicated region
    $region22: #{tpu_custom_call.1} parent=1 // pred_check
      _
    $region23: #{tpu_custom_call.1} parent=1 // pred_check_branch
      %3987 = sbr.rel (0) target = $region25
    $region24: #{tpu_custom_call.1} parent=1 // pred_region
      %3988 = dma.done [#allocation4], 16
    $region25: #{tpu_custom_call.1} parent=1 // pred_fallthru
      _
    %3989 = vsyncpa [#allocation4], 1

</llo_original>
